<compile_context>
chip_gen: v7x
topology: tpu7x:2x2x1
jax: 0.10.0
libtpu: 0.0.40
codegen_flags: <defaults>
</compile_context>

<pallas_src>
import functools

import jax
import jax.numpy as jnp
from jax.experimental import pallas as pl
from jax.experimental.pallas import tpu as pltpu

# MXU operand dtype.  bfloat16 (with float32 accumulation) per the perf review;
# set to jnp.float32 to recover <1e-2 agreement with the fp32 reference.
MXU_DTYPE = jnp.bfloat16


# ----------------------------- fused Pallas kernel ----------------------------

def _agcb_fused_kernel(x_row_ref, x_blk_ref, xT_blk_ref,
                       al_ref, rl_ref, wvl_ref, bvl_ref,
                       ag_ref, rg_ref, wvg_ref, bvg_ref,
                       mt_ref, perm_ref, wconv_ref, mask_ref,
                       bnsh_ref, gamma_ref,
                       o_ref, *, s, H, W):
    """One batch element; every intermediate stays in VMEM.

    x_row : (C, HW) row-major flat spatial.
    x_blk : (C, HW) block-contiguous (block (bi, bj) occupies columns
            [(bi*s+bj)*L, ...), row-major inside a block), L = (H//s)*(W//s).
    xT_blk: (HW, C) transpose of x_blk -- gives every attention matmul a
            standard (non-transposed-contraction) orientation.
    """
    C = x_row_ref.shape[1]
    HW = H * W
    hs, ws = H // s, W // s
    L = hs * ws                     # pixels per spatial block
    nb = s * s                      # number of spatial blocks
    f32 = jnp.float32

    x_row = x_row_ref[0]
    x_blk = x_blk_ref[0]
    xT_blk = xT_blk_ref[0]
    x_blk_m = x_blk.astype(MXU_DTYPE)
    xT_blk_m = xT_blk.astype(MXU_DTYPE)

    # ---- lane-dense projections shared by all s*s blocks (bf16 MXU, f32 acc) -
    # q/k folded host-side:  eT[m, n] = x_m^T (Wk^T Wq) x_n + x_m^T (Wk^T bq)
    mx = jnp.dot(al_ref[...], x_blk_m, preferred_element_type=f32)      # (C, HW)
    v = jnp.dot(wvl_ref[...], x_blk_m, preferred_element_type=f32) + bvl_ref[...]
    rT = jnp.dot(xT_blk_m, rl_ref[...], preferred_element_type=f32)     # (HW, 1)
    mx_m = mx.astype(MXU_DTYPE)
    v_m = v.astype(MXU_DTYPE)
    ones_row = jnp.ones((1, L), MXU_DTYPE)

    # ---- local non-local: s*s true small (L, L) softmax attentions -----------
    ctx_blocks = []
    for b in range(nb):
        cs = slice(b * L, (b + 1) * L)
        xTb = xT_blk_m[cs, :]                                            # (L, C)
        eT = jnp.dot(xTb, mx_m[:, cs], preferred_element_type=f32) + rT[cs, :]
        eT = eT - jnp.max(eT, axis=0, keepdims=True)                    # (L, L)
        pT = jnp.exp(eT).astype(MXU_DTYPE)     # column n = (unnormalized) row n
        # value matmul; the appended ones-row yields the softmax denominator
        v_aug = jnp.concatenate([v_m[:, cs], ones_row], axis=0)         # (C+1, L)
        ctx_aug = jnp.dot(v_aug, pT, preferred_element_type=f32)        # (C+1, L)
        ctx_blocks.append(ctx_aug[:C] *
                          pl.reciprocal(ctx_aug[C:C + 1], approx=True))

    # ---- block-contiguous -> row-major: one (hs*W, hs*W) permutation matmul
    #      per block-row group (exact: each permutation row has a single 1.0) --
    groups = []
    for bi in range(s):
        grp = jnp.concatenate(ctx_blocks[bi * s:(bi + 1) * s], axis=1)  # (C, s*L)
        groups.append(jnp.dot(grp, perm_ref[...], preferred_element_type=f32))
    ctx_row = jnp.concatenate(groups, axis=1)                           # (C, HW)
    local_out = gamma_ref[0] * ctx_row + x_row

    # ---- GCA branch: adaptive max-pool (contiguous slice-max, no masks) plus
    #      tiny non-local on the (C, s*s) pooled map (kept fp32: K/N tiny) -----
    pooled = jnp.concatenate(
        [jnp.max(x_blk[:, b * L:(b + 1) * L], axis=1, keepdims=True)
         for b in range(nb)], axis=1)                                   # (C, nb)
    pooledT = jnp.concatenate(
        [jnp.max(xT_blk[b * L:(b + 1) * L, :], axis=0, keepdims=True)
         for b in range(nb)], axis=0)                                   # (nb, C)
    mp = jnp.dot(ag_ref[...], pooled, preferred_element_type=f32)       # (C, nb)
    egT = (jnp.dot(pooledT, mp, preferred_element_type=f32) +
           jnp.dot(pooledT, rg_ref[...], preferred_element_type=f32))   # (nb, nb)
    egT = egT - jnp.max(egT, axis=0, keepdims=True)
    pgT = jnp.exp(egT)
    vg = jnp.dot(wvg_ref[...], pooled, preferred_element_type=f32) + bvg_ref[...]
    vg_aug = jnp.concatenate([vg, jnp.ones((1, nb), f32)], axis=0)      # (C+1, nb)
    g_aug = jnp.dot(vg_aug, pgT, preferred_element_type=f32)            # (C+1, nb)
    gctx = g_aug[:C] * pl.reciprocal(g_aug[C:C + 1], approx=True)
    gca = gamma_ref[1] * gctx + pooled                                  # (C, nb)

    # bilinear upsample (align_corners=True) as a matmul + sigmoid gate
    gate = jax.nn.sigmoid(jnp.dot(gca.astype(MXU_DTYPE), mt_ref[...],
                                  preferred_element_type=f32))          # (C, HW)
    gated = local_out * gate

    # ---- 3x3 conv + BN as ONE fused K=9*C matmul (BN scale folded into the
    #      weights host-side; boundary masks precomputed host-side) -----------
    taps = []
    t = 0
    for dh in (-1, 0, 1):
        for dw in (-1, 0, 1):
            d = dh * W + dw
            shifted = gated if d == 0 else pltpu.roll(gated, (-d) % HW, axis=1)
            taps.append((shifted * mask_ref[t]).astype(MXU_DTYPE))
            t += 1
    stacked = jnp.concatenate(taps, axis=0)                             # (9C, HW)
    y = jnp.dot(wconv_ref[...], stacked,
                preferred_element_type=f32) + bnsh_ref[...]             # (C, HW)
    o_ref[0] = jnp.maximum(gamma_ref[2] * y + x_row, 0.0)


# ----------------------------- pallas_call wrapper -----------------------------

def _rep(shape):
    """BlockSpec for a grid-invariant (replicated) full-array operand."""
    return pl.BlockSpec(shape, lambda b: (0,) * len(shape))


def _interp_matrix(out_size, in_size):
    """Row-interpolation matrix for bilinear upsampling, align_corners=True."""
    if in_size == 1:
        return jnp.ones((out_size, 1), jnp.float32)
    dst = jnp.arange(out_size, dtype=jnp.float32)
    src = dst * (in_size - 1) / (out_size - 1)
    i0 = jnp.clip(jnp.floor(src).astype(jnp.int32), 0, in_size - 2)
    frac = src - i0.astype(jnp.float32)
    rows = jnp.arange(out_size)
    R = jnp.zeros((out_size, in_size), jnp.float32)
    R = R.at[rows, i0].add(1.0 - frac)
    R = R.at[rows, i0 + 1].add(frac)
    return R


def agcb_element_forward(x, params, scale):
    B, C, H, W = x.shape
    s = scale
    # Matches PyTorch exactly when H, W are divisible by scale (the ragged
    # AdaptiveMaxPool2d / block-split case is intentionally unsupported).
    assert H % s == 0 and W % s == 0
    hs, ws = H // s, W // s
    L, nb, HW = hs * ws, s * s, H * W
    f32 = jnp.float32
    ln, gn = params["local_nl"], params["gca_nl"]

    # x in row-major, block-contiguous, and transposed block-contiguous layout:
    # three tiny HBM reads instead of any in-kernel relayout / gather.
    x_row = x.reshape(B, C, HW)
    x_blk = (x.reshape(B, C, s, hs, s, ws).transpose(0, 1, 2, 4, 3, 5)
              .reshape(B, C, HW))
    xT_blk = jnp.swapaxes(x_blk, 1, 2)                                # (B, HW, C)

    # Fold q/k projections into the energy (softmax is shift-invariant per row):
    #   eT[m, n] = x_m^T (Wk^T Wq) x_n + x_m^T (Wk^T bq)
    A_l = (ln["wk"].T @ ln["wq"]).astype(MXU_DTYPE)
    r_l = (ln["wk"].T @ ln["bq"]).reshape(C, 1).astype(MXU_DTYPE)
    A_g = gn["wk"].T @ gn["wq"]
    r_g = (gn["wk"].T @ gn["bq"]).reshape(C, 1)

    # Bilinear upsample matrix (align_corners=True), row-major output columns:
    # Mt[p*s+q, h*W+w] = Rh[h, p] * Rw[w, q]
    Rh, Rw = _interp_matrix(H, s), _interp_matrix(W, s)
    Mt = jnp.einsum("hp,wq->pqhw", Rh, Rw).reshape(nb, HW).astype(MXU_DTYPE)

    # Block-contiguous -> row-major permutation, applied per block-row group
    # (group size hs*W = s*L): (bj, h, w) -> (h, bj, w).
    bj, hh, wwi = jnp.meshgrid(jnp.arange(s), jnp.arange(hs), jnp.arange(ws),
                               indexing="ij")
    src = (bj * L + hh * ws + wwi).ravel()
    dst = (hh * W + bj * ws + wwi).ravel()
    perm = jnp.zeros((s * L, s * L), f32).at[src, dst].set(1.0)

    # 3x3 conv: BN scale folded into the weights, conv bias + BN shift folded
    # into one per-channel vector; weights laid out (C, 9*C) for one matmul.
    bn_scale = params["bn_w"] / jnp.sqrt(params["bn_var"] + 1e-5)
    bn_shift = params["bn_b"] - params["bn_mean"] * bn_scale
    bnsh_eff = (params["conv_b"] * bn_scale + bn_shift).reshape(C, 1)
    w_scaled = params["conv_w"] * bn_scale[:, None, None, None]      # (O, I, 3, 3)
    wconv = (jnp.transpose(w_scaled, (0, 2, 3, 1))
               .reshape(C, 9 * C).astype(MXU_DTYPE))                 # [o, t*C + i]

    # Per-tap boundary masks (grid-invariant; hoisted out of the kernel).
    hi = jnp.arange(H)
    wi = jnp.arange(W)
    masks = []
    for dh in (-1, 0, 1):
        for dw in (-1, 0, 1):
            mh = ((hi + dh >= 0) & (hi + dh < H)).astype(f32)
            mw = ((wi + dw >= 0) & (wi + dw < W)).astype(f32)
            masks.append(jnp.outer(mh, mw).reshape(1, HW))
    conv_mask = jnp.stack(masks, axis=0)                              # (9, 1, HW)

    gammas = jnp.stack([ln["gamma"], gn["gamma"], params["gamma"]]).astype(f32)

    kernel = functools.partial(_agcb_fused_kernel, s=s, H=H, W=W)
    out_flat = pl.pallas_call(
        kernel,
        out_shape=jax.ShapeDtypeStruct((B, C, HW), f32),
        grid=(B,),
        in_specs=[
            pl.BlockSpec((1, C, HW), lambda b: (b, 0, 0)),    # x_row
            pl.BlockSpec((1, C, HW), lambda b: (b, 0, 0)),    # x_blk
            pl.BlockSpec((1, HW, C), lambda b: (b, 0, 0)),    # xT_blk
            _rep((C, C)), _rep((C, 1)), _rep((C, C)), _rep((C, 1)),  # local NL
            _rep((C, C)), _rep((C, 1)), _rep((C, C)), _rep((C, 1)),  # GCA NL
            _rep((nb, HW)),                                   # upsample matrix
            _rep((s * L, s * L)),                             # blk->row perm
            _rep((C, 9 * C)),                                 # fused conv weights
            _rep((9, 1, HW)),                                 # conv boundary masks
            _rep((C, 1)),                                     # conv bias + BN shift
            pl.BlockSpec(memory_space=pltpu.MemorySpace.SMEM),  # gammas
        ],
        out_specs=pl.BlockSpec((1, C, HW), lambda b: (b, 0, 0)),
        compiler_params=pltpu.CompilerParams(
            # batch axis is parallel (splits across v7x's two TensorCores; no-op
            # on v5e/v6e).  Working set at this shape is <1 MiB; the explicit
            # limit is headroom for larger H, W instead of the scoped default.
            dimension_semantics=("parallel",),
            vmem_limit_bytes=64 * 1024 * 1024),
    )(x_row, x_blk, xT_blk,
      A_l, r_l, ln["wv"].astype(MXU_DTYPE), ln["bv"].reshape(C, 1),
      A_g, r_g, gn["wv"], gn["bv"].reshape(C, 1),
      Mt, perm, wconv, conv_mask, bnsh_eff, gammas)
    return out_flat.reshape(B, C, H, W)


# ----------------------------- pure-JAX reference ------------------------------

def _nonlocal_ref(xf, p):
    q = jnp.einsum("oc,bcn->bon", p["wq"], xf) + p["bq"][None, :, None]
    k = jnp.einsum("oc,bcn->bon", p["wk"], xf) + p["bk"][None, :, None]
    v = jnp.einsum("oc,bcn->bon", p["wv"], xf) + p["bv"][None, :, None]
    energy = jnp.einsum("bin,bim->bnm", q, k)
    attn = jax.nn.softmax(energy, axis=-1)
    out = jnp.einsum("bcm,bnm->bcn", v, attn)
    return p["gamma"] * out + xf


def agcb_element_ref(x, params, scale):
    B, C, H, W = x.shape
    s = scale
    hs, ws = H // s, W // s
    pooled = x.reshape(B, C, s, hs, s, ws).max(axis=(3, 5)).reshape(B, C, s * s)
    g = _nonlocal_ref(pooled, params["gca_nl"]).reshape(B, C, s, s)
    Rh = _interp_matrix(H, s)
    Rw = _interp_matrix(W, s)
    gate = jax.nn.sigmoid(jnp.einsum("hp,wq,bcpq->bchw", Rh, Rw, g))
    xb = x.reshape(B, C, s, hs, s, ws).transpose(0, 2, 4, 1, 3, 5)
    xb = xb.reshape(B * s * s, C, hs * ws)
    cb = _nonlocal_ref(xb, params["local_nl"])
    context = cb.reshape(B, s, s, C, hs, ws).transpose(0, 3, 1, 4, 2, 5)
    context = context.reshape(B, C, H, W) * gate
    y = jax.lax.conv_general_dilated(context, params["conv_w"], (1, 1), "SAME",
                                     dimension_numbers=("NCHW", "OIHW", "NCHW"))
    y = y + params["conv_b"][None, :, None, None]
    bn_scale = params["bn_w"] / jnp.sqrt(params["bn_var"] + 1e-5)
    bn_shift = params["bn_b"] - params["bn_mean"] * bn_scale
    y = y * bn_scale[None, :, None, None] + bn_shift[None, :, None, None]
    y = params["gamma"] * y + x
    return jnp.maximum(y, 0.0)


# ----------------------------- parameter init ----------------------------------

def init_params(key, planes, reduce_ratio_nl):
    inter = planes // reduce_ratio_nl
    ks = jax.random.split(key, 8)

    def nl_params(k, gamma_val):
        kk = jax.random.split(k, 6)
        return {
            "wq": 0.2 * jax.random.normal(kk[0], (inter, planes), jnp.float32),
            "bq": 0.05 * jax.random.normal(kk[1], (inter,), jnp.float32),
            "wk": 0.2 * jax.random.normal(kk[2], (inter, planes), jnp.float32),
            "bk": 0.05 * jax.random.normal(kk[3], (inter,), jnp.float32),
            "wv": 0.2 * jax.random.normal(kk[4], (planes, planes), jnp.float32),
            "bv": 0.05 * jax.random.normal(kk[5], (planes,), jnp.float32),
            # PyTorch initializes gamma to 0; use a nonzero deterministic value
            # so the attention path actually contributes in this synthetic test.
            "gamma": jnp.asarray(gamma_val, jnp.float32),
        }

    return {
        "local_nl": nl_params(ks[0], 0.5),
        "gca_nl": nl_params(ks[1], 0.4),
        "conv_w": 0.1 * jax.random.normal(ks[2], (planes, planes, 3, 3), jnp.float32),
        "conv_b": 0.05 * jax.random.normal(ks[3], (planes,), jnp.float32),
        "bn_w": 1.0 + 0.1 * jax.random.normal(ks[4], (planes,), jnp.float32),
        "bn_b": 0.05 * jax.random.normal(ks[5], (planes,), jnp.float32),
        "bn_mean": jnp.zeros((planes,), jnp.float32),  # eval-mode BN running stats
        "bn_var": jnp.ones((planes,), jnp.float32),
        "gamma": jnp.asarray(0.7, jnp.float32),
    }


# ----------------------------- main ---------------------------------------------

if __name__ == "__main__":
    B, planes, H, W = 2, 32, 16, 16
    scale, reduce_ratio_nl = 2, 8

    key = jax.random.PRNGKey(0)
    kx, kp = jax.random.split(key)
    x = jax.random.normal(kx, (B, planes, H, W), jnp.float32)
    params = init_params(kp, planes, reduce_ratio_nl)

    out = jax.block_until_ready(agcb_element_forward(x, params, scale))

    with jax.default_matmul_precision("float32"):
        ref = jax.block_until_ready(agcb_element_ref(x, params, scale))

    assert out.shape == (B, planes, H, W)
    err = float(jnp.max(jnp.abs(out - ref)))
    # bf16 MXU operands (per the perf review) introduce ~1e-2-scale absolute
    # error vs the fp32 reference; MXU_DTYPE = jnp.float32 recovers < 1e-2.
    assert err < 3e-2, f"max abs err {err}"
    print("KERNEL_OK")
</pallas_src>

<mosaic_0001>
module attributes {stable_mosaic.version = 11 : i64} {
  func.func @_agcb_fused_kernel(%arg0: i32, %arg1: memref<1x32x256xf32, #tpu.memory_space<vmem>>, %arg2: memref<1x32x256xf32, #tpu.memory_space<vmem>>, %arg3: memref<1x256x32xf32, #tpu.memory_space<vmem>>, %arg4: memref<32x32xbf16, #tpu.memory_space<vmem>>, %arg5: memref<32x1xbf16, #tpu.memory_space<vmem>>, %arg6: memref<32x32xbf16, #tpu.memory_space<vmem>>, %arg7: memref<32x1xf32, #tpu.memory_space<vmem>>, %arg8: memref<32x32xf32, #tpu.memory_space<vmem>>, %arg9: memref<32x1xf32, #tpu.memory_space<vmem>>, %arg10: memref<32x32xf32, #tpu.memory_space<vmem>>, %arg11: memref<32x1xf32, #tpu.memory_space<vmem>>, %arg12: memref<4x256xbf16, #tpu.memory_space<vmem>>, %arg13: memref<128x128xf32, #tpu.memory_space<vmem>>, %arg14: memref<32x288xbf16, #tpu.memory_space<vmem>>, %arg15: memref<9x1x256xf32, #tpu.memory_space<vmem>>, %arg16: memref<32x1xf32, #tpu.memory_space<vmem>>, %arg17: memref<3xf32, #tpu.memory_space<smem>>, %arg18: memref<1x32x256xf32, #tpu.memory_space<vmem>>) attributes {dimension_semantics = [#tpu.dimension_semantics<parallel>], iteration_bounds = array<i64: 2>, scalar_prefetch = 0 : i64, scratch_operands = 0 : i64, tpu.core_type = #tpu.core_type<tc>, window_params = [{transform_indices = @transform_0, window_bounds = array<i64: 1, 32, 256>}, {transform_indices = @transform_1, window_bounds = array<i64: 1, 32, 256>}, {transform_indices = @transform_2, window_bounds = array<i64: 1, 256, 32>}, {pipeline_mode = #tpu.pipeline_mode<synchronous>, transform_indices = @transform_3, window_bounds = array<i64: 32, 32>}, {pipeline_mode = #tpu.pipeline_mode<synchronous>, transform_indices = @transform_4, window_bounds = array<i64: 32, 1>}, {pipeline_mode = #tpu.pipeline_mode<synchronous>, transform_indices = @transform_5, window_bounds = array<i64: 32, 32>}, {pipeline_mode = #tpu.pipeline_mode<synchronous>, transform_indices = @transform_6, window_bounds = array<i64: 32, 1>}, {pipeline_mode = #tpu.pipeline_mode<synchronous>, transform_indices = @transform_7, window_bounds = array<i64: 32, 32>}, {pipeline_mode = #tpu.pipeline_mode<synchronous>, transform_indices = @transform_8, window_bounds = array<i64: 32, 1>}, {pipeline_mode = #tpu.pipeline_mode<synchronous>, transform_indices = @transform_9, window_bounds = array<i64: 32, 32>}, {pipeline_mode = #tpu.pipeline_mode<synchronous>, transform_indices = @transform_10, window_bounds = array<i64: 32, 1>}, {pipeline_mode = #tpu.pipeline_mode<synchronous>, transform_indices = @transform_11, window_bounds = array<i64: 4, 256>}, {pipeline_mode = #tpu.pipeline_mode<synchronous>, transform_indices = @transform_12, window_bounds = array<i64: 128, 128>}, {pipeline_mode = #tpu.pipeline_mode<synchronous>, transform_indices = @transform_13, window_bounds = array<i64: 32, 288>}, {pipeline_mode = #tpu.pipeline_mode<synchronous>, transform_indices = @transform_14, window_bounds = array<i64: 9, 1, 256>}, {pipeline_mode = #tpu.pipeline_mode<synchronous>, transform_indices = @transform_15, window_bounds = array<i64: 32, 1>}, {transform_indices = @transform_16, window_bounds = array<i64: 3>}, {transform_indices = @transform_17, window_bounds = array<i64: 1, 32, 256>}]} {
    %c0 = arith.constant 0 : index
    %c0_0 = arith.constant 0 : index
    %c0_1 = arith.constant 0 : index
    %0 = vector.load %arg1[%c0, %c0_0, %c0_1] : memref<1x32x256xf32, #tpu.memory_space<vmem>>, vector<1x32x256xf32>
    %1 = vector.shape_cast %0 : vector<1x32x256xf32> to vector<32x256xf32>
    %c0_2 = arith.constant 0 : index
    %c0_3 = arith.constant 0 : index
    %c0_4 = arith.constant 0 : index
    %2 = vector.load %arg2[%c0_2, %c0_3, %c0_4] : memref<1x32x256xf32, #tpu.memory_space<vmem>>, vector<1x32x256xf32>
    %3 = vector.shape_cast %2 : vector<1x32x256xf32> to vector<32x256xf32>
    %c0_5 = arith.constant 0 : index
    %c0_6 = arith.constant 0 : index
    %c0_7 = arith.constant 0 : index
    %4 = vector.load %arg3[%c0_5, %c0_6, %c0_7] : memref<1x256x32xf32, #tpu.memory_space<vmem>>, vector<1x256x32xf32>
    %5 = vector.shape_cast %4 : vector<1x256x32xf32> to vector<256x32xf32>
    %6 = arith.truncf %3 : vector<32x256xf32> to vector<32x256xbf16>
    %7 = arith.truncf %5 : vector<256x32xf32> to vector<256x32xbf16>
    %c0_8 = arith.constant 0 : index
    %c0_9 = arith.constant 0 : index
    %8 = vector.load %arg4[%c0_8, %c0_9] : memref<32x32xbf16, #tpu.memory_space<vmem>>, vector<32x32xbf16>
    %cst = arith.constant dense<0.000000e+00> : vector<32x256xf32>
    %9 = tpu.matmul %8, %6, %cst {dimension_numbers = #tpu.dot_dimension_numbers<[1], [0], [0], [1], [0, 0, 1, 1], [], []>} : vector<32x32xbf16>, vector<32x256xbf16>, vector<32x256xf32> -> vector<32x256xf32>
    %c0_10 = arith.constant 0 : index
    %c0_11 = arith.constant 0 : index
    %10 = vector.load %arg6[%c0_10, %c0_11] : memref<32x32xbf16, #tpu.memory_space<vmem>>, vector<32x32xbf16>
    %cst_12 = arith.constant dense<0.000000e+00> : vector<32x256xf32>
    %11 = tpu.matmul %10, %6, %cst_12 {dimension_numbers = #tpu.dot_dimension_numbers<[1], [0], [0], [1], [0, 0, 1, 1], [], []>} : vector<32x32xbf16>, vector<32x256xbf16>, vector<32x256xf32> -> vector<32x256xf32>
    %c0_13 = arith.constant 0 : index
    %c0_14 = arith.constant 0 : index
    %12 = vector.load %arg7[%c0_13, %c0_14] : memref<32x1xf32, #tpu.memory_space<vmem>>, vector<32x1xf32>
    %13 = vector.broadcast %12 : vector<32x1xf32> to vector<32x256xf32>
    %14 = arith.addf %11, %13 : vector<32x256xf32>
    %c0_15 = arith.constant 0 : index
    %c0_16 = arith.constant 0 : index
    %15 = vector.load %arg5[%c0_15, %c0_16] : memref<32x1xbf16, #tpu.memory_space<vmem>>, vector<32x1xbf16>
    %cst_17 = arith.constant dense<0.000000e+00> : vector<256x1xf32>
    %16 = tpu.matmul %7, %15, %cst_17 {dimension_numbers = #tpu.dot_dimension_numbers<[1], [0], [0], [1], [0, 0, 1, 1], [], []>} : vector<256x32xbf16>, vector<32x1xbf16>, vector<256x1xf32> -> vector<256x1xf32>
    %17 = arith.truncf %9 : vector<32x256xf32> to vector<32x256xbf16>
    %18 = arith.truncf %14 : vector<32x256xf32> to vector<32x256xbf16>
    %cst_18 = arith.constant 1.000000e+00 : bf16
    %19 = vector.broadcast %cst_18 : bf16 to vector<1x64xbf16>
    %20 = vector.extract_strided_slice %7 {offsets = [0, 0], sizes = [64, 32], strides = [1, 1]} : vector<256x32xbf16> to vector<64x32xbf16>
    %21 = vector.extract_strided_slice %17 {offsets = [0, 0], sizes = [32, 64], strides = [1, 1]} : vector<32x256xbf16> to vector<32x64xbf16>
    %cst_19 = arith.constant dense<0.000000e+00> : vector<64x64xf32>
    %22 = tpu.matmul %20, %21, %cst_19 {dimension_numbers = #tpu.dot_dimension_numbers<[1], [0], [0], [1], [0, 0, 1, 1], [], []>} : vector<64x32xbf16>, vector<32x64xbf16>, vector<64x64xf32> -> vector<64x64xf32>
    %23 = vector.extract_strided_slice %16 {offsets = [0, 0], sizes = [64, 1], strides = [1, 1]} : vector<256x1xf32> to vector<64x1xf32>
    %24 = vector.broadcast %23 : vector<64x1xf32> to vector<64x64xf32>
    %25 = arith.addf %22, %24 : vector<64x64xf32>
    %cst_20 = arith.constant dense<0xFF800000> : vector<64xf32>
    %26 = vector.multi_reduction <maximumf>, %25, %cst_20 [0] : vector<64x64xf32> to vector<64xf32>
    %27 = vector.shape_cast %26 : vector<64xf32> to vector<1x64xf32>
    %28 = vector.broadcast %27 : vector<1x64xf32> to vector<64x64xf32>
    %29 = arith.subf %25, %28 : vector<64x64xf32>
    %30 = math.exp %29 : vector<64x64xf32>
    %31 = arith.truncf %30 : vector<64x64xf32> to vector<64x64xbf16>
    %32 = vector.extract_strided_slice %18 {offsets = [0, 0], sizes = [32, 64], strides = [1, 1]} : vector<32x256xbf16> to vector<32x64xbf16>
    %33 = tpu.concatenate %32, %19 in 0 : vector<32x64xbf16>, vector<1x64xbf16> -> vector<33x64xbf16>
    %cst_21 = arith.constant dense<0.000000e+00> : vector<33x64xf32>
    %34 = tpu.matmul %33, %31, %cst_21 {dimension_numbers = #tpu.dot_dimension_numbers<[1], [0], [0], [1], [0, 0, 1, 1], [], []>} : vector<33x64xbf16>, vector<64x64xbf16>, vector<33x64xf32> -> vector<33x64xf32>
    %35 = vector.extract_strided_slice %34 {offsets = [0, 0], sizes = [32, 64], strides = [1, 1]} : vector<33x64xf32> to vector<32x64xf32>
    %36 = vector.extract_strided_slice %34 {offsets = [32, 0], sizes = [1, 64], strides = [1, 1]} : vector<33x64xf32> to vector<1x64xf32>
    %37 = tpu.reciprocal %36 {approx = true} : vector<1x64xf32> -> vector<1x64xf32>
    %38 = vector.broadcast %37 : vector<1x64xf32> to vector<32x64xf32>
    %39 = arith.mulf %35, %38 : vector<32x64xf32>
    %40 = vector.extract_strided_slice %7 {offsets = [64, 0], sizes = [64, 32], strides = [1, 1]} : vector<256x32xbf16> to vector<64x32xbf16>
    %41 = vector.extract_strided_slice %17 {offsets = [0, 64], sizes = [32, 64], strides = [1, 1]} : vector<32x256xbf16> to vector<32x64xbf16>
    %cst_22 = arith.constant dense<0.000000e+00> : vector<64x64xf32>
    %42 = tpu.matmul %40, %41, %cst_22 {dimension_numbers = #tpu.dot_dimension_numbers<[1], [0], [0], [1], [0, 0, 1, 1], [], []>} : vector<64x32xbf16>, vector<32x64xbf16>, vector<64x64xf32> -> vector<64x64xf32>
    %43 = vector.extract_strided_slice %16 {offsets = [64, 0], sizes = [64, 1], strides = [1, 1]} : vector<256x1xf32> to vector<64x1xf32>
    %44 = vector.broadcast %43 : vector<64x1xf32> to vector<64x64xf32>
    %45 = arith.addf %42, %44 : vector<64x64xf32>
    %cst_23 = arith.constant dense<0xFF800000> : vector<64xf32>
    %46 = vector.multi_reduction <maximumf>, %45, %cst_23 [0] : vector<64x64xf32> to vector<64xf32>
    %47 = vector.shape_cast %46 : vector<64xf32> to vector<1x64xf32>
    %48 = vector.broadcast %47 : vector<1x64xf32> to vector<64x64xf32>
    %49 = arith.subf %45, %48 : vector<64x64xf32>
    %50 = math.exp %49 : vector<64x64xf32>
    %51 = arith.truncf %50 : vector<64x64xf32> to vector<64x64xbf16>
    %52 = vector.extract_strided_slice %18 {offsets = [0, 64], sizes = [32, 64], strides = [1, 1]} : vector<32x256xbf16> to vector<32x64xbf16>
    %53 = tpu.concatenate %52, %19 in 0 : vector<32x64xbf16>, vector<1x64xbf16> -> vector<33x64xbf16>
    %cst_24 = arith.constant dense<0.000000e+00> : vector<33x64xf32>
    %54 = tpu.matmul %53, %51, %cst_24 {dimension_numbers = #tpu.dot_dimension_numbers<[1], [0], [0], [1], [0, 0, 1, 1], [], []>} : vector<33x64xbf16>, vector<64x64xbf16>, vector<33x64xf32> -> vector<33x64xf32>
    %55 = vector.extract_strided_slice %54 {offsets = [0, 0], sizes = [32, 64], strides = [1, 1]} : vector<33x64xf32> to vector<32x64xf32>
    %56 = vector.extract_strided_slice %54 {offsets = [32, 0], sizes = [1, 64], strides = [1, 1]} : vector<33x64xf32> to vector<1x64xf32>
    %57 = tpu.reciprocal %56 {approx = true} : vector<1x64xf32> -> vector<1x64xf32>
    %58 = vector.broadcast %57 : vector<1x64xf32> to vector<32x64xf32>
    %59 = arith.mulf %55, %58 : vector<32x64xf32>
    %60 = vector.extract_strided_slice %7 {offsets = [128, 0], sizes = [64, 32], strides = [1, 1]} : vector<256x32xbf16> to vector<64x32xbf16>
    %61 = vector.extract_strided_slice %17 {offsets = [0, 128], sizes = [32, 64], strides = [1, 1]} : vector<32x256xbf16> to vector<32x64xbf16>
    %cst_25 = arith.constant dense<0.000000e+00> : vector<64x64xf32>
    %62 = tpu.matmul %60, %61, %cst_25 {dimension_numbers = #tpu.dot_dimension_numbers<[1], [0], [0], [1], [0, 0, 1, 1], [], []>} : vector<64x32xbf16>, vector<32x64xbf16>, vector<64x64xf32> -> vector<64x64xf32>
    %63 = vector.extract_strided_slice %16 {offsets = [128, 0], sizes = [64, 1], strides = [1, 1]} : vector<256x1xf32> to vector<64x1xf32>
    %64 = vector.broadcast %63 : vector<64x1xf32> to vector<64x64xf32>
    %65 = arith.addf %62, %64 : vector<64x64xf32>
    %cst_26 = arith.constant dense<0xFF800000> : vector<64xf32>
    %66 = vector.multi_reduction <maximumf>, %65, %cst_26 [0] : vector<64x64xf32> to vector<64xf32>
    %67 = vector.shape_cast %66 : vector<64xf32> to vector<1x64xf32>
    %68 = vector.broadcast %67 : vector<1x64xf32> to vector<64x64xf32>
    %69 = arith.subf %65, %68 : vector<64x64xf32>
    %70 = math.exp %69 : vector<64x64xf32>
    %71 = arith.truncf %70 : vector<64x64xf32> to vector<64x64xbf16>
    %72 = vector.extract_strided_slice %18 {offsets = [0, 128], sizes = [32, 64], strides = [1, 1]} : vector<32x256xbf16> to vector<32x64xbf16>
    %73 = tpu.concatenate %72, %19 in 0 : vector<32x64xbf16>, vector<1x64xbf16> -> vector<33x64xbf16>
    %cst_27 = arith.constant dense<0.000000e+00> : vector<33x64xf32>
    %74 = tpu.matmul %73, %71, %cst_27 {dimension_numbers = #tpu.dot_dimension_numbers<[1], [0], [0], [1], [0, 0, 1, 1], [], []>} : vector<33x64xbf16>, vector<64x64xbf16>, vector<33x64xf32> -> vector<33x64xf32>
    %75 = vector.extract_strided_slice %74 {offsets = [0, 0], sizes = [32, 64], strides = [1, 1]} : vector<33x64xf32> to vector<32x64xf32>
    %76 = vector.extract_strided_slice %74 {offsets = [32, 0], sizes = [1, 64], strides = [1, 1]} : vector<33x64xf32> to vector<1x64xf32>
    %77 = tpu.reciprocal %76 {approx = true} : vector<1x64xf32> -> vector<1x64xf32>
    %78 = vector.broadcast %77 : vector<1x64xf32> to vector<32x64xf32>
    %79 = arith.mulf %75, %78 : vector<32x64xf32>
    %80 = vector.extract_strided_slice %7 {offsets = [192, 0], sizes = [64, 32], strides = [1, 1]} : vector<256x32xbf16> to vector<64x32xbf16>
    %81 = vector.extract_strided_slice %17 {offsets = [0, 192], sizes = [32, 64], strides = [1, 1]} : vector<32x256xbf16> to vector<32x64xbf16>
    %cst_28 = arith.constant dense<0.000000e+00> : vector<64x64xf32>
    %82 = tpu.matmul %80, %81, %cst_28 {dimension_numbers = #tpu.dot_dimension_numbers<[1], [0], [0], [1], [0, 0, 1, 1], [], []>} : vector<64x32xbf16>, vector<32x64xbf16>, vector<64x64xf32> -> vector<64x64xf32>
    %83 = vector.extract_strided_slice %16 {offsets = [192, 0], sizes = [64, 1], strides = [1, 1]} : vector<256x1xf32> to vector<64x1xf32>
    %84 = vector.broadcast %83 : vector<64x1xf32> to vector<64x64xf32>
    %85 = arith.addf %82, %84 : vector<64x64xf32>
    %cst_29 = arith.constant dense<0xFF800000> : vector<64xf32>
    %86 = vector.multi_reduction <maximumf>, %85, %cst_29 [0] : vector<64x64xf32> to vector<64xf32>
    %87 = vector.shape_cast %86 : vector<64xf32> to vector<1x64xf32>
    %88 = vector.broadcast %87 : vector<1x64xf32> to vector<64x64xf32>
    %89 = arith.subf %85, %88 : vector<64x64xf32>
    %90 = math.exp %89 : vector<64x64xf32>
    %91 = arith.truncf %90 : vector<64x64xf32> to vector<64x64xbf16>
    %92 = vector.extract_strided_slice %18 {offsets = [0, 192], sizes = [32, 64], strides = [1, 1]} : vector<32x256xbf16> to vector<32x64xbf16>
    %93 = tpu.concatenate %92, %19 in 0 : vector<32x64xbf16>, vector<1x64xbf16> -> vector<33x64xbf16>
    %cst_30 = arith.constant dense<0.000000e+00> : vector<33x64xf32>
    %94 = tpu.matmul %93, %91, %cst_30 {dimension_numbers = #tpu.dot_dimension_numbers<[1], [0], [0], [1], [0, 0, 1, 1], [], []>} : vector<33x64xbf16>, vector<64x64xbf16>, vector<33x64xf32> -> vector<33x64xf32>
    %95 = vector.extract_strided_slice %94 {offsets = [0, 0], sizes = [32, 64], strides = [1, 1]} : vector<33x64xf32> to vector<32x64xf32>
    %96 = vector.extract_strided_slice %94 {offsets = [32, 0], sizes = [1, 64], strides = [1, 1]} : vector<33x64xf32> to vector<1x64xf32>
    %97 = tpu.reciprocal %96 {approx = true} : vector<1x64xf32> -> vector<1x64xf32>
    %98 = vector.broadcast %97 : vector<1x64xf32> to vector<32x64xf32>
    %99 = arith.mulf %95, %98 : vector<32x64xf32>
    %100 = tpu.concatenate %39, %59 in 1 : vector<32x64xf32>, vector<32x64xf32> -> vector<32x128xf32>
    %c0_31 = arith.constant 0 : index
    %c0_32 = arith.constant 0 : index
    %101 = vector.load %arg13[%c0_31, %c0_32] : memref<128x128xf32, #tpu.memory_space<vmem>>, vector<128x128xf32>
    %cst_33 = arith.constant dense<0.000000e+00> : vector<32x128xf32>
    %102 = tpu.matmul %100, %101, %cst_33 {dimension_numbers = #tpu.dot_dimension_numbers<[1], [0], [0], [1], [0, 0, 1, 1], [], []>} : vector<32x128xf32>, vector<128x128xf32>, vector<32x128xf32> -> vector<32x128xf32>
    %103 = tpu.concatenate %79, %99 in 1 : vector<32x64xf32>, vector<32x64xf32> -> vector<32x128xf32>
    %c0_34 = arith.constant 0 : index
    %c0_35 = arith.constant 0 : index
    %104 = vector.load %arg13[%c0_34, %c0_35] : memref<128x128xf32, #tpu.memory_space<vmem>>, vector<128x128xf32>
    %cst_36 = arith.constant dense<0.000000e+00> : vector<32x128xf32>
    %105 = tpu.matmul %103, %104, %cst_36 {dimension_numbers = #tpu.dot_dimension_numbers<[1], [0], [0], [1], [0, 0, 1, 1], [], []>} : vector<32x128xf32>, vector<128x128xf32>, vector<32x128xf32> -> vector<32x128xf32>
    %106 = tpu.concatenate %102, %105 in 1 : vector<32x128xf32>, vector<32x128xf32> -> vector<32x256xf32>
    %c0_37 = arith.constant 0 : index
    %107 = memref.load %arg17[%c0_37] : memref<3xf32, #tpu.memory_space<smem>>
    %108 = vector.broadcast %107 : f32 to vector<32x256xf32>
    %109 = arith.mulf %108, %106 : vector<32x256xf32>
    %110 = arith.addf %109, %1 : vector<32x256xf32>
    %111 = vector.extract_strided_slice %3 {offsets = [0, 0], sizes = [32, 64], strides = [1, 1]} : vector<32x256xf32> to vector<32x64xf32>
    %cst_38 = arith.constant dense<0xFF800000> : vector<32xf32>
    %112 = vector.multi_reduction <maximumf>, %111, %cst_38 [1] : vector<32x64xf32> to vector<32xf32>
    %113 = vector.shape_cast %112 : vector<32xf32> to vector<32x1xf32>
    %114 = vector.extract_strided_slice %3 {offsets = [0, 64], sizes = [32, 64], strides = [1, 1]} : vector<32x256xf32> to vector<32x64xf32>
    %cst_39 = arith.constant dense<0xFF800000> : vector<32xf32>
    %115 = vector.multi_reduction <maximumf>, %114, %cst_39 [1] : vector<32x64xf32> to vector<32xf32>
    %116 = vector.shape_cast %115 : vector<32xf32> to vector<32x1xf32>
    %117 = vector.extract_strided_slice %3 {offsets = [0, 128], sizes = [32, 64], strides = [1, 1]} : vector<32x256xf32> to vector<32x64xf32>
    %cst_40 = arith.constant dense<0xFF800000> : vector<32xf32>
    %118 = vector.multi_reduction <maximumf>, %117, %cst_40 [1] : vector<32x64xf32> to vector<32xf32>
    %119 = vector.shape_cast %118 : vector<32xf32> to vector<32x1xf32>
    %120 = vector.extract_strided_slice %3 {offsets = [0, 192], sizes = [32, 64], strides = [1, 1]} : vector<32x256xf32> to vector<32x64xf32>
    %cst_41 = arith.constant dense<0xFF800000> : vector<32xf32>
    %121 = vector.multi_reduction <maximumf>, %120, %cst_41 [1] : vector<32x64xf32> to vector<32xf32>
    %122 = vector.shape_cast %121 : vector<32xf32> to vector<32x1xf32>
    %123 = tpu.concatenate %113, %116, %119, %122 in 1 : vector<32x1xf32>, vector<32x1xf32>, vector<32x1xf32>, vector<32x1xf32> -> vector<32x4xf32>
    %124 = vector.extract_strided_slice %5 {offsets = [0, 0], sizes = [64, 32], strides = [1, 1]} : vector<256x32xf32> to vector<64x32xf32>
    %cst_42 = arith.constant dense<0xFF800000> : vector<32xf32>
    %125 = vector.multi_reduction <maximumf>, %124, %cst_42 [0] : vector<64x32xf32> to vector<32xf32>
    %126 = vector.shape_cast %125 : vector<32xf32> to vector<1x32xf32>
    %127 = vector.extract_strided_slice %5 {offsets = [64, 0], sizes = [64, 32], strides = [1, 1]} : vector<256x32xf32> to vector<64x32xf32>
    %cst_43 = arith.constant dense<0xFF800000> : vector<32xf32>
    %128 = vector.multi_reduction <maximumf>, %127, %cst_43 [0] : vector<64x32xf32> to vector<32xf32>
    %129 = vector.shape_cast %128 : vector<32xf32> to vector<1x32xf32>
    %130 = vector.extract_strided_slice %5 {offsets = [128, 0], sizes = [64, 32], strides = [1, 1]} : vector<256x32xf32> to vector<64x32xf32>
    %cst_44 = arith.constant dense<0xFF800000> : vector<32xf32>
    %131 = vector.multi_reduction <maximumf>, %130, %cst_44 [0] : vector<64x32xf32> to vector<32xf32>
    %132 = vector.shape_cast %131 : vector<32xf32> to vector<1x32xf32>
    %133 = vector.extract_strided_slice %5 {offsets = [192, 0], sizes = [64, 32], strides = [1, 1]} : vector<256x32xf32> to vector<64x32xf32>
    %cst_45 = arith.constant dense<0xFF800000> : vector<32xf32>
    %134 = vector.multi_reduction <maximumf>, %133, %cst_45 [0] : vector<64x32xf32> to vector<32xf32>
    %135 = vector.shape_cast %134 : vector<32xf32> to vector<1x32xf32>
    %136 = tpu.concatenate %126, %129, %132, %135 in 0 : vector<1x32xf32>, vector<1x32xf32>, vector<1x32xf32>, vector<1x32xf32> -> vector<4x32xf32>
    %c0_46 = arith.constant 0 : index
    %c0_47 = arith.constant 0 : index
    %137 = vector.load %arg8[%c0_46, %c0_47] : memref<32x32xf32, #tpu.memory_space<vmem>>, vector<32x32xf32>
    %cst_48 = arith.constant dense<0.000000e+00> : vector<32x4xf32>
    %138 = tpu.matmul %137, %123, %cst_48 {dimension_numbers = #tpu.dot_dimension_numbers<[1], [0], [0], [1], [0, 0, 1, 1], [], []>} : vector<32x32xf32>, vector<32x4xf32>, vector<32x4xf32> -> vector<32x4xf32>
    %cst_49 = arith.constant dense<0.000000e+00> : vector<4x4xf32>
    %139 = tpu.matmul %136, %138, %cst_49 {dimension_numbers = #tpu.dot_dimension_numbers<[1], [0], [0], [1], [0, 0, 1, 1], [], []>} : vector<4x32xf32>, vector<32x4xf32>, vector<4x4xf32> -> vector<4x4xf32>
    %c0_50 = arith.constant 0 : index
    %c0_51 = arith.constant 0 : index
    %140 = vector.load %arg9[%c0_50, %c0_51] : memref<32x1xf32, #tpu.memory_space<vmem>>, vector<32x1xf32>
    %cst_52 = arith.constant dense<0.000000e+00> : vector<4x1xf32>
    %141 = tpu.matmul %136, %140, %cst_52 {dimension_numbers = #tpu.dot_dimension_numbers<[1], [0], [0], [1], [0, 0, 1, 1], [], []>} : vector<4x32xf32>, vector<32x1xf32>, vector<4x1xf32> -> vector<4x1xf32>
    %142 = vector.broadcast %141 : vector<4x1xf32> to vector<4x4xf32>
    %143 = arith.addf %139, %142 : vector<4x4xf32>
    %cst_53 = arith.constant dense<0xFF800000> : vector<4xf32>
    %144 = vector.multi_reduction <maximumf>, %143, %cst_53 [0] : vector<4x4xf32> to vector<4xf32>
    %145 = vector.shape_cast %144 : vector<4xf32> to vector<1x4xf32>
    %146 = vector.broadcast %145 : vector<1x4xf32> to vector<4x4xf32>
    %147 = arith.subf %143, %146 : vector<4x4xf32>
    %148 = math.exp %147 : vector<4x4xf32>
    %c0_54 = arith.constant 0 : index
    %c0_55 = arith.constant 0 : index
    %149 = vector.load %arg10[%c0_54, %c0_55] : memref<32x32xf32, #tpu.memory_space<vmem>>, vector<32x32xf32>
    %cst_56 = arith.constant dense<0.000000e+00> : vector<32x4xf32>
    %150 = tpu.matmul %149, %123, %cst_56 {dimension_numbers = #tpu.dot_dimension_numbers<[1], [0], [0], [1], [0, 0, 1, 1], [], []>} : vector<32x32xf32>, vector<32x4xf32>, vector<32x4xf32> -> vector<32x4xf32>
    %c0_57 = arith.constant 0 : index
    %c0_58 = arith.constant 0 : index
    %151 = vector.load %arg11[%c0_57, %c0_58] : memref<32x1xf32, #tpu.memory_space<vmem>>, vector<32x1xf32>
    %152 = vector.broadcast %151 : vector<32x1xf32> to vector<32x4xf32>
    %153 = arith.addf %150, %152 : vector<32x4xf32>
    %cst_59 = arith.constant 1.000000e+00 : f32
    %154 = vector.broadcast %cst_59 : f32 to vector<1x4xf32>
    %155 = tpu.concatenate %153, %154 in 0 : vector<32x4xf32>, vector<1x4xf32> -> vector<33x4xf32>
    %cst_60 = arith.constant dense<0.000000e+00> : vector<33x4xf32>
    %156 = tpu.matmul %155, %148, %cst_60 {dimension_numbers = #tpu.dot_dimension_numbers<[1], [0], [0], [1], [0, 0, 1, 1], [], []>} : vector<33x4xf32>, vector<4x4xf32>, vector<33x4xf32> -> vector<33x4xf32>
    %157 = vector.extract_strided_slice %156 {offsets = [0, 0], sizes = [32, 4], strides = [1, 1]} : vector<33x4xf32> to vector<32x4xf32>
    %158 = vector.extract_strided_slice %156 {offsets = [32, 0], sizes = [1, 4], strides = [1, 1]} : vector<33x4xf32> to vector<1x4xf32>
    %159 = tpu.reciprocal %158 {approx = true} : vector<1x4xf32> -> vector<1x4xf32>
    %160 = vector.broadcast %159 : vector<1x4xf32> to vector<32x4xf32>
    %161 = arith.mulf %157, %160 : vector<32x4xf32>
    %c1 = arith.constant 1 : index
    %162 = memref.load %arg17[%c1] : memref<3xf32, #tpu.memory_space<smem>>
    %163 = vector.broadcast %162 : f32 to vector<32x4xf32>
    %164 = arith.mulf %163, %161 : vector<32x4xf32>
    %165 = arith.addf %164, %123 : vector<32x4xf32>
    %166 = arith.truncf %165 : vector<32x4xf32> to vector<32x4xbf16>
    %c0_61 = arith.constant 0 : index
    %c0_62 = arith.constant 0 : index
    %167 = vector.load %arg12[%c0_61, %c0_62] : memref<4x256xbf16, #tpu.memory_space<vmem>>, vector<4x256xbf16>
    %cst_63 = arith.constant dense<0.000000e+00> : vector<32x256xf32>
    %168 = tpu.matmul %166, %167, %cst_63 {dimension_numbers = #tpu.dot_dimension_numbers<[1], [0], [0], [1], [0, 0, 1, 1], [], []>} : vector<32x4xbf16>, vector<4x256xbf16>, vector<32x256xf32> -> vector<32x256xf32>
    %169 = arith.negf %168 : vector<32x256xf32>
    %170 = math.exp %169 : vector<32x256xf32>
    %cst_64 = arith.constant 1.000000e+00 : f32
    %171 = vector.broadcast %cst_64 : f32 to vector<32x256xf32>
    %172 = arith.addf %171, %170 : vector<32x256xf32>
    %173 = arith.divf %171, %172 : vector<32x256xf32>
    %174 = arith.mulf %110, %173 : vector<32x256xf32>
    %c17_i32 = arith.constant 17 : i32
    %175 = tpu.dynamic_rotate %174 by %c17_i32 dim 1 : vector<32x256xf32>, i32 -> vector<32x256xf32>
    %c0_65 = arith.constant 0 : index
    %c0_66 = arith.constant 0 : index
    %c0_67 = arith.constant 0 : index
    %176 = vector.load %arg15[%c0_65, %c0_66, %c0_67] : memref<9x1x256xf32, #tpu.memory_space<vmem>>, vector<1x1x256xf32>
    %177 = vector.shape_cast %176 : vector<1x1x256xf32> to vector<1x256xf32>
    %178 = vector.broadcast %177 : vector<1x256xf32> to vector<32x256xf32>
    %179 = arith.mulf %175, %178 : vector<32x256xf32>
    %180 = arith.truncf %179 : vector<32x256xf32> to vector<32x256xbf16>
    %c16_i32 = arith.constant 16 : i32
    %181 = tpu.dynamic_rotate %174 by %c16_i32 dim 1 : vector<32x256xf32>, i32 -> vector<32x256xf32>
    %c1_68 = arith.constant 1 : index
    %c0_69 = arith.constant 0 : index
    %c0_70 = arith.constant 0 : index
    %182 = vector.load %arg15[%c1_68, %c0_69, %c0_70] : memref<9x1x256xf32, #tpu.memory_space<vmem>>, vector<1x1x256xf32>
    %183 = vector.shape_cast %182 : vector<1x1x256xf32> to vector<1x256xf32>
    %184 = vector.broadcast %183 : vector<1x256xf32> to vector<32x256xf32>
    %185 = arith.mulf %181, %184 : vector<32x256xf32>
    %186 = arith.truncf %185 : vector<32x256xf32> to vector<32x256xbf16>
    %c15_i32 = arith.constant 15 : i32
    %187 = tpu.dynamic_rotate %174 by %c15_i32 dim 1 : vector<32x256xf32>, i32 -> vector<32x256xf32>
    %c2 = arith.constant 2 : index
    %c0_71 = arith.constant 0 : index
    %c0_72 = arith.constant 0 : index
    %188 = vector.load %arg15[%c2, %c0_71, %c0_72] : memref<9x1x256xf32, #tpu.memory_space<vmem>>, vector<1x1x256xf32>
    %189 = vector.shape_cast %188 : vector<1x1x256xf32> to vector<1x256xf32>
    %190 = vector.broadcast %189 : vector<1x256xf32> to vector<32x256xf32>
    %191 = arith.mulf %187, %190 : vector<32x256xf32>
    %192 = arith.truncf %191 : vector<32x256xf32> to vector<32x256xbf16>
    %c1_i32 = arith.constant 1 : i32
    %193 = tpu.dynamic_rotate %174 by %c1_i32 dim 1 : vector<32x256xf32>, i32 -> vector<32x256xf32>
    %c3 = arith.constant 3 : index
    %c0_73 = arith.constant 0 : index
    %c0_74 = arith.constant 0 : index
    %194 = vector.load %arg15[%c3, %c0_73, %c0_74] : memref<9x1x256xf32, #tpu.memory_space<vmem>>, vector<1x1x256xf32>
    %195 = vector.shape_cast %194 : vector<1x1x256xf32> to vector<1x256xf32>
    %196 = vector.broadcast %195 : vector<1x256xf32> to vector<32x256xf32>
    %197 = arith.mulf %193, %196 : vector<32x256xf32>
    %198 = arith.truncf %197 : vector<32x256xf32> to vector<32x256xbf16>
    %c4 = arith.constant 4 : index
    %c0_75 = arith.constant 0 : index
    %c0_76 = arith.constant 0 : index
    %199 = vector.load %arg15[%c4, %c0_75, %c0_76] : memref<9x1x256xf32, #tpu.memory_space<vmem>>, vector<1x1x256xf32>
    %200 = vector.shape_cast %199 : vector<1x1x256xf32> to vector<1x256xf32>
    %201 = vector.broadcast %200 : vector<1x256xf32> to vector<32x256xf32>
    %202 = arith.mulf %174, %201 : vector<32x256xf32>
    %203 = arith.truncf %202 : vector<32x256xf32> to vector<32x256xbf16>
    %c255_i32 = arith.constant 255 : i32
    %204 = tpu.dynamic_rotate %174 by %c255_i32 dim 1 : vector<32x256xf32>, i32 -> vector<32x256xf32>
    %c5 = arith.constant 5 : index
    %c0_77 = arith.constant 0 : index
    %c0_78 = arith.constant 0 : index
    %205 = vector.load %arg15[%c5, %c0_77, %c0_78] : memref<9x1x256xf32, #tpu.memory_space<vmem>>, vector<1x1x256xf32>
    %206 = vector.shape_cast %205 : vector<1x1x256xf32> to vector<1x256xf32>
    %207 = vector.broadcast %206 : vector<1x256xf32> to vector<32x256xf32>
    %208 = arith.mulf %204, %207 : vector<32x256xf32>
    %209 = arith.truncf %208 : vector<32x256xf32> to vector<32x256xbf16>
    %c241_i32 = arith.constant 241 : i32
    %210 = tpu.dynamic_rotate %174 by %c241_i32 dim 1 : vector<32x256xf32>, i32 -> vector<32x256xf32>
    %c6 = arith.constant 6 : index
    %c0_79 = arith.constant 0 : index
    %c0_80 = arith.constant 0 : index
    %211 = vector.load %arg15[%c6, %c0_79, %c0_80] : memref<9x1x256xf32, #tpu.memory_space<vmem>>, vector<1x1x256xf32>
    %212 = vector.shape_cast %211 : vector<1x1x256xf32> to vector<1x256xf32>
    %213 = vector.broadcast %212 : vector<1x256xf32> to vector<32x256xf32>
    %214 = arith.mulf %210, %213 : vector<32x256xf32>
    %215 = arith.truncf %214 : vector<32x256xf32> to vector<32x256xbf16>
    %c240_i32 = arith.constant 240 : i32
    %216 = tpu.dynamic_rotate %174 by %c240_i32 dim 1 : vector<32x256xf32>, i32 -> vector<32x256xf32>
    %c7 = arith.constant 7 : index
    %c0_81 = arith.constant 0 : index
    %c0_82 = arith.constant 0 : index
    %217 = vector.load %arg15[%c7, %c0_81, %c0_82] : memref<9x1x256xf32, #tpu.memory_space<vmem>>, vector<1x1x256xf32>
    %218 = vector.shape_cast %217 : vector<1x1x256xf32> to vector<1x256xf32>
    %219 = vector.broadcast %218 : vector<1x256xf32> to vector<32x256xf32>
    %220 = arith.mulf %216, %219 : vector<32x256xf32>
    %221 = arith.truncf %220 : vector<32x256xf32> to vector<32x256xbf16>
    %c239_i32 = arith.constant 239 : i32
    %222 = tpu.dynamic_rotate %174 by %c239_i32 dim 1 : vector<32x256xf32>, i32 -> vector<32x256xf32>
    %c8 = arith.constant 8 : index
    %c0_83 = arith.constant 0 : index
    %c0_84 = arith.constant 0 : index
    %223 = vector.load %arg15[%c8, %c0_83, %c0_84] : memref<9x1x256xf32, #tpu.memory_space<vmem>>, vector<1x1x256xf32>
    %224 = vector.shape_cast %223 : vector<1x1x256xf32> to vector<1x256xf32>
    %225 = vector.broadcast %224 : vector<1x256xf32> to vector<32x256xf32>
    %226 = arith.mulf %222, %225 : vector<32x256xf32>
    %227 = arith.truncf %226 : vector<32x256xf32> to vector<32x256xbf16>
    %228 = tpu.concatenate %180, %186, %192, %198, %203, %209, %215, %221, %227 in 0 : vector<32x256xbf16>, vector<32x256xbf16>, vector<32x256xbf16>, vector<32x256xbf16>, vector<32x256xbf16>, vector<32x256xbf16>, vector<32x256xbf16>, vector<32x256xbf16>, vector<32x256xbf16> -> vector<288x256xbf16>
    %c0_85 = arith.constant 0 : index
    %c0_86 = arith.constant 0 : index
    %229 = vector.load %arg14[%c0_85, %c0_86] : memref<32x288xbf16, #tpu.memory_space<vmem>>, vector<32x288xbf16>
    %cst_87 = arith.constant dense<0.000000e+00> : vector<32x256xf32>
    %230 = tpu.matmul %229, %228, %cst_87 {dimension_numbers = #tpu.dot_dimension_numbers<[1], [0], [0], [1], [0, 0, 1, 1], [], []>} : vector<32x288xbf16>, vector<288x256xbf16>, vector<32x256xf32> -> vector<32x256xf32>
    %c0_88 = arith.constant 0 : index
    %c0_89 = arith.constant 0 : index
    %231 = vector.load %arg16[%c0_88, %c0_89] : memref<32x1xf32, #tpu.memory_space<vmem>>, vector<32x1xf32>
    %232 = vector.broadcast %231 : vector<32x1xf32> to vector<32x256xf32>
    %233 = arith.addf %230, %232 : vector<32x256xf32>
    %c2_90 = arith.constant 2 : index
    %234 = memref.load %arg17[%c2_90] : memref<3xf32, #tpu.memory_space<smem>>
    %235 = vector.broadcast %234 : f32 to vector<32x256xf32>
    %236 = arith.mulf %235, %233 : vector<32x256xf32>
    %237 = arith.addf %236, %1 : vector<32x256xf32>
    %cst_91 = arith.constant 0.000000e+00 : f32
    %238 = vector.broadcast %cst_91 : f32 to vector<32x256xf32>
    %239 = arith.maximumf %237, %238 : vector<32x256xf32>
    %c0_92 = arith.constant 0 : index
    %c0_93 = arith.constant 0 : index
    %c0_94 = arith.constant 0 : index
    %240 = vector.load %arg18[%c0_92, %c0_93, %c0_94] : memref<1x32x256xf32, #tpu.memory_space<vmem>>, vector<1x32x256xf32>
    %241 = vector.shape_cast %240 : vector<1x32x256xf32> to vector<32x256xf32>
    %242 = vector.shape_cast %239 : vector<32x256xf32> to vector<1x32x256xf32>
    tpu.vector_store %arg18[%c0_92, %c0_93, %c0_94], %242 {strides = array<i32>} : memref<1x32x256xf32, #tpu.memory_space<vmem>>, vector<1x32x256xf32>,
    return
  }
  func.func @transform_0(%arg0: i32) -> (i32, i32, i32) {
    %c0_i32 = arith.constant 0 : i32
    %c0_i32_0 = arith.constant 0 : i32
    %c0_i32_1 = arith.constant 0 : i32
    return %arg0, %c0_i32, %c0_i32_0 : i32, i32, i32
  }
  func.func @transform_1(%arg0: i32) -> (i32, i32, i32) {
    %c0_i32 = arith.constant 0 : i32
    %c0_i32_0 = arith.constant 0 : i32
    %c0_i32_1 = arith.constant 0 : i32
    return %arg0, %c0_i32, %c0_i32_0 : i32, i32, i32
  }
  func.func @transform_2(%arg0: i32) -> (i32, i32, i32) {
    %c0_i32 = arith.constant 0 : i32
    %c0_i32_0 = arith.constant 0 : i32
    %c0_i32_1 = arith.constant 0 : i32
    return %arg0, %c0_i32, %c0_i32_0 : i32, i32, i32
  }
  func.func @transform_3(%arg0: i32) -> (i32, i32) {
    %c0_i32 = arith.constant 0 : i32
    %c0_i32_0 = arith.constant 0 : i32
    %c0_i32_1 = arith.constant 0 : i32
    return %c0_i32, %c0_i32_0 : i32, i32
  }
  func.func @transform_4(%arg0: i32) -> (i32, i32) {
    %c0_i32 = arith.constant 0 : i32
    %c0_i32_0 = arith.constant 0 : i32
    %c0_i32_1 = arith.constant 0 : i32
    return %c0_i32, %c0_i32_0 : i32, i32
  }
  func.func @transform_5(%arg0: i32) -> (i32, i32) {
    %c0_i32 = arith.constant 0 : i32
    %c0_i32_0 = arith.constant 0 : i32
    %c0_i32_1 = arith.constant 0 : i32
    return %c0_i32, %c0_i32_0 : i32, i32
  }
  func.func @transform_6(%arg0: i32) -> (i32, i32) {
    %c0_i32 = arith.constant 0 : i32
    %c0_i32_0 = arith.constant 0 : i32
    %c0_i32_1 = arith.constant 0 : i32
    return %c0_i32, %c0_i32_0 : i32, i32
  }
  func.func @transform_7(%arg0: i32) -> (i32, i32) {
    %c0_i32 = arith.constant 0 : i32
    %c0_i32_0 = arith.constant 0 : i32
    %c0_i32_1 = arith.constant 0 : i32
    return %c0_i32, %c0_i32_0 : i32, i32
  }
  func.func @transform_8(%arg0: i32) -> (i32, i32) {
    %c0_i32 = arith.constant 0 : i32
    %c0_i32_0 = arith.constant 0 : i32
    %c0_i32_1 = arith.constant 0 : i32
    return %c0_i32, %c0_i32_0 : i32, i32
  }
  func.func @transform_9(%arg0: i32) -> (i32, i32) {
    %c0_i32 = arith.constant 0 : i32
    %c0_i32_0 = arith.constant 0 : i32
    %c0_i32_1 = arith.constant 0 : i32
    return %c0_i32, %c0_i32_0 : i32, i32
  }
  func.func @transform_10(%arg0: i32) -> (i32, i32) {
    %c0_i32 = arith.constant 0 : i32
    %c0_i32_0 = arith.constant 0 : i32
    %c0_i32_1 = arith.constant 0 : i32
    return %c0_i32, %c0_i32_0 : i32, i32
  }
  func.func @transform_11(%arg0: i32) -> (i32, i32) {
    %c0_i32 = arith.constant 0 : i32
    %c0_i32_0 = arith.constant 0 : i32
    %c0_i32_1 = arith.constant 0 : i32
    return %c0_i32, %c0_i32_0 : i32, i32
  }
  func.func @transform_12(%arg0: i32) -> (i32, i32) {
    %c0_i32 = arith.constant 0 : i32
    %c0_i32_0 = arith.constant 0 : i32
    %c0_i32_1 = arith.constant 0 : i32
    return %c0_i32, %c0_i32_0 : i32, i32
  }
  func.func @transform_13(%arg0: i32) -> (i32, i32) {
    %c0_i32 = arith.constant 0 : i32
    %c0_i32_0 = arith.constant 0 : i32
    %c0_i32_1 = arith.constant 0 : i32
    return %c0_i32, %c0_i32_0 : i32, i32
  }
  func.func @transform_14(%arg0: i32) -> (i32, i32, i32) {
    %c0_i32 = arith.constant 0 : i32
    %c0_i32_0 = arith.constant 0 : i32
    %c0_i32_1 = arith.constant 0 : i32
    %c0_i32_2 = arith.constant 0 : i32
    return %c0_i32, %c0_i32_0, %c0_i32_1 : i32, i32, i32
  }
  func.func @transform_15(%arg0: i32) -> (i32, i32) {
    %c0_i32 = arith.constant 0 : i32
    %c0_i32_0 = arith.constant 0 : i32
    %c0_i32_1 = arith.constant 0 : i32
    return %c0_i32, %c0_i32_0 : i32, i32
  }
  func.func @transform_16(%arg0: i32) -> i32 {
    %c0_i32 = arith.constant 0 : i32
    %c0_i32_0 = arith.constant 0 : i32
    return %c0_i32 : i32
  }
  func.func @transform_17(%arg0: i32) -> (i32, i32, i32) {
    %c0_i32 = arith.constant 0 : i32
    %c0_i32_0 = arith.constant 0 : i32
    %c0_i32_1 = arith.constant 0 : i32
    return %arg0, %c0_i32, %c0_i32_0 : i32, i32, i32
  }
}

</mosaic_0001>

<llo_original>
// kernel: tpu_custom_call.1
$region0: #{tpu_custom_call.1}
  #allocation0 [shape = 'u32[]', space=smem, size = 0x4, offset = 0x4, fixed_abs, tag = 'smem constant byte address 0x4 - core index']
  #allocation1 [shape = 'u32[144,128]{1,0:T(1,128)}', space=vmem, size = 0x12000, scoped, tag = 'internal scratch']
  %s0 = inlined_call_operand.hbm [shape: f32[2,32,256], index: 0, kind: input, shape index: {}]
  %s1 = inlined_call_operand.hbm [shape: f32[2,32,256], index: 1, kind: input, shape index: {}]
  %s2 = inlined_call_operand.hbm [shape: f32[2,256,32], index: 2, kind: input, shape index: {}]
  %s3 = inlined_call_operand.hbm [shape: bf16[32,32], index: 3, kind: input, shape index: {}]
  %s4 = inlined_call_operand.hbm [shape: bf16[32,1], index: 4, kind: input, shape index: {}]
  %s5 = inlined_call_operand.hbm [shape: bf16[32,32], index: 5, kind: input, shape index: {}]
  %s6 = inlined_call_operand.hbm [shape: f32[32,1], index: 6, kind: input, shape index: {}]
  %s7 = inlined_call_operand.hbm [shape: f32[32,32], index: 7, kind: input, shape index: {}]
  %s8 = inlined_call_operand.hbm [shape: f32[32,1], index: 8, kind: input, shape index: {}]
  %s9 = inlined_call_operand.hbm [shape: f32[32,32], index: 9, kind: input, shape index: {}]
  %s10 = inlined_call_operand.hbm [shape: f32[32,1], index: 10, kind: input, shape index: {}]
  %s11 = inlined_call_operand.hbm [shape: bf16[4,256], index: 11, kind: input, shape index: {}]
  %s12 = inlined_call_operand.hbm [shape: f32[128,128], index: 12, kind: input, shape index: {}]
  %s13 = inlined_call_operand.hbm [shape: bf16[32,288], index: 13, kind: input, shape index: {}]
  %s14 = inlined_call_operand.hbm [shape: f32[9,1,256], index: 14, kind: input, shape index: {}]
  %s15 = inlined_call_operand.hbm [shape: f32[32,1], index: 15, kind: input, shape index: {}]
  %s16 = inlined_call_operand.hbm [shape: f32[3], index: 16, kind: input, shape index: {}]
  %s17 = inlined_call_operand.hbm [shape: f32[2,32,256], index: 17, kind: output, shape index: {}]
  %s18 = sld [smem:[#allocation0]]
  $region169: #{tpu_custom_call.1} parent=0
    _
  %s20 = ssub.s32 1, %s18
  %s21 = scalar_select 0, %s20, %s18
  $region1: #{tpu_custom_call.1} parent=0
    #allocation2 [shape = 'u8[65536]{0}', space=vmem, size = 0x10000, scoped, tag = 'input window, operand 0']
    #allocation3 [shape = 's32[2]{0}', space=sflag, size = 0x8, scoped, tag = 'scoped memory for tpu_custom_call.1']
    #allocation4 [shape = 's32[2]{0}', space=sflag, size = 0x8, scoped, tag = 'scoped memory for tpu_custom_call.1']
    #allocation5 [shape = 's32[2]{0}', space=sflag, size = 0x8, scoped, tag = 'scoped memory for tpu_custom_call.1']
    #allocation6 [shape = 'u8[65536]{0}', space=vmem, size = 0x10000, scoped, tag = 'input window, operand 1']
    #allocation7 [shape = 's32[2]{0}', space=sflag, size = 0x8, scoped, tag = 'scoped memory for tpu_custom_call.1']
    #allocation8 [shape = 'u8[262144]{0}', space=vmem, size = 0x40000, scoped, tag = 'input window, operand 2']
    #allocation9 [shape = 'u8[8192]{0}', space=vmem, size = 0x2000, scoped, tag = 'input window, operand 3, single buffered']
    #allocation10 [shape = 's32[1]{0}', space=sflag, size = 0x4, scoped, tag = 'scoped memory for tpu_custom_call.1']
    #allocation11 [shape = 'u8[8192]{0}', space=vmem, size = 0x2000, scoped, tag = 'input window, operand 4, single buffered']
    #allocation12 [shape = 'u8[8192]{0}', space=vmem, size = 0x2000, scoped, tag = 'input window, operand 5, single buffered']
    #allocation13 [shape = 's32[1]{0}', space=sflag, size = 0x4, scoped, tag = 'scoped memory for tpu_custom_call.1']
    #allocation14 [shape = 'u8[16384]{0}', space=vmem, size = 0x4000, scoped, tag = 'input window, operand 6, single buffered']
    #allocation15 [shape = 'u8[16384]{0}', space=vmem, size = 0x4000, scoped, tag = 'input window, operand 7, single buffered']
    #allocation16 [shape = 's32[1]{0}', space=sflag, size = 0x4, scoped, tag = 'scoped memory for tpu_custom_call.1']
    #allocation17 [shape = 'u8[16384]{0}', space=vmem, size = 0x4000, scoped, tag = 'input window, operand 8, single buffered']
    #allocation18 [shape = 'u8[16384]{0}', space=vmem, size = 0x4000, scoped, tag = 'input window, operand 9, single buffered']
    #allocation19 [shape = 's32[1]{0}', space=sflag, size = 0x4, scoped, tag = 'scoped memory for tpu_custom_call.1']
    #allocation20 [shape = 'u8[16384]{0}', space=vmem, size = 0x4000, scoped, tag = 'input window, operand 10, single buffered']
    #allocation21 [shape = 'u8[2048]{0}', space=vmem, size = 0x800, scoped, tag = 'input window, operand 11, single buffered']
    #allocation22 [shape = 's32[1]{0}', space=sflag, size = 0x4, scoped, tag = 'scoped memory for tpu_custom_call.1']
    #allocation23 [shape = 'u8[65536]{0}', space=vmem, size = 0x10000, scoped, tag = 'input window, operand 12, single buffered']
    #allocation24 [shape = 'u8[24576]{0}', space=vmem, size = 0x6000, scoped, tag = 'input window, operand 13, single buffered']
    #allocation25 [shape = 's32[1]{0}', space=sflag, size = 0x4, scoped, tag = 'scoped memory for tpu_custom_call.1']
    #allocation26 [shape = 'u8[9216]{0}', space=vmem, size = 0x2400, scoped, tag = 'input window, operand 14, single buffered']
    #allocation27 [shape = 'u8[16384]{0}', space=vmem, size = 0x4000, scoped, tag = 'input window, operand 15, single buffered']
    #allocation28 [shape = 's32[1]{0}', space=sflag, size = 0x4, scoped, tag = 'scoped memory for tpu_custom_call.1']
    #allocation29 [shape = 'u8[512]{0}', space=smem, size = 0x200, scoped, tag = 'input window, operand 16, single buffered']
    #allocation30 [shape = 'u8[65536]{0}', space=vmem, size = 0x10000, scoped, tag = 'output window, operand 0']
    %22 = vsyncpa [#allocation3], 0
    %s23 = scalar_lea.sflag [#allocation3], 1
    %24 = vsyncpa %s23, 0
    %25 = vsyncpa [#allocation7], 0
    %s26 = scalar_lea.sflag [#allocation7], 1
    %27 = vsyncpa %s26, 0
    %28 = vsyncpa [#allocation10], 0
    %29 = vsyncpa [#allocation13], 0
    %30 = vsyncpa [#allocation16], 0
    %31 = vsyncpa [#allocation19], 0
    %32 = vsyncpa [#allocation22], 0
    %33 = vsyncpa [#allocation25], 0
    %34 = vsyncpa [#allocation28], 0
    %35 = vsyncpa [#allocation5], 0
    %36 = vsyncpa [#allocation4], 0
    %s37 = scalar_lea.sflag [#allocation4], 1
    %38 = vsyncpa %s37, 0
    loop: start=0, step=1, limit=4
    $region2: #{tpu_custom_call.1} parent=1 // loop_pre_header
      _
    $region3: #{tpu_custom_call.1} parent=1 // loop_header
      %s40 = sphi 0, %s44
      %p41 = scmp.ge.s32.totalorder %s40, 4
      %s50 = sphi 0, %s52
      %s53 = sphi 0, %s50
      %s54 = sphi 0, %s53
      %s70 = sphi 0, %s54
      %s76 = sphi 0, %s78
      %s79 = sphi 0, %s76
      %s80 = sphi 0, %s79
      %s96 = sphi 0, %s80
      %s102 = sphi 0, %s104
      %s105 = sphi 0, %s102
      %s106 = sphi 0, %s105
      %s122 = sphi 0, %s106
      %s126 = sphi 0, %s126
      %s128 = sphi 0, %s126
      %s129 = sphi 0, %s128
      %s143 = sphi 0, %s129
      %s147 = sphi 0, %s147
      %s149 = sphi 0, %s147
      %s150 = sphi 0, %s149
      %s164 = sphi 0, %s150
      %s168 = sphi 0, %s168
      %s170 = sphi 0, %s168
      %s171 = sphi 0, %s170
      %s185 = sphi 0, %s171
      %s189 = sphi 0, %s189
      %s191 = sphi 0, %s189
      %s192 = sphi 0, %s191
      %s206 = sphi 0, %s192
      %s210 = sphi 0, %s210
      %s212 = sphi 0, %s210
      %s213 = sphi 0, %s212
      %s227 = sphi 0, %s213
      %s231 = sphi 0, %s231
      %s233 = sphi 0, %s231
      %s234 = sphi 0, %s233
      %s248 = sphi 0, %s234
      %s252 = sphi 0, %s252
      %s254 = sphi 0, %s252
      %s255 = sphi 0, %s254
      %s269 = sphi 0, %s255
      %s273 = sphi 0, %s273
      %s275 = sphi 0, %s273
      %s276 = sphi 0, %s275
      %s290 = sphi 0, %s276
      %s294 = sphi 0, %s294
      %s296 = sphi 0, %s294
      %s297 = sphi 0, %s296
      %s311 = sphi 0, %s297
      %s315 = sphi 0, %s315
      %s317 = sphi 0, %s315
      %s318 = sphi 0, %s317
      %s332 = sphi 0, %s318
      %s336 = sphi 0, %s336
      %s338 = sphi 0, %s336
      %s339 = sphi 0, %s338
      %s353 = sphi 0, %s339
      %s357 = sphi 0, %s357
      %s359 = sphi 0, %s357
      %s360 = sphi 0, %s359
      %s374 = sphi 0, %s360
      %s378 = sphi 0, %s378
      %s380 = sphi 0, %s378
      %s381 = sphi 0, %s380
      %s395 = sphi 0, %s381
      %s399 = sphi 0, %s399
      %s401 = sphi 0, %s399
      %s402 = sphi 0, %s401
      %s416 = sphi 0, %s402
      %s422 = sphi 0, %s424
      %s425 = sphi 0, %s422
      %s426 = sphi 0, %s425
      %s442 = sphi 0, %s426
    $region4: #{tpu_custom_call.1} parent=1 // loop_header_branch
      %43 = sbr.rel (%p41) target = $region8
    $region5: #{tpu_custom_call.1} parent=1 // loop_body
      %s45 = ssub.s32 %s40, 1
      %s46 = ssub.s32 %s40, 2
      %s47 = sadd.s32 %s40, 1
      %s48 = ssub.s32 %s40, %s47
      %p49 = scmp.eq.s32.totalorder %s48, 0
      %s51 = sadd.s32 %s50, 1
      %s52 = scalar_select %p49, %s50, %s51
      %p55 = pneg %p49
      %p56 = scmp.eq.s32.totalorder %s40, 1
      %p57 = por %p55, %p56
      %p58 = scmp.ne.s32.totalorder %s50, %s53
      %p59 = scmp.eq.s32.totalorder %s40, 0
      %p60 = por %p58, %p59
      %p61 = scmp.ne.s32.totalorder %s50, %s53
      %p62 = scmp.eq.s32.totalorder %s45, 1
      %p63 = por %p61, %p62
      %p64 = scmp.ne.s32.totalorder %s53, %s54
      %p65 = scmp.eq.s32.totalorder %s45, 0
      %p66 = por %p64, %p65
      %p67 = scmp.ne.s32.totalorder %s53, %s54
      %p68 = scmp.eq.s32.totalorder %s46, 1
      %p69 = por %p67, %p68
      %p71 = scmp.ne.s32.totalorder %s54, %s70
      %p72 = scmp.eq.s32.totalorder %s46, 0
      %p73 = por %p71, %p72
      %s74 = ssub.s32 %s40, %s47
      %p75 = scmp.eq.s32.totalorder %s74, 0
      %s77 = sadd.s32 %s76, 1
      %s78 = scalar_select %p75, %s76, %s77
      %p81 = pneg %p75
      %p82 = scmp.eq.s32.totalorder %s40, 1
      %p83 = por %p81, %p82
      %p84 = scmp.ne.s32.totalorder %s76, %s79
      %p85 = scmp.eq.s32.totalorder %s40, 0
      %p86 = por %p84, %p85
      %p87 = scmp.ne.s32.totalorder %s76, %s79
      %p88 = scmp.eq.s32.totalorder %s45, 1
      %p89 = por %p87, %p88
      %p90 = scmp.ne.s32.totalorder %s79, %s80
      %p91 = scmp.eq.s32.totalorder %s45, 0
      %p92 = por %p90, %p91
      %p93 = scmp.ne.s32.totalorder %s79, %s80
      %p94 = scmp.eq.s32.totalorder %s46, 1
      %p95 = por %p93, %p94
      %p97 = scmp.ne.s32.totalorder %s80, %s96
      %p98 = scmp.eq.s32.totalorder %s46, 0
      %p99 = por %p97, %p98
      %s100 = ssub.s32 %s40, %s47
      %p101 = scmp.eq.s32.totalorder %s100, 0
      %s103 = sadd.s32 %s102, 1
      %s104 = scalar_select %p101, %s102, %s103
      %p107 = pneg %p101
      %p108 = scmp.eq.s32.totalorder %s40, 1
      %p109 = por %p107, %p108
      %p110 = scmp.ne.s32.totalorder %s102, %s105
      %p111 = scmp.eq.s32.totalorder %s40, 0
      %p112 = por %p110, %p111
      %p113 = scmp.ne.s32.totalorder %s102, %s105
      %p114 = scmp.eq.s32.totalorder %s45, 1
      %p115 = por %p113, %p114
      %p116 = scmp.ne.s32.totalorder %s105, %s106
      %p117 = scmp.eq.s32.totalorder %s45, 0
      %p118 = por %p116, %p117
      %p119 = scmp.ne.s32.totalorder %s105, %s106
      %p120 = scmp.eq.s32.totalorder %s46, 1
      %p121 = por %p119, %p120
      %p123 = scmp.ne.s32.totalorder %s106, %s122
      %p124 = scmp.eq.s32.totalorder %s46, 0
      %p125 = por %p123, %p124
      %s127 = sadd.s32 %s126, 1
      %p130 = scmp.eq.s32.totalorder %s40, 1
      %p131 = scmp.ne.s32.totalorder %s126, %s128
      %p132 = scmp.eq.s32.totalorder %s40, 0
      %p133 = por %p131, %p132
      %p134 = scmp.ne.s32.totalorder %s126, %s128
      %p135 = scmp.eq.s32.totalorder %s45, 1
      %p136 = por %p134, %p135
      %p137 = scmp.ne.s32.totalorder %s128, %s129
      %p138 = scmp.eq.s32.totalorder %s45, 0
      %p139 = por %p137, %p138
      %p140 = scmp.ne.s32.totalorder %s128, %s129
      %p141 = scmp.eq.s32.totalorder %s46, 1
      %p142 = por %p140, %p141
      %p144 = scmp.ne.s32.totalorder %s129, %s143
      %p145 = scmp.eq.s32.totalorder %s46, 0
      %p146 = por %p144, %p145
      %s148 = sadd.s32 %s147, 1
      %p151 = scmp.eq.s32.totalorder %s40, 1
      %p152 = scmp.ne.s32.totalorder %s147, %s149
      %p153 = scmp.eq.s32.totalorder %s40, 0
      %p154 = por %p152, %p153
      %p155 = scmp.ne.s32.totalorder %s147, %s149
      %p156 = scmp.eq.s32.totalorder %s45, 1
      %p157 = por %p155, %p156
      %p158 = scmp.ne.s32.totalorder %s149, %s150
      %p159 = scmp.eq.s32.totalorder %s45, 0
      %p160 = por %p158, %p159
      %p161 = scmp.ne.s32.totalorder %s149, %s150
      %p162 = scmp.eq.s32.totalorder %s46, 1
      %p163 = por %p161, %p162
      %p165 = scmp.ne.s32.totalorder %s150, %s164
      %p166 = scmp.eq.s32.totalorder %s46, 0
      %p167 = por %p165, %p166
      %s169 = sadd.s32 %s168, 1
      %p172 = scmp.eq.s32.totalorder %s40, 1
      %p173 = scmp.ne.s32.totalorder %s168, %s170
      %p174 = scmp.eq.s32.totalorder %s40, 0
      %p175 = por %p173, %p174
      %p176 = scmp.ne.s32.totalorder %s168, %s170
      %p177 = scmp.eq.s32.totalorder %s45, 1
      %p178 = por %p176, %p177
      %p179 = scmp.ne.s32.totalorder %s170, %s171
      %p180 = scmp.eq.s32.totalorder %s45, 0
      %p181 = por %p179, %p180
      %p182 = scmp.ne.s32.totalorder %s170, %s171
      %p183 = scmp.eq.s32.totalorder %s46, 1
      %p184 = por %p182, %p183
      %p186 = scmp.ne.s32.totalorder %s171, %s185
      %p187 = scmp.eq.s32.totalorder %s46, 0
      %p188 = por %p186, %p187
      %s190 = sadd.s32 %s189, 1
      %p193 = scmp.eq.s32.totalorder %s40, 1
      %p194 = scmp.ne.s32.totalorder %s189, %s191
      %p195 = scmp.eq.s32.totalorder %s40, 0
      %p196 = por %p194, %p195
      %p197 = scmp.ne.s32.totalorder %s189, %s191
      %p198 = scmp.eq.s32.totalorder %s45, 1
      %p199 = por %p197, %p198
      %p200 = scmp.ne.s32.totalorder %s191, %s192
      %p201 = scmp.eq.s32.totalorder %s45, 0
      %p202 = por %p200, %p201
      %p203 = scmp.ne.s32.totalorder %s191, %s192
      %p204 = scmp.eq.s32.totalorder %s46, 1
      %p205 = por %p203, %p204
      %p207 = scmp.ne.s32.totalorder %s192, %s206
      %p208 = scmp.eq.s32.totalorder %s46, 0
      %p209 = por %p207, %p208
      %s211 = sadd.s32 %s210, 1
      %p214 = scmp.eq.s32.totalorder %s40, 1
      %p215 = scmp.ne.s32.totalorder %s210, %s212
      %p216 = scmp.eq.s32.totalorder %s40, 0
      %p217 = por %p215, %p216
      %p218 = scmp.ne.s32.totalorder %s210, %s212
      %p219 = scmp.eq.s32.totalorder %s45, 1
      %p220 = por %p218, %p219
      %p221 = scmp.ne.s32.totalorder %s212, %s213
      %p222 = scmp.eq.s32.totalorder %s45, 0
      %p223 = por %p221, %p222
      %p224 = scmp.ne.s32.totalorder %s212, %s213
      %p225 = scmp.eq.s32.totalorder %s46, 1
      %p226 = por %p224, %p225
      %p228 = scmp.ne.s32.totalorder %s213, %s227
      %p229 = scmp.eq.s32.totalorder %s46, 0
      %p230 = por %p228, %p229
      %s232 = sadd.s32 %s231, 1
      %p235 = scmp.eq.s32.totalorder %s40, 1
      %p236 = scmp.ne.s32.totalorder %s231, %s233
      %p237 = scmp.eq.s32.totalorder %s40, 0
      %p238 = por %p236, %p237
      %p239 = scmp.ne.s32.totalorder %s231, %s233
      %p240 = scmp.eq.s32.totalorder %s45, 1
      %p241 = por %p239, %p240
      %p242 = scmp.ne.s32.totalorder %s233, %s234
      %p243 = scmp.eq.s32.totalorder %s45, 0
      %p244 = por %p242, %p243
      %p245 = scmp.ne.s32.totalorder %s233, %s234
      %p246 = scmp.eq.s32.totalorder %s46, 1
      %p247 = por %p245, %p246
      %p249 = scmp.ne.s32.totalorder %s234, %s248
      %p250 = scmp.eq.s32.totalorder %s46, 0
      %p251 = por %p249, %p250
      %s253 = sadd.s32 %s252, 1
      %p256 = scmp.eq.s32.totalorder %s40, 1
      %p257 = scmp.ne.s32.totalorder %s252, %s254
      %p258 = scmp.eq.s32.totalorder %s40, 0
      %p259 = por %p257, %p258
      %p260 = scmp.ne.s32.totalorder %s252, %s254
      %p261 = scmp.eq.s32.totalorder %s45, 1
      %p262 = por %p260, %p261
      %p263 = scmp.ne.s32.totalorder %s254, %s255
      %p264 = scmp.eq.s32.totalorder %s45, 0
      %p265 = por %p263, %p264
      %p266 = scmp.ne.s32.totalorder %s254, %s255
      %p267 = scmp.eq.s32.totalorder %s46, 1
      %p268 = por %p266, %p267
      %p270 = scmp.ne.s32.totalorder %s255, %s269
      %p271 = scmp.eq.s32.totalorder %s46, 0
      %p272 = por %p270, %p271
      %s274 = sadd.s32 %s273, 1
      %p277 = scmp.eq.s32.totalorder %s40, 1
      %p278 = scmp.ne.s32.totalorder %s273, %s275
      %p279 = scmp.eq.s32.totalorder %s40, 0
      %p280 = por %p278, %p279
      %p281 = scmp.ne.s32.totalorder %s273, %s275
      %p282 = scmp.eq.s32.totalorder %s45, 1
      %p283 = por %p281, %p282
      %p284 = scmp.ne.s32.totalorder %s275, %s276
      %p285 = scmp.eq.s32.totalorder %s45, 0
      %p286 = por %p284, %p285
      %p287 = scmp.ne.s32.totalorder %s275, %s276
      %p288 = scmp.eq.s32.totalorder %s46, 1
      %p289 = por %p287, %p288
      %p291 = scmp.ne.s32.totalorder %s276, %s290
      %p292 = scmp.eq.s32.totalorder %s46, 0
      %p293 = por %p291, %p292
      %s295 = sadd.s32 %s294, 1
      %p298 = scmp.eq.s32.totalorder %s40, 1
      %p299 = scmp.ne.s32.totalorder %s294, %s296
      %p300 = scmp.eq.s32.totalorder %s40, 0
      %p301 = por %p299, %p300
      %p302 = scmp.ne.s32.totalorder %s294, %s296
      %p303 = scmp.eq.s32.totalorder %s45, 1
      %p304 = por %p302, %p303
      %p305 = scmp.ne.s32.totalorder %s296, %s297
      %p306 = scmp.eq.s32.totalorder %s45, 0
      %p307 = por %p305, %p306
      %p308 = scmp.ne.s32.totalorder %s296, %s297
      %p309 = scmp.eq.s32.totalorder %s46, 1
      %p310 = por %p308, %p309
      %p312 = scmp.ne.s32.totalorder %s297, %s311
      %p313 = scmp.eq.s32.totalorder %s46, 0
      %p314 = por %p312, %p313
      %s316 = sadd.s32 %s315, 1
      %p319 = scmp.eq.s32.totalorder %s40, 1
      %p320 = scmp.ne.s32.totalorder %s315, %s317
      %p321 = scmp.eq.s32.totalorder %s40, 0
      %p322 = por %p320, %p321
      %p323 = scmp.ne.s32.totalorder %s315, %s317
      %p324 = scmp.eq.s32.totalorder %s45, 1
      %p325 = por %p323, %p324
      %p326 = scmp.ne.s32.totalorder %s317, %s318
      %p327 = scmp.eq.s32.totalorder %s45, 0
      %p328 = por %p326, %p327
      %p329 = scmp.ne.s32.totalorder %s317, %s318
      %p330 = scmp.eq.s32.totalorder %s46, 1
      %p331 = por %p329, %p330
      %p333 = scmp.ne.s32.totalorder %s318, %s332
      %p334 = scmp.eq.s32.totalorder %s46, 0
      %p335 = por %p333, %p334
      %s337 = sadd.s32 %s336, 1
      %p340 = scmp.eq.s32.totalorder %s40, 1
      %p341 = scmp.ne.s32.totalorder %s336, %s338
      %p342 = scmp.eq.s32.totalorder %s40, 0
      %p343 = por %p341, %p342
      %p344 = scmp.ne.s32.totalorder %s336, %s338
      %p345 = scmp.eq.s32.totalorder %s45, 1
      %p346 = por %p344, %p345
      %p347 = scmp.ne.s32.totalorder %s338, %s339
      %p348 = scmp.eq.s32.totalorder %s45, 0
      %p349 = por %p347, %p348
      %p350 = scmp.ne.s32.totalorder %s338, %s339
      %p351 = scmp.eq.s32.totalorder %s46, 1
      %p352 = por %p350, %p351
      %p354 = scmp.ne.s32.totalorder %s339, %s353
      %p355 = scmp.eq.s32.totalorder %s46, 0
      %p356 = por %p354, %p355
      %s358 = sadd.s32 %s357, 1
      %p361 = scmp.eq.s32.totalorder %s40, 1
      %p362 = scmp.ne.s32.totalorder %s357, %s359
      %p363 = scmp.eq.s32.totalorder %s40, 0
      %p364 = por %p362, %p363
      %p365 = scmp.ne.s32.totalorder %s357, %s359
      %p366 = scmp.eq.s32.totalorder %s45, 1
      %p367 = por %p365, %p366
      %p368 = scmp.ne.s32.totalorder %s359, %s360
      %p369 = scmp.eq.s32.totalorder %s45, 0
      %p370 = por %p368, %p369
      %p371 = scmp.ne.s32.totalorder %s359, %s360
      %p372 = scmp.eq.s32.totalorder %s46, 1
      %p373 = por %p371, %p372
      %p375 = scmp.ne.s32.totalorder %s360, %s374
      %p376 = scmp.eq.s32.totalorder %s46, 0
      %p377 = por %p375, %p376
      %s379 = sadd.s32 %s378, 1
      %p382 = scmp.eq.s32.totalorder %s40, 1
      %p383 = scmp.ne.s32.totalorder %s378, %s380
      %p384 = scmp.eq.s32.totalorder %s40, 0
      %p385 = por %p383, %p384
      %p386 = scmp.ne.s32.totalorder %s378, %s380
      %p387 = scmp.eq.s32.totalorder %s45, 1
      %p388 = por %p386, %p387
      %p389 = scmp.ne.s32.totalorder %s380, %s381
      %p390 = scmp.eq.s32.totalorder %s45, 0
      %p391 = por %p389, %p390
      %p392 = scmp.ne.s32.totalorder %s380, %s381
      %p393 = scmp.eq.s32.totalorder %s46, 1
      %p394 = por %p392, %p393
      %p396 = scmp.ne.s32.totalorder %s381, %s395
      %p397 = scmp.eq.s32.totalorder %s46, 0
      %p398 = por %p396, %p397
      %s400 = sadd.s32 %s399, 1
      %p403 = scmp.eq.s32.totalorder %s40, 1
      %p404 = scmp.ne.s32.totalorder %s399, %s401
      %p405 = scmp.eq.s32.totalorder %s40, 0
      %p406 = por %p404, %p405
      %p407 = scmp.ne.s32.totalorder %s399, %s401
      %p408 = scmp.eq.s32.totalorder %s45, 1
      %p409 = por %p407, %p408
      %p410 = scmp.ne.s32.totalorder %s401, %s402
      %p411 = scmp.eq.s32.totalorder %s45, 0
      %p412 = por %p410, %p411
      %p413 = scmp.ne.s32.totalorder %s401, %s402
      %p414 = scmp.eq.s32.totalorder %s46, 1
      %p415 = por %p413, %p414
      %p417 = scmp.ne.s32.totalorder %s402, %s416
      %p418 = scmp.eq.s32.totalorder %s46, 0
      %p419 = por %p417, %p418
      %s420 = ssub.s32 %s40, %s47
      %p421 = scmp.eq.s32.totalorder %s420, 0
      %s423 = sadd.s32 %s422, 1
      %s424 = scalar_select %p421, %s422, %s423
      %p427 = pneg %p421
      %p428 = scmp.eq.s32.totalorder %s40, 1
      %p429 = por %p427, %p428
      %p430 = scmp.ne.s32.totalorder %s422, %s425
      %p431 = scmp.eq.s32.totalorder %s40, 0
      %p432 = por %p430, %p431
      %p433 = scmp.ne.s32.totalorder %s422, %s425
      %p434 = scmp.eq.s32.totalorder %s45, 1
      %p435 = por %p433, %p434
      %p436 = scmp.ne.s32.totalorder %s425, %s426
      %p437 = scmp.eq.s32.totalorder %s45, 0
      %p438 = por %p436, %p437
      %p439 = scmp.ne.s32.totalorder %s425, %s426
      %p440 = scmp.eq.s32.totalorder %s46, 1
      %p441 = por %p439, %p440
      %p443 = scmp.ne.s32.totalorder %s426, %s442
      %p444 = scmp.eq.s32.totalorder %s46, 0
      %p445 = por %p443, %p444
      %p446 = scmp.le.s32.totalorder 1, %s40
      %p447 = scmp.lt.s32.totalorder %s40, 3
      %p448 = pnand %p446, %p447
      %p449 = pneg %p448
      // Predicated region
      $region9: #{tpu_custom_call.1} parent=5 // pred_check
        _
      $region10: #{tpu_custom_call.1} parent=5 // pred_check_branch
        %451 = sbr.rel (%p448) target = $region12
      $region11: #{tpu_custom_call.1} parent=5 // pred_region
        %s452 = ssub.s32 %s40, 1
        // Predicated region
        $region13: #{tpu_custom_call.1} parent=11 // pred_check
          %p453 = pneg %p139
        $region14: #{tpu_custom_call.1} parent=11 // pred_check_branch
          %455 = sbr.rel (%p453) target = $region16
        $region15: #{tpu_custom_call.1} parent=11 // pred_region
          %s457 = ssub.s32 256, 256
          %458 = vsyncadd [#allocation10], %s457
          %s459 = sshll.u32 [#allocation9], 4
          %s460 = int_to_ptr.vmem [resolvable:$true] %s459
          %465 = dma.hbm_to_vmem [thread:$0]  %s3, 256, %s460, [#allocation10], 64, 64, 4
        $region16: #{tpu_custom_call.1} parent=11 // pred_fallthru
          _
        // Predicated region
        $region17: #{tpu_custom_call.1} parent=11 // pred_check
          %p466 = pneg %p160
        $region18: #{tpu_custom_call.1} parent=11 // pred_check_branch
          %468 = sbr.rel (%p466) target = $region20
        $region19: #{tpu_custom_call.1} parent=11 // pred_region
          %s470 = ssub.s32 256, 256
          %471 = vsyncadd [#allocation10], %s470
          %s472 = sshll.u32 [#allocation11], 4
          %s473 = int_to_ptr.vmem [resolvable:$true] %s472
          %478 = dma.hbm_to_vmem [thread:$0]  %s4, 256, %s473, [#allocation10], 64, 64, 4
        $region20: #{tpu_custom_call.1} parent=11 // pred_fallthru
          _
        // Predicated region
        $region21: #{tpu_custom_call.1} parent=11 // pred_check
          %p479 = pneg %p181
        $region22: #{tpu_custom_call.1} parent=11 // pred_check_branch
          %481 = sbr.rel (%p479) target = $region24
        $region23: #{tpu_custom_call.1} parent=11 // pred_region
          %s483 = ssub.s32 256, 256
          %484 = vsyncadd [#allocation13], %s483
          %s485 = sshll.u32 [#allocation12], 4
          %s486 = int_to_ptr.vmem [resolvable:$true] %s485
          %491 = dma.hbm_to_vmem [thread:$0]  %s5, 256, %s486, [#allocation13], 64, 64, 4
        $region24: #{tpu_custom_call.1} parent=11 // pred_fallthru
          _
        // Predicated region
        $region25: #{tpu_custom_call.1} parent=11 // pred_check
          %p492 = pneg %p202
        $region26: #{tpu_custom_call.1} parent=11 // pred_check_branch
          %494 = sbr.rel (%p492) target = $region28
        $region27: #{tpu_custom_call.1} parent=11 // pred_region
          %s496 = ssub.s32 512, 512
          %497 = vsyncadd [#allocation13], %s496
          %s498 = sshll.u32 [#allocation14], 4
          %s499 = int_to_ptr.vmem [resolvable:$true] %s498
          %504 = dma.hbm_to_vmem [thread:$0]  %s6, 512, %s499, [#allocation13], 128, 128, 8
        $region28: #{tpu_custom_call.1} parent=11 // pred_fallthru
          _
        // Predicated region
        $region29: #{tpu_custom_call.1} parent=11 // pred_check
          %p505 = pneg %p223
        $region30: #{tpu_custom_call.1} parent=11 // pred_check_branch
          %507 = sbr.rel (%p505) target = $region32
        $region31: #{tpu_custom_call.1} parent=11 // pred_region
          %s509 = ssub.s32 512, 512
          %510 = vsyncadd [#allocation16], %s509
          %s511 = sshll.u32 [#allocation15], 4
          %s512 = int_to_ptr.vmem [resolvable:$true] %s511
          %517 = dma.hbm_to_vmem [thread:$0]  %s7, 512, %s512, [#allocation16], 128, 128, 8
        $region32: #{tpu_custom_call.1} parent=11 // pred_fallthru
          _
        // Predicated region
        $region33: #{tpu_custom_call.1} parent=11 // pred_check
          %p518 = pneg %p244
        $region34: #{tpu_custom_call.1} parent=11 // pred_check_branch
          %520 = sbr.rel (%p518) target = $region36
        $region35: #{tpu_custom_call.1} parent=11 // pred_region
          %s522 = ssub.s32 512, 512
          %523 = vsyncadd [#allocation16], %s522
          %s524 = sshll.u32 [#allocation17], 4
          %s525 = int_to_ptr.vmem [resolvable:$true] %s524
          %530 = dma.hbm_to_vmem [thread:$0]  %s8, 512, %s525, [#allocation16], 128, 128, 8
        $region36: #{tpu_custom_call.1} parent=11 // pred_fallthru
          _
        // Predicated region
        $region37: #{tpu_custom_call.1} parent=11 // pred_check
          %p531 = pneg %p265
        $region38: #{tpu_custom_call.1} parent=11 // pred_check_branch
          %533 = sbr.rel (%p531) target = $region40
        $region39: #{tpu_custom_call.1} parent=11 // pred_region
          %s535 = ssub.s32 512, 512
          %536 = vsyncadd [#allocation19], %s535
          %s537 = sshll.u32 [#allocation18], 4
          %s538 = int_to_ptr.vmem [resolvable:$true] %s537
          %543 = dma.hbm_to_vmem [thread:$0]  %s9, 512, %s538, [#allocation19], 128, 128, 8
        $region40: #{tpu_custom_call.1} parent=11 // pred_fallthru
          _
        // Predicated region
        $region41: #{tpu_custom_call.1} parent=11 // pred_check
          %p544 = pneg %p286
        $region42: #{tpu_custom_call.1} parent=11 // pred_check_branch
          %546 = sbr.rel (%p544) target = $region44
        $region43: #{tpu_custom_call.1} parent=11 // pred_region
          %s548 = ssub.s32 512, 512
          %549 = vsyncadd [#allocation19], %s548
          %s550 = sshll.u32 [#allocation20], 4
          %s551 = int_to_ptr.vmem [resolvable:$true] %s550
          %556 = dma.hbm_to_vmem [thread:$0]  %s10, 512, %s551, [#allocation19], 128, 128, 8
        $region44: #{tpu_custom_call.1} parent=11 // pred_fallthru
          _
        // Predicated region
        $region45: #{tpu_custom_call.1} parent=11 // pred_check
          %p557 = pneg %p307
        $region46: #{tpu_custom_call.1} parent=11 // pred_check_branch
          %559 = sbr.rel (%p557) target = $region48
        $region47: #{tpu_custom_call.1} parent=11 // pred_region
          %s561 = ssub.s32 64, 64
          %562 = vsyncadd [#allocation22], %s561
          %s564 = sshll.u32 [#allocation21], 4
          %s565 = int_to_ptr.vmem [resolvable:$true] %s564
          %567 = dma.hbm_to_vmem [thread:$0]  %s11, 64, %s565, [#allocation22]
        $region48: #{tpu_custom_call.1} parent=11 // pred_fallthru
          _
        // Predicated region
        $region49: #{tpu_custom_call.1} parent=11 // pred_check
          %p568 = pneg %p328
        $region50: #{tpu_custom_call.1} parent=11 // pred_check_branch
          %570 = sbr.rel (%p568) target = $region52
        $region51: #{tpu_custom_call.1} parent=11 // pred_region
          %s572 = ssub.s32 2048, 2048
          %573 = vsyncadd [#allocation22], %s572
          %s574 = sshll.u32 [#allocation23], 4
          %s575 = int_to_ptr.vmem [resolvable:$true] %s574
          %580 = dma.hbm_to_vmem [thread:$0]  %s12, 2048, %s575, [#allocation22], 128, 128, 8
        $region52: #{tpu_custom_call.1} parent=11 // pred_fallthru
          _
        // Predicated region
        $region53: #{tpu_custom_call.1} parent=11 // pred_check
          %p581 = pneg %p349
        $region54: #{tpu_custom_call.1} parent=11 // pred_check_branch
          %583 = sbr.rel (%p581) target = $region56
        $region55: #{tpu_custom_call.1} parent=11 // pred_region
          %s585 = ssub.s32 768, 768
          %586 = vsyncadd [#allocation25], %s585
          %s587 = sshll.u32 [#allocation24], 4
          %s588 = int_to_ptr.vmem [resolvable:$true] %s587
          %593 = dma.hbm_to_vmem [thread:$0]  %s13, 768, %s588, [#allocation25], 192, 192, 12
        $region56: #{tpu_custom_call.1} parent=11 // pred_fallthru
          _
        // Predicated region
        $region57: #{tpu_custom_call.1} parent=11 // pred_check
          %p594 = pneg %p370
        $region58: #{tpu_custom_call.1} parent=11 // pred_check_branch
          %596 = sbr.rel (%p594) target = $region60
        $region59: #{tpu_custom_call.1} parent=11 // pred_region
          %s598 = ssub.s32 288, 288
          %599 = vsyncadd [#allocation25], %s598
          %s600 = sshll.u32 [#allocation26], 4
          %s601 = int_to_ptr.vmem [resolvable:$true] %s600
          %606 = dma.hbm_to_vmem [thread:$0]  %s14, 288, %s601, [#allocation25], 32, 32, 2
        $region60: #{tpu_custom_call.1} parent=11 // pred_fallthru
          _
        // Predicated region
        $region61: #{tpu_custom_call.1} parent=11 // pred_check
          %p607 = pneg %p391
        $region62: #{tpu_custom_call.1} parent=11 // pred_check_branch
          %609 = sbr.rel (%p607) target = $region64
        $region63: #{tpu_custom_call.1} parent=11 // pred_region
          %s611 = ssub.s32 512, 512
          %612 = vsyncadd [#allocation28], %s611
          %s613 = sshll.u32 [#allocation27], 4
          %s614 = int_to_ptr.vmem [resolvable:$true] %s613
          %619 = dma.hbm_to_vmem [thread:$0]  %s15, 512, %s614, [#allocation28], 128, 128, 8
        $region64: #{tpu_custom_call.1} parent=11 // pred_fallthru
          _
        // Predicated region
        $region65: #{tpu_custom_call.1} parent=11 // pred_check
          %p620 = pneg %p412
        $region66: #{tpu_custom_call.1} parent=11 // pred_check_branch
          %622 = sbr.rel (%p620) target = $region68
        $region67: #{tpu_custom_call.1} parent=11 // pred_region
          %s624 = ssub.s32 16, 16
          %625 = vsyncadd [#allocation5], %s624
          %628 = dma.hbm_to_smem %s16, 16, [#allocation29], [#allocation5]
        $region68: #{tpu_custom_call.1} parent=11 // pred_fallthru
          _
      $region12: #{tpu_custom_call.1} parent=5 // pred_fallthru
        _
      %p629 = scmp.lt.s32.totalorder %s40, 2
      // Predicated region
      $region69: #{tpu_custom_call.1} parent=5 // pred_check
        %p630 = pneg %p629
      $region70: #{tpu_custom_call.1} parent=5 // pred_check_branch
        %632 = sbr.rel (%p630) target = $region72
      $region71: #{tpu_custom_call.1} parent=5 // pred_region
        // Predicated region
        $region73: #{tpu_custom_call.1} parent=71 // pred_check
          %p633 = pneg %p60
        $region74: #{tpu_custom_call.1} parent=71 // pred_check_branch
          %635 = sbr.rel (%p633) target = $region76
        $region75: #{tpu_custom_call.1} parent=71 // pred_region
          %s636 = sand.u32 %s50, 1
          %s637 = scalar_lea.sflag [#allocation3], %s636
          %s638 = sand.u32 %s50, 1
          %s639 = smul.addr %s638, 64
          %s640 = scalar_lea.vmem [#allocation2], %s639
          %s642 = ssub.s32 1024, 1024
          %643 = vsyncadd %s637, %s642
          %s644 = smul.addr %s40, 8
          %s645 = smul.addr %s644, 128
          %s646 = scalar_lea.hbm %s0, %s645
          %s647 = sshll.u32 %s640, 4
          %s648 = int_to_ptr.vmem [resolvable:$true] %s647
          %653 = dma.hbm_to_vmem [thread:$0]  %s646, 1024, %s648, %s637, 256, 256, 16
        $region76: #{tpu_custom_call.1} parent=71 // pred_fallthru
          _
        // Predicated region
        $region77: #{tpu_custom_call.1} parent=71 // pred_check
          %p654 = pneg %p86
        $region78: #{tpu_custom_call.1} parent=71 // pred_check_branch
          %656 = sbr.rel (%p654) target = $region80
        $region79: #{tpu_custom_call.1} parent=71 // pred_region
          %s657 = sand.u32 %s40, 1
          %s658 = scalar_lea.sflag [#allocation7], %s657
          %s659 = sand.u32 %s76, 1
          %s660 = smul.addr %s659, 64
          %s661 = scalar_lea.vmem [#allocation6], %s660
          %s663 = ssub.s32 1024, 1024
          %664 = vsyncadd %s658, %s663
          %s665 = smul.addr %s40, 8
          %s666 = smul.addr %s665, 128
          %s667 = scalar_lea.hbm %s1, %s666
          %s668 = sshll.u32 %s661, 4
          %s669 = int_to_ptr.vmem [resolvable:$true] %s668
          %674 = dma.hbm_to_vmem [thread:$0]  %s667, 1024, %s669, %s658, 256, 256, 16
        $region80: #{tpu_custom_call.1} parent=71 // pred_fallthru
          _
        // Predicated region
        $region81: #{tpu_custom_call.1} parent=71 // pred_check
          %p675 = pneg %p112
        $region82: #{tpu_custom_call.1} parent=71 // pred_check_branch
          %677 = sbr.rel (%p675) target = $region84
        $region83: #{tpu_custom_call.1} parent=71 // pred_region
          %s678 = sand.u32 %s40, 1
          %s679 = scalar_lea.sflag [#allocation7], %s678
          %s680 = sand.u32 %s102, 1
          %s681 = smul.addr %s680, 256
          %s682 = scalar_lea.vmem [#allocation8], %s681
          %s684 = ssub.s32 4096, 4096
          %685 = vsyncadd %s679, %s684
          %s686 = smul.addr %s40, 32
          %s687 = smul.addr %s686, 128
          %s688 = scalar_lea.hbm %s2, %s687
          %s689 = sshll.u32 %s682, 4
          %s690 = int_to_ptr.vmem [resolvable:$true] %s689
          %695 = dma.hbm_to_vmem [thread:$0]  %s688, 4096, %s690, %s679, 128, 128, 8
        $region84: #{tpu_custom_call.1} parent=71 // pred_fallthru
          _
      $region72: #{tpu_custom_call.1} parent=5 // pred_fallthru
        _
      %p696 = scmp.le.s32.totalorder 1, %s40
      %p697 = scmp.lt.s32.totalorder %s40, 3
      %p698 = pnand %p696, %p697
      %p699 = pneg %p698
      // Predicated region
      $region85: #{tpu_custom_call.1} parent=5 // pred_check
        _
      $region86: #{tpu_custom_call.1} parent=5 // pred_check_branch
        %701 = sbr.rel (%p698) target = $region88
      $region87: #{tpu_custom_call.1} parent=5 // pred_region
        %s702 = ssub.s32 %s40, 1
        %s703 = sand.u32 %s53, 1
        %s704 = scalar_lea.sflag [#allocation3], %s703
        %s705 = sand.u32 %s53, 1
        %s706 = smul.addr %s705, 64
        %s707 = scalar_lea.vmem [#allocation2], %s706
        // Predicated region
        $region89: #{tpu_custom_call.1} parent=87 // pred_check
          %p708 = pneg %p66
        $region90: #{tpu_custom_call.1} parent=87 // pred_check_branch
          %710 = sbr.rel (%p708) target = $region92
        $region91: #{tpu_custom_call.1} parent=87 // pred_region
          %711 = dma.done %s704, 1024
        $region92: #{tpu_custom_call.1} parent=87 // pred_fallthru
          _
        %s712 = sand.u32 %s45, 1
        %s713 = scalar_lea.sflag [#allocation7], %s712
        %s714 = sand.u32 %s79, 1
        %s715 = smul.addr %s714, 64
        %s716 = scalar_lea.vmem [#allocation6], %s715
        // Predicated region
        $region93: #{tpu_custom_call.1} parent=87 // pred_check
          %p717 = pneg %p92
        $region94: #{tpu_custom_call.1} parent=87 // pred_check_branch
          %719 = sbr.rel (%p717) target = $region96
        $region95: #{tpu_custom_call.1} parent=87 // pred_region
          %720 = dma.done %s713, 1024
        $region96: #{tpu_custom_call.1} parent=87 // pred_fallthru
          _
        %s721 = sand.u32 %s45, 1
        %s722 = scalar_lea.sflag [#allocation7], %s721
        %s723 = sand.u32 %s105, 1
        %s724 = smul.addr %s723, 256
        %s725 = scalar_lea.vmem [#allocation8], %s724
        // Predicated region
        $region97: #{tpu_custom_call.1} parent=87 // pred_check
          %p726 = pneg %p118
        $region98: #{tpu_custom_call.1} parent=87 // pred_check_branch
          %728 = sbr.rel (%p726) target = $region100
        $region99: #{tpu_custom_call.1} parent=87 // pred_region
          %729 = dma.done %s722, 4096
        $region100: #{tpu_custom_call.1} parent=87 // pred_fallthru
          _
        // Predicated region
        $region101: #{tpu_custom_call.1} parent=87 // pred_check
          %p730 = pneg %p139
        $region102: #{tpu_custom_call.1} parent=87 // pred_check_branch
          %732 = sbr.rel (%p730) target = $region104
        $region103: #{tpu_custom_call.1} parent=87 // pred_region
          %733 = dma.done [#allocation10], 256
        $region104: #{tpu_custom_call.1} parent=87 // pred_fallthru
          _
        // Predicated region
        $region105: #{tpu_custom_call.1} parent=87 // pred_check
          %p734 = pneg %p160
        $region106: #{tpu_custom_call.1} parent=87 // pred_check_branch
          %736 = sbr.rel (%p734) target = $region108
        $region107: #{tpu_custom_call.1} parent=87 // pred_region
          %737 = dma.done [#allocation10], 256
        $region108: #{tpu_custom_call.1} parent=87 // pred_fallthru
          _
        // Predicated region
        $region109: #{tpu_custom_call.1} parent=87 // pred_check
          %p738 = pneg %p181
        $region110: #{tpu_custom_call.1} parent=87 // pred_check_branch
          %740 = sbr.rel (%p738) target = $region112
        $region111: #{tpu_custom_call.1} parent=87 // pred_region
          %741 = dma.done [#allocation13], 256
        $region112: #{tpu_custom_call.1} parent=87 // pred_fallthru
          _
        // Predicated region
        $region113: #{tpu_custom_call.1} parent=87 // pred_check
          %p742 = pneg %p202
        $region114: #{tpu_custom_call.1} parent=87 // pred_check_branch
          %744 = sbr.rel (%p742) target = $region116
        $region115: #{tpu_custom_call.1} parent=87 // pred_region
          %745 = dma.done [#allocation13], 512
        $region116: #{tpu_custom_call.1} parent=87 // pred_fallthru
          _
        // Predicated region
        $region117: #{tpu_custom_call.1} parent=87 // pred_check
          %p746 = pneg %p223
        $region118: #{tpu_custom_call.1} parent=87 // pred_check_branch
          %748 = sbr.rel (%p746) target = $region120
        $region119: #{tpu_custom_call.1} parent=87 // pred_region
          %749 = dma.done [#allocation16], 512
        $region120: #{tpu_custom_call.1} parent=87 // pred_fallthru
          _
        // Predicated region
        $region121: #{tpu_custom_call.1} parent=87 // pred_check
          %p750 = pneg %p244
        $region122: #{tpu_custom_call.1} parent=87 // pred_check_branch
          %752 = sbr.rel (%p750) target = $region124
        $region123: #{tpu_custom_call.1} parent=87 // pred_region
          %753 = dma.done [#allocation16], 512
        $region124: #{tpu_custom_call.1} parent=87 // pred_fallthru
          _
        // Predicated region
        $region125: #{tpu_custom_call.1} parent=87 // pred_check
          %p754 = pneg %p265
        $region126: #{tpu_custom_call.1} parent=87 // pred_check_branch
          %756 = sbr.rel (%p754) target = $region128
        $region127: #{tpu_custom_call.1} parent=87 // pred_region
          %757 = dma.done [#allocation19], 512
        $region128: #{tpu_custom_call.1} parent=87 // pred_fallthru
          _
        // Predicated region
        $region129: #{tpu_custom_call.1} parent=87 // pred_check
          %p758 = pneg %p286
        $region130: #{tpu_custom_call.1} parent=87 // pred_check_branch
          %760 = sbr.rel (%p758) target = $region132
        $region131: #{tpu_custom_call.1} parent=87 // pred_region
          %761 = dma.done [#allocation19], 512
        $region132: #{tpu_custom_call.1} parent=87 // pred_fallthru
          _
        // Predicated region
        $region133: #{tpu_custom_call.1} parent=87 // pred_check
          %p762 = pneg %p307
        $region134: #{tpu_custom_call.1} parent=87 // pred_check_branch
          %764 = sbr.rel (%p762) target = $region136
        $region135: #{tpu_custom_call.1} parent=87 // pred_region
          %765 = dma.done [#allocation22], 64
        $region136: #{tpu_custom_call.1} parent=87 // pred_fallthru
          _
        // Predicated region
        $region137: #{tpu_custom_call.1} parent=87 // pred_check
          %p766 = pneg %p328
        $region138: #{tpu_custom_call.1} parent=87 // pred_check_branch
          %768 = sbr.rel (%p766) target = $region140
        $region139: #{tpu_custom_call.1} parent=87 // pred_region
          %769 = dma.done [#allocation22], 2048
        $region140: #{tpu_custom_call.1} parent=87 // pred_fallthru
          _
        // Predicated region
        $region141: #{tpu_custom_call.1} parent=87 // pred_check
          %p770 = pneg %p349
        $region142: #{tpu_custom_call.1} parent=87 // pred_check_branch
          %772 = sbr.rel (%p770) target = $region144
        $region143: #{tpu_custom_call.1} parent=87 // pred_region
          %773 = dma.done [#allocation25], 768
        $region144: #{tpu_custom_call.1} parent=87 // pred_fallthru
          _
        // Predicated region
        $region145: #{tpu_custom_call.1} parent=87 // pred_check
          %p774 = pneg %p370
        $region146: #{tpu_custom_call.1} parent=87 // pred_check_branch
          %776 = sbr.rel (%p774) target = $region148
        $region147: #{tpu_custom_call.1} parent=87 // pred_region
          %777 = dma.done [#allocation25], 288
        $region148: #{tpu_custom_call.1} parent=87 // pred_fallthru
          _
        // Predicated region
        $region149: #{tpu_custom_call.1} parent=87 // pred_check
          %p778 = pneg %p391
        $region150: #{tpu_custom_call.1} parent=87 // pred_check_branch
          %780 = sbr.rel (%p778) target = $region152
        $region151: #{tpu_custom_call.1} parent=87 // pred_region
          %781 = dma.done [#allocation28], 512
        $region152: #{tpu_custom_call.1} parent=87 // pred_fallthru
          _
        // Predicated region
        $region153: #{tpu_custom_call.1} parent=87 // pred_check
          %p782 = pneg %p412
        $region154: #{tpu_custom_call.1} parent=87 // pred_check_branch
          %784 = sbr.rel (%p782) target = $region156
        $region155: #{tpu_custom_call.1} parent=87 // pred_region
          %785 = dma.done [#allocation5], 16
        $region156: #{tpu_custom_call.1} parent=87 // pred_fallthru
          _
        %786 = sfence
        %s787 = sand.u32 %s53, 1
        %s788 = scalar_lea.sflag [#allocation3], %s787
        %s789 = sand.u32 %s53, 1
        %s790 = smul.addr %s789, 64
        %s791 = scalar_lea.vmem [#allocation2], %s790
        %p792 = pneg %p66
        %p793 = pneg %p63
        %s794 = sand.u32 %s45, 1
        %s795 = scalar_lea.sflag [#allocation7], %s794
        %s796 = sand.u32 %s79, 1
        %s797 = smul.addr %s796, 64
        %s798 = scalar_lea.vmem [#allocation6], %s797
        %p799 = pneg %p92
        %p800 = pneg %p89
        %s801 = sand.u32 %s45, 1
        %s802 = scalar_lea.sflag [#allocation7], %s801
        %s803 = sand.u32 %s105, 1
        %s804 = smul.addr %s803, 256
        %s805 = scalar_lea.vmem [#allocation8], %s804
        %p806 = pneg %p118
        %p807 = pneg %p115
        %p808 = pneg %p139
        %p809 = pneg %p136
        %p810 = pneg %p160
        %p811 = pneg %p157
        %p812 = pneg %p181
        %p813 = pneg %p178
        %p814 = pneg %p202
        %p815 = pneg %p199
        %p816 = pneg %p223
        %p817 = pneg %p220
        %p818 = pneg %p244
        %p819 = pneg %p241
        %p820 = pneg %p265
        %p821 = pneg %p262
        %p822 = pneg %p286
        %p823 = pneg %p283
        %p824 = pneg %p307
        %p825 = pneg %p304
        %p826 = pneg %p328
        %p827 = pneg %p325
        %p828 = pneg %p349
        %p829 = pneg %p346
        %p830 = pneg %p370
        %p831 = pneg %p367
        %p832 = pneg %p391
        %p833 = pneg %p388
        %p834 = pneg %p412
        %p835 = pneg %p409
        %p836 = pneg %p438
        %p837 = pneg %p435
        %s838 = sand.u32 %s425, 1
        %s839 = scalar_lea.sflag [#allocation4], %s838
        %s840 = sand.u32 %s425, 1
        %s841 = smul.addr %s840, 64
        %s842 = scalar_lea.vmem [#allocation30], %s841
        %v845 = vld [vmem:[%s707] sm:$0xff]
        %v846 = vld [vmem:[%s707 + $0x8] sm:$0xff]
        %v847 = vld [vmem:[%s707 + $0x10] sm:$0xff]
        %v848 = vld [vmem:[%s707 + $0x18] sm:$0xff]
        %v849 = vld [vmem:[%s707 + $0x20] sm:$0xff]
        %v850 = vld [vmem:[%s707 + $0x28] sm:$0xff]
        %v851 = vld [vmem:[%s707 + $0x30] sm:$0xff]
        %v852 = vld [vmem:[%s707 + $0x38] sm:$0xff]
        %v853 = vld [vmem:[%s716] sm:$0xff]
        %v854 = vld [vmem:[%s716 + $0x8] sm:$0xff]
        %v855 = vld [vmem:[%s716 + $0x10] sm:$0xff]
        %v856 = vld [vmem:[%s716 + $0x18] sm:$0xff]
        %v857 = vld [vmem:[%s716 + $0x20] sm:$0xff]
        %v858 = vld [vmem:[%s716 + $0x28] sm:$0xff]
        %v859 = vld [vmem:[%s716 + $0x30] sm:$0xff]
        %v860 = vld [vmem:[%s716 + $0x38] sm:$0xff]
        %v861 = vld [vmem:[%s725] sm:$0xff]
        %v862 = vld [vmem:[%s725 + $0x8] sm:$0xff]
        %v863 = vld [vmem:[%s725 + $0x10] sm:$0xff]
        %v864 = vld [vmem:[%s725 + $0x18] sm:$0xff]
        %v865 = vld [vmem:[%s725 + $0x20] sm:$0xff]
        %v866 = vld [vmem:[%s725 + $0x28] sm:$0xff]
        %v867 = vld [vmem:[%s725 + $0x30] sm:$0xff]
        %v868 = vld [vmem:[%s725 + $0x38] sm:$0xff]
        %v869 = vld [vmem:[%s725 + $0x40] sm:$0xff]
        %v870 = vld [vmem:[%s725 + $0x48] sm:$0xff]
        %v871 = vld [vmem:[%s725 + $0x50] sm:$0xff]
        %v872 = vld [vmem:[%s725 + $0x58] sm:$0xff]
        %v873 = vld [vmem:[%s725 + $0x60] sm:$0xff]
        %v874 = vld [vmem:[%s725 + $0x68] sm:$0xff]
        %v875 = vld [vmem:[%s725 + $0x70] sm:$0xff]
        %v876 = vld [vmem:[%s725 + $0x78] sm:$0xff]
        %v877 = vld [vmem:[%s725 + $0x80] sm:$0xff]
        %v878 = vld [vmem:[%s725 + $0x88] sm:$0xff]
        %v879 = vld [vmem:[%s725 + $0x90] sm:$0xff]
        %v880 = vld [vmem:[%s725 + $0x98] sm:$0xff]
        %v881 = vld [vmem:[%s725 + $0xa0] sm:$0xff]
        %v882 = vld [vmem:[%s725 + $0xa8] sm:$0xff]
        %v883 = vld [vmem:[%s725 + $0xb0] sm:$0xff]
        %v884 = vld [vmem:[%s725 + $0xb8] sm:$0xff]
        %v885 = vld [vmem:[%s725 + $0xc0] sm:$0xff]
        %v886 = vld [vmem:[%s725 + $0xc8] sm:$0xff]
        %v887 = vld [vmem:[%s725 + $0xd0] sm:$0xff]
        %v888 = vld [vmem:[%s725 + $0xd8] sm:$0xff]
        %v889 = vld [vmem:[%s725 + $0xe0] sm:$0xff]
        %v890 = vld [vmem:[%s725 + $0xe8] sm:$0xff]
        %v891 = vld [vmem:[%s725 + $0xf0] sm:$0xff]
        %v892 = vld [vmem:[%s725 + $0xf8] sm:$0xff]
        %v893 = vpack.c.bf16 %v855, %v853
        %v894 = vpack.c.bf16 %v856, %v854
        %v895 = vpack.c.bf16 %v859, %v857
        %v896 = vpack.c.bf16 %v860, %v858
        %v897 = vpack.c.bf16 %v862, %v861
        %v898 = vpack.c.bf16 %v864, %v863
        %v899 = vpack.c.bf16 %v866, %v865
        %v900 = vpack.c.bf16 %v868, %v867
        %v901 = vpack.c.bf16 %v870, %v869
        %v902 = vpack.c.bf16 %v872, %v871
        %v903 = vpack.c.bf16 %v874, %v873
        %v904 = vpack.c.bf16 %v876, %v875
        %v905 = vpack.c.bf16 %v878, %v877
        %v906 = vpack.c.bf16 %v880, %v879
        %v907 = vpack.c.bf16 %v882, %v881
        %v908 = vpack.c.bf16 %v884, %v883
        %v909 = vpack.c.bf16 %v886, %v885
        %v910 = vpack.c.bf16 %v888, %v887
        %v911 = vpack.c.bf16 %v890, %v889
        %v912 = vpack.c.bf16 %v892, %v891
        %v913 = vld [vmem:[#allocation9] sm:$0xf]
        %v914 = vld [vmem:[#allocation9 + $0x4] sm:$0xf]
        %v915 = vld [vmem:[#allocation9 + $0x8] sm:$0xf]
        %v916 = vld [vmem:[#allocation9 + $0xc] sm:$0xf]
        %v921 = vunpack.c.l.b16 %v913
        %v922 = vunpack.c.l.b16 %v914
        %v923 = vunpack.c.l.b16 %v915
        %v924 = vunpack.c.l.b16 %v916
        %v925 = vpack.c.b16 %v922, %v921
        %v926 = vpack.c.b16 %v924, %v923
        %vm927 = vcmask 261120
        %v929 = vsel %vm927, %v925, 0
        %v932 = vsel %vm927, %v926, 0
        %934 = vmatprep.subr.bf16.mxu0 %v894
        %935 = vmatpush1.bf16.msra.mxu0 %v893
        %936 = vmatprep.subr.bf16.mxu0 %v896
        %937 = vmatpush1.bf16.msra.mxu0 %v895
        %938 = vmatprep.subr.bf16.mxu0 0
        %939 = vmatpush1.bf16.msra.mxu0 0
        %940 = vmatprep.subr.bf16.mxu0 0
        %941 = vmatpush1.bf16.msra.mxu0 0
        %942 = vmatprep.subr.bf16.mxu0 0
        %943 = vmatpush1.bf16.msra.mxu0 0
        %944 = vmatprep.subr.bf16.mxu0 0
        %945 = vmatpush1.bf16.msra.mxu0 0
        %946 = vmatprep.subr.bf16.mxu0 0
        %947 = vmatpush1.bf16.msra.mxu0 0
        %948 = vmatprep.subr.bf16.mxu0 0
        %949 = vmatpush1.bf16.msra.mxu0 0
        %950 = vmatprep.subr.bf16.mxu0 0
        %951 = vmatpush1.bf16.msra.mxu0 0
        %952 = vmatprep.subr.bf16.mxu0 0
        %953 = vmatpush1.bf16.msra.mxu0 0
        %954 = vmatprep.subr.bf16.mxu0 0
        %955 = vmatpush1.bf16.msra.mxu0 0
        %956 = vmatprep.subr.bf16.mxu0 0
        %957 = vmatpush1.bf16.msra.mxu0 0
        %958 = vmatprep.subr.bf16.mxu0 0
        %959 = vmatpush1.bf16.msra.mxu0 0
        %960 = vmatprep.subr.bf16.mxu0 0
        %961 = vmatpush1.bf16.msra.mxu0 0
        %962 = vmatprep.subr.bf16.mxu0 0
        %963 = vmatpush1.bf16.msra.mxu0 0
        %964 = vmatprep.subr.bf16.mxu0 0
        %965 = vmatpush1.bf16.msra.mxu0 0
        %966 = vmatprep.mubr.bf16.mxu0 0
        %967 = vmatmul.mubr.bf16.gmra.mrb[0].mxu0 %v929
        %v968 = vpop.f32.mrb[0].mxu0
        %v969 = vadd.f32 0.0, %v968
        %v970 = vpop.f32.mrb[0].mxu0
        %v971 = vadd.f32 0.0, %v970
        %v972 = vpop.f32.mrb[0].mxu0
        %v973 = vadd.f32 0.0, %v972
        %v974 = vpop.f32.mrb[0].mxu0
        %v975 = vadd.f32 0.0, %v974
        %976 = vmatprep.mubr.bf16.mxu0 0
        %977 = vmatmul.mubr.bf16.gmra.mrb[0].mxu0 %v932
        %v978 = vpop.f32.mrb[0].mxu0
        %v979 = vadd.f32 0.0, %v978
        %v980 = vpop.f32.mrb[0].mxu0
        %v981 = vadd.f32 0.0, %v980
        %v982 = vpop.f32.mrb[0].mxu0
        %v983 = vadd.f32 0.0, %v982
        %v984 = vpop.f32.mrb[0].mxu0
        %v985 = vadd.f32 0.0, %v984
        %986 = vdwg.mxu0
        %v987 = vld [vmem:[#allocation12] sm:$0xf]
        %v988 = vld [vmem:[#allocation12 + $0x4] sm:$0xf]
        %v989 = vld [vmem:[#allocation12 + $0x8] sm:$0xf]
        %v990 = vld [vmem:[#allocation12 + $0xc] sm:$0xf]
        %v991 = vld [vmem:[#allocation14] sm:$0xff]
        %v992 = vld [vmem:[#allocation14 + $0x8] sm:$0xff]
        %v993 = vld [vmem:[#allocation14 + $0x10] sm:$0xff]
        %v994 = vld [vmem:[#allocation14 + $0x18] sm:$0xff]
        %996 = vset.pattern.permute.xlu0 0
        %997 = vperm.xlu0 %996, %v991
        %v998 = vpop.permute.xlu0 %997
        %1001 = vset.pattern.permute.xlu0 0
        %1002 = vperm.xlu0 %1001, %v992
        %v1003 = vpop.permute.xlu0 %1002
        %1006 = vset.pattern.permute.xlu0 0
        %1007 = vperm.xlu0 %1006, %v993
        %v1008 = vpop.permute.xlu0 %1007
        %1011 = vset.pattern.permute.xlu0 0
        %1012 = vperm.xlu0 %1011, %v994
        %v1013 = vpop.permute.xlu0 %1012
        %v1019 = vunpack.c.l.b16 %v987
        %v1020 = vunpack.c.l.b16 %v988
        %v1021 = vunpack.c.l.b16 %v989
        %v1022 = vunpack.c.l.b16 %v990
        %v1023 = vpack.c.b16 %v1020, %v1019
        %v1024 = vpack.c.b16 %v1022, %v1021
        %v1026 = vsel %vm927, %v1023, 0
        %v1029 = vsel %vm927, %v1024, 0
        %1031 = vmatprep.subr.bf16.mxu0 %v894
        %1032 = vmatpush1.bf16.msra.mxu0 %v893
        %1033 = vmatprep.subr.bf16.mxu0 %v896
        %1034 = vmatpush1.bf16.msra.mxu0 %v895
        %1035 = vmatprep.subr.bf16.mxu0 0
        %1036 = vmatpush1.bf16.msra.mxu0 0
        %1037 = vmatprep.subr.bf16.mxu0 0
        %1038 = vmatpush1.bf16.msra.mxu0 0
        %1039 = vmatprep.subr.bf16.mxu0 0
        %1040 = vmatpush1.bf16.msra.mxu0 0
        %1041 = vmatprep.subr.bf16.mxu0 0
        %1042 = vmatpush1.bf16.msra.mxu0 0
        %1043 = vmatprep.subr.bf16.mxu0 0
        %1044 = vmatpush1.bf16.msra.mxu0 0
        %1045 = vmatprep.subr.bf16.mxu0 0
        %1046 = vmatpush1.bf16.msra.mxu0 0
        %1047 = vmatprep.subr.bf16.mxu0 0
        %1048 = vmatpush1.bf16.msra.mxu0 0
        %1049 = vmatprep.subr.bf16.mxu0 0
        %1050 = vmatpush1.bf16.msra.mxu0 0
        %1051 = vmatprep.subr.bf16.mxu0 0
        %1052 = vmatpush1.bf16.msra.mxu0 0
        %1053 = vmatprep.subr.bf16.mxu0 0
        %1054 = vmatpush1.bf16.msra.mxu0 0
        %1055 = vmatprep.subr.bf16.mxu0 0
        %1056 = vmatpush1.bf16.msra.mxu0 0
        %1057 = vmatprep.subr.bf16.mxu0 0
        %1058 = vmatpush1.bf16.msra.mxu0 0
        %1059 = vmatprep.subr.bf16.mxu0 0
        %1060 = vmatpush1.bf16.msra.mxu0 0
        %1061 = vmatprep.subr.bf16.mxu0 0
        %1062 = vmatpush1.bf16.msra.mxu0 0
        %1063 = vmatprep.mubr.bf16.mxu0 0
        %1064 = vmatmul.mubr.bf16.gmra.mrb[0].mxu0 %v1026
        %v1065 = vpop.f32.mrb[0].mxu0
        %v1066 = vadd.f32 %v998, %v1065
        %v1067 = vpop.f32.mrb[0].mxu0
        %v1068 = vadd.f32 %v998, %v1067
        %v1069 = vpop.f32.mrb[0].mxu0
        %v1070 = vadd.f32 %v1003, %v1069
        %v1071 = vpop.f32.mrb[0].mxu0
        %v1072 = vadd.f32 %v1003, %v1071
        %1073 = vmatprep.mubr.bf16.mxu0 0
        %1074 = vmatmul.mubr.bf16.gmra.mrb[0].mxu0 %v1029
        %v1075 = vpop.f32.mrb[0].mxu0
        %v1076 = vadd.f32 %v1008, %v1075
        %v1077 = vpop.f32.mrb[0].mxu0
        %v1078 = vadd.f32 %v1008, %v1077
        %v1079 = vpop.f32.mrb[0].mxu0
        %v1080 = vadd.f32 %v1013, %v1079
        %v1081 = vpop.f32.mrb[0].mxu0
        %v1082 = vadd.f32 %v1013, %v1081
        %1083 = vdwg.mxu0
        %v1084 = vld [vmem:[#allocation11] sm:$0xf]
        %v1085 = vld [vmem:[#allocation11 + $0x4] sm:$0xf]
        %v1086 = vld [vmem:[#allocation11 + $0x8] sm:$0xf]
        %v1087 = vld [vmem:[#allocation11 + $0xc] sm:$0xf]
        %v1092 = vunpack.c.l.b16 %v1084
        %v1093 = vunpack.c.l.b16 %v1085
        %v1094 = vunpack.c.l.b16 %v1086
        %v1095 = vunpack.c.l.b16 %v1087
        %v1096 = vpack.c.b16 %v1093, %v1092
        %v1097 = vpack.c.b16 %v1095, %v1094
        %v1101 = vsel %vm927, %v897, 0
        %v1104 = vsel %vm927, %v898, 0
        %v1107 = vsel %vm927, %v899, 0
        %v1110 = vsel %vm927, %v900, 0
        %v1113 = vsel %vm927, %v901, 0
        %v1116 = vsel %vm927, %v902, 0
        %v1119 = vsel %vm927, %v903, 0
        %v1122 = vsel %vm927, %v904, 0
        %v1125 = vsel %vm927, %v905, 0
        %v1128 = vsel %vm927, %v906, 0
        %v1131 = vsel %vm927, %v907, 0
        %v1134 = vsel %vm927, %v908, 0
        %v1137 = vsel %vm927, %v909, 0
        %v1140 = vsel %vm927, %v910, 0
        %v1143 = vsel %vm927, %v911, 0
        %v1146 = vsel %vm927, %v912, 0
        %1148 = vmatprep.subr.bf16.mxu0 0
        %1149 = vmatpush1.bf16.msra.mxu0 %v1096
        %1150 = vmatprep.subr.bf16.mxu0 0
        %1151 = vmatpush1.bf16.msra.mxu0 %v1097
        %1152 = vmatprep.subr.bf16.mxu0 0
        %1153 = vmatpush1.bf16.msra.mxu0 0
        %1154 = vmatprep.subr.bf16.mxu0 0
        %1155 = vmatpush1.bf16.msra.mxu0 0
        %1156 = vmatprep.subr.bf16.mxu0 0
        %1157 = vmatpush1.bf16.msra.mxu0 0
        %1158 = vmatprep.subr.bf16.mxu0 0
        %1159 = vmatpush1.bf16.msra.mxu0 0
        %1160 = vmatprep.subr.bf16.mxu0 0
        %1161 = vmatpush1.bf16.msra.mxu0 0
        %1162 = vmatprep.subr.bf16.mxu0 0
        %1163 = vmatpush1.bf16.msra.mxu0 0
        %1164 = vmatprep.subr.bf16.mxu0 0
        %1165 = vmatpush1.bf16.msra.mxu0 0
        %1166 = vmatprep.subr.bf16.mxu0 0
        %1167 = vmatpush1.bf16.msra.mxu0 0
        %1168 = vmatprep.subr.bf16.mxu0 0
        %1169 = vmatpush1.bf16.msra.mxu0 0
        %1170 = vmatprep.subr.bf16.mxu0 0
        %1171 = vmatpush1.bf16.msra.mxu0 0
        %1172 = vmatprep.subr.bf16.mxu0 0
        %1173 = vmatpush1.bf16.msra.mxu0 0
        %1174 = vmatprep.subr.bf16.mxu0 0
        %1175 = vmatpush1.bf16.msra.mxu0 0
        %1176 = vmatprep.subr.bf16.mxu0 0
        %1177 = vmatpush1.bf16.msra.mxu0 0
        %1178 = vmatprep.subr.bf16.mxu0 0
        %1179 = vmatpush1.bf16.msra.mxu0 0
        %1180 = vmatprep.mubr.bf16.mxu0 0
        %1181 = vmatmul.mubr.bf16.gmra.mrb[0].mxu0 %v1101
        %v1182 = vpop.f32.mrb[0].mxu0
        %v1183 = vadd.f32 0.0, %v1182
        %v1184 = vpop.f32.mrb[0].mxu0
        %v1185 = vpop.f32.mrb[0].mxu0
        %v1186 = vadd.f32 0.0, %v1185
        %v1187 = vpop.f32.mrb[0].mxu0
        %1188 = vmatprep.mubr.bf16.mxu0 0
        %1189 = vmatmul.mubr.bf16.gmra.mrb[0].mxu0 %v1104
        %v1190 = vpop.f32.mrb[0].mxu0
        %v1191 = vadd.f32 0.0, %v1190
        %v1192 = vpop.f32.mrb[0].mxu0
        %v1193 = vpop.f32.mrb[0].mxu0
        %v1194 = vadd.f32 0.0, %v1193
        %v1195 = vpop.f32.mrb[0].mxu0
        %1196 = vmatprep.mubr.bf16.mxu0 0
        %1197 = vmatmul.mubr.bf16.gmra.mrb[0].mxu0 %v1107
        %v1198 = vpop.f32.mrb[0].mxu0
        %v1199 = vadd.f32 0.0, %v1198
        %v1200 = vpop.f32.mrb[0].mxu0
        %v1201 = vpop.f32.mrb[0].mxu0
        %v1202 = vadd.f32 0.0, %v1201
        %v1203 = vpop.f32.mrb[0].mxu0
        %1204 = vmatprep.mubr.bf16.mxu0 0
        %1205 = vmatmul.mubr.bf16.gmra.mrb[0].mxu0 %v1110
        %v1206 = vpop.f32.mrb[0].mxu0
        %v1207 = vadd.f32 0.0, %v1206
        %v1208 = vpop.f32.mrb[0].mxu0
        %v1209 = vpop.f32.mrb[0].mxu0
        %v1210 = vadd.f32 0.0, %v1209
        %v1211 = vpop.f32.mrb[0].mxu0
        %1212 = vmatprep.mubr.bf16.mxu0 0
        %1213 = vmatmul.mubr.bf16.gmra.mrb[0].mxu0 %v1113
        %v1214 = vpop.f32.mrb[0].mxu0
        %v1215 = vadd.f32 0.0, %v1214
        %v1216 = vpop.f32.mrb[0].mxu0
        %v1217 = vpop.f32.mrb[0].mxu0
        %v1218 = vadd.f32 0.0, %v1217
        %v1219 = vpop.f32.mrb[0].mxu0
        %1220 = vmatprep.mubr.bf16.mxu0 0
        %1221 = vmatmul.mubr.bf16.gmra.mrb[0].mxu0 %v1116
        %v1222 = vpop.f32.mrb[0].mxu0
        %v1223 = vadd.f32 0.0, %v1222
        %v1224 = vpop.f32.mrb[0].mxu0
        %v1225 = vpop.f32.mrb[0].mxu0
        %v1226 = vadd.f32 0.0, %v1225
        %v1227 = vpop.f32.mrb[0].mxu0
        %1228 = vmatprep.mubr.bf16.mxu0 0
        %1229 = vmatmul.mubr.bf16.gmra.mrb[0].mxu0 %v1119
        %v1230 = vpop.f32.mrb[0].mxu0
        %v1231 = vadd.f32 0.0, %v1230
        %v1232 = vpop.f32.mrb[0].mxu0
        %v1233 = vpop.f32.mrb[0].mxu0
        %v1234 = vadd.f32 0.0, %v1233
        %v1235 = vpop.f32.mrb[0].mxu0
        %1236 = vmatprep.mubr.bf16.mxu0 0
        %1237 = vmatmul.mubr.bf16.gmra.mrb[0].mxu0 %v1122
        %v1238 = vpop.f32.mrb[0].mxu0
        %v1239 = vadd.f32 0.0, %v1238
        %v1240 = vpop.f32.mrb[0].mxu0
        %v1241 = vpop.f32.mrb[0].mxu0
        %v1242 = vadd.f32 0.0, %v1241
        %v1243 = vpop.f32.mrb[0].mxu0
        %1244 = vmatprep.mubr.bf16.mxu0 0
        %1245 = vmatmul.mubr.bf16.gmra.mrb[0].mxu0 %v1125
        %v1246 = vpop.f32.mrb[0].mxu0
        %v1247 = vadd.f32 0.0, %v1246
        %v1248 = vpop.f32.mrb[0].mxu0
        %v1249 = vpop.f32.mrb[0].mxu0
        %v1250 = vadd.f32 0.0, %v1249
        %v1251 = vpop.f32.mrb[0].mxu0
        %1252 = vmatprep.mubr.bf16.mxu0 0
        %1253 = vmatmul.mubr.bf16.gmra.mrb[0].mxu0 %v1128
        %v1254 = vpop.f32.mrb[0].mxu0
        %v1255 = vadd.f32 0.0, %v1254
        %v1256 = vpop.f32.mrb[0].mxu0
        %v1257 = vpop.f32.mrb[0].mxu0
        %v1258 = vadd.f32 0.0, %v1257
        %v1259 = vpop.f32.mrb[0].mxu0
        %1260 = vmatprep.mubr.bf16.mxu0 0
        %1261 = vmatmul.mubr.bf16.gmra.mrb[0].mxu0 %v1131
        %v1262 = vpop.f32.mrb[0].mxu0
        %v1263 = vadd.f32 0.0, %v1262
        %v1264 = vpop.f32.mrb[0].mxu0
        %v1265 = vpop.f32.mrb[0].mxu0
        %v1266 = vadd.f32 0.0, %v1265
        %v1267 = vpop.f32.mrb[0].mxu0
        %1268 = vmatprep.mubr.bf16.mxu0 0
        %1269 = vmatmul.mubr.bf16.gmra.mrb[0].mxu0 %v1134
        %v1270 = vpop.f32.mrb[0].mxu0
        %v1271 = vadd.f32 0.0, %v1270
        %v1272 = vpop.f32.mrb[0].mxu0
        %v1273 = vpop.f32.mrb[0].mxu0
        %v1274 = vadd.f32 0.0, %v1273
        %v1275 = vpop.f32.mrb[0].mxu0
        %1276 = vmatprep.mubr.bf16.mxu0 0
        %1277 = vmatmul.mubr.bf16.gmra.mrb[0].mxu0 %v1137
        %v1278 = vpop.f32.mrb[0].mxu0
        %v1279 = vadd.f32 0.0, %v1278
        %v1280 = vpop.f32.mrb[0].mxu0
        %v1281 = vpop.f32.mrb[0].mxu0
        %v1282 = vadd.f32 0.0, %v1281
        %v1283 = vpop.f32.mrb[0].mxu0
        %1284 = vmatprep.mubr.bf16.mxu0 0
        %1285 = vmatmul.mubr.bf16.gmra.mrb[0].mxu0 %v1140
        %v1286 = vpop.f32.mrb[0].mxu0
        %v1287 = vadd.f32 0.0, %v1286
        %v1288 = vpop.f32.mrb[0].mxu0
        %v1289 = vpop.f32.mrb[0].mxu0
        %v1290 = vadd.f32 0.0, %v1289
        %v1291 = vpop.f32.mrb[0].mxu0
        %1292 = vmatprep.mubr.bf16.mxu0 0
        %1293 = vmatmul.mubr.bf16.gmra.mrb[0].mxu0 %v1143
        %v1294 = vpop.f32.mrb[0].mxu0
        %v1295 = vadd.f32 0.0, %v1294
        %v1296 = vpop.f32.mrb[0].mxu0
        %v1297 = vpop.f32.mrb[0].mxu0
        %v1298 = vadd.f32 0.0, %v1297
        %v1299 = vpop.f32.mrb[0].mxu0
        %1300 = vmatprep.mubr.bf16.mxu0 0
        %1301 = vmatmul.mubr.bf16.gmra.mrb[0].mxu0 %v1146
        %v1302 = vpop.f32.mrb[0].mxu0
        %v1303 = vadd.f32 0.0, %v1302
        %v1304 = vpop.f32.mrb[0].mxu0
        %v1305 = vpop.f32.mrb[0].mxu0
        %v1306 = vadd.f32 0.0, %v1305
        %v1307 = vpop.f32.mrb[0].mxu0
        %1308 = vdwg.mxu0
        %v1309 = vpack.c.bf16 %v973, %v969
        %v1310 = vpack.c.bf16 %v975, %v971
        %v1311 = vpack.c.bf16 %v983, %v979
        %v1312 = vpack.c.bf16 %v985, %v981
        %v1313 = vpack.c.bf16 %v1070, %v1066
        %v1314 = vpack.c.bf16 %v1072, %v1068
        %v1315 = vpack.c.bf16 %v1080, %v1076
        %v1316 = vpack.c.bf16 %v1082, %v1078
        %1318 = vset.pattern.permute.xlu0 0
        %1319 = vperm.xlu0 %1318, %v1183
        %v1320 = vpop.permute.xlu0 %1319
        %1323 = vset.pattern.permute.xlu0 0
        %1324 = vperm.xlu0 %1323, %v1186
        %v1325 = vpop.permute.xlu0 %1324
        %1328 = vset.pattern.permute.xlu0 0
        %1329 = vperm.xlu0 %1328, %v1191
        %v1330 = vpop.permute.xlu0 %1329
        %1333 = vset.pattern.permute.xlu0 0
        %1334 = vperm.xlu0 %1333, %v1194
        %v1335 = vpop.permute.xlu0 %1334
        %1338 = vset.pattern.permute.xlu0 0
        %1339 = vperm.xlu0 %1338, %v1199
        %v1340 = vpop.permute.xlu0 %1339
        %1343 = vset.pattern.permute.xlu0 0
        %1344 = vperm.xlu0 %1343, %v1202
        %v1345 = vpop.permute.xlu0 %1344
        %1348 = vset.pattern.permute.xlu0 0
        %1349 = vperm.xlu0 %1348, %v1207
        %v1350 = vpop.permute.xlu0 %1349
        %1353 = vset.pattern.permute.xlu0 0
        %1354 = vperm.xlu0 %1353, %v1210
        %v1355 = vpop.permute.xlu0 %1354
        %1357 = vmatprep.subr.bf16.mxu0 0
        %1358 = vmatpush1.bf16.msra.mxu0 %v1309
        %1359 = vmatprep.subr.bf16.mxu0 0
        %1360 = vmatpush1.bf16.msra.mxu0 %v1311
        %1361 = vmatprep.subr.bf16.mxu0 0
        %1362 = vmatpush1.bf16.msra.mxu0 0
        %1363 = vmatprep.subr.bf16.mxu0 0
        %1364 = vmatpush1.bf16.msra.mxu0 0
        %1365 = vmatprep.subr.bf16.mxu0 0
        %1366 = vmatpush1.bf16.msra.mxu0 0
        %1367 = vmatprep.subr.bf16.mxu0 0
        %1368 = vmatpush1.bf16.msra.mxu0 0
        %1369 = vmatprep.subr.bf16.mxu0 0
        %1370 = vmatpush1.bf16.msra.mxu0 0
        %1371 = vmatprep.subr.bf16.mxu0 0
        %1372 = vmatpush1.bf16.msra.mxu0 0
        %1373 = vmatprep.subr.bf16.mxu0 0
        %1374 = vmatpush1.bf16.msra.mxu0 0
        %1375 = vmatprep.subr.bf16.mxu0 0
        %1376 = vmatpush1.bf16.msra.mxu0 0
        %1377 = vmatprep.subr.bf16.mxu0 0
        %1378 = vmatpush1.bf16.msra.mxu0 0
        %1379 = vmatprep.subr.bf16.mxu0 0
        %1380 = vmatpush1.bf16.msra.mxu0 0
        %1381 = vmatprep.subr.bf16.mxu0 0
        %1382 = vmatpush1.bf16.msra.mxu0 0
        %1383 = vmatprep.subr.bf16.mxu0 0
        %1384 = vmatpush1.bf16.msra.mxu0 0
        %1385 = vmatprep.subr.bf16.mxu0 0
        %1386 = vmatpush1.bf16.msra.mxu0 0
        %1387 = vmatprep.subr.bf16.mxu0 0
        %1388 = vmatpush1.bf16.msra.mxu0 0
        %1389 = vmatprep.mubr.bf16.mxu0 0
        %1390 = vmatmul.mubr.bf16.gmra.mrb[0].mxu0 %v1101
        %v1391 = vpop.f32.mrb[0].mxu0
        %v1392 = vadd.f32 %v1320, %v1391
        %v1393 = vpop.f32.mrb[0].mxu0
        %v1394 = vpop.f32.mrb[0].mxu0
        %v1395 = vadd.f32 %v1325, %v1394
        %v1396 = vpop.f32.mrb[0].mxu0
        %1397 = vmatprep.mubr.bf16.mxu0 0
        %1398 = vmatmul.mubr.bf16.gmra.mrb[0].mxu0 %v1104
        %v1399 = vpop.f32.mrb[0].mxu0
        %v1400 = vadd.f32 %v1330, %v1399
        %v1401 = vpop.f32.mrb[0].mxu0
        %v1402 = vpop.f32.mrb[0].mxu0
        %v1403 = vadd.f32 %v1335, %v1402
        %v1404 = vpop.f32.mrb[0].mxu0
        %1405 = vmatprep.mubr.bf16.mxu0 0
        %1406 = vmatmul.mubr.bf16.gmra.mrb[0].mxu0 %v1107
        %v1407 = vpop.f32.mrb[0].mxu0
        %v1408 = vadd.f32 %v1340, %v1407
        %v1409 = vpop.f32.mrb[0].mxu0
        %v1410 = vpop.f32.mrb[0].mxu0
        %v1411 = vadd.f32 %v1345, %v1410
        %v1412 = vpop.f32.mrb[0].mxu0
        %1413 = vmatprep.mubr.bf16.mxu0 0
        %1414 = vmatmul.mubr.bf16.gmra.mrb[0].mxu0 %v1110
        %v1415 = vpop.f32.mrb[0].mxu0
        %v1416 = vadd.f32 %v1350, %v1415
        %v1417 = vpop.f32.mrb[0].mxu0
        %v1418 = vpop.f32.mrb[0].mxu0
        %v1419 = vadd.f32 %v1355, %v1418
        %v1420 = vpop.f32.mrb[0].mxu0
        %1421 = vdwg.mxu0
        %vm1422 = vcmask 523264
        %v1423 = vsel %vm1422, %v1392, -inf
        %v1424 = vsel %vm1422, %v1395, -inf
        %v1425 = vsel %vm1422, %v1400, -inf
        %v1426 = vsel %vm1422, %v1403, -inf
        %v1427 = vsel %vm1422, %v1408, -inf
        %v1428 = vmax.f32 %v1423, %v1427
        %v1429 = vsel %vm1422, %v1411, -inf
        %v1430 = vmax.f32 %v1424, %v1429
        %v1431 = vsel %vm1422, %v1416, -inf
        %v1432 = vmax.f32 %v1425, %v1431
        %v1433 = vsel %vm1422, %v1419, -inf
        %v1434 = vmax.f32 %v1426, %v1433
        %v1435 = vmax.f32 %v1428, %v1430
        %v1436 = vmax.f32 %v1432, %v1434
        %v1437 = vmax.f32 %v1435, %v1436
        %v1438 = vrot.slane %v1437, 4
        %v1439 = vmax.f32 %v1437, %v1438
        %v1440 = vrot.slane %v1439, 2
        %v1441 = vmax.f32 %v1439, %v1440
        %v1442 = vrot.slane %v1441, 1
        %v1443 = vmax.f32 %v1441, %v1442
        %v1444 = vsub.f32 %v1392, %v1443
        %v1445 = vsub.f32 %v1395, %v1443
        %v1446 = vsub.f32 %v1400, %v1443
        %v1447 = vsub.f32 %v1403, %v1443
        %v1448 = vsub.f32 %v1408, %v1443
        %v1449 = vsub.f32 %v1411, %v1443
        %v1450 = vsub.f32 %v1416, %v1443
        %v1451 = vsub.f32 %v1419, %v1443
        %v1452 = vmul.f32 %v1444, 1.442695
        %v1453 = vpow.pop %v1452
        %v1454 = vmul.f32 %v1445, 1.442695
        %v1455 = vpow.pop %v1454
        %v1456 = vmul.f32 %v1446, 1.442695
        %v1457 = vpow.pop %v1456
        %v1458 = vmul.f32 %v1447, 1.442695
        %v1459 = vpow.pop %v1458
        %v1460 = vmul.f32 %v1448, 1.442695
        %v1461 = vpow.pop %v1460
        %v1462 = vmul.f32 %v1449, 1.442695
        %v1463 = vpow.pop %v1462
        %v1464 = vmul.f32 %v1450, 1.442695
        %v1465 = vpow.pop %v1464
        %v1466 = vmul.f32 %v1451, 1.442695
        %v1467 = vpow.pop %v1466
        %v1468 = vpack.c.bf16 %v1455, %v1453
        %v1469 = vpack.c.bf16 %v1459, %v1457
        %v1470 = vpack.c.bf16 %v1463, %v1461
        %v1471 = vpack.c.bf16 %v1467, %v1465
        %v1473 = vsel %vm1422, %v1313, 0
        %v1476 = vsel %vm1422, %v1315, 0
        %v1479 = vsel %vm1422, 1065369472, 0
        %1481 = vmatprep.subr.bf16.mxu0 0
        %1482 = vmatpush1.bf16.msra.mxu0 %v1468
        %1483 = vmatprep.subr.bf16.mxu0 0
        %1484 = vmatpush1.bf16.msra.mxu0 %v1469
        %1485 = vmatprep.subr.bf16.mxu0 0
        %1486 = vmatpush1.bf16.msra.mxu0 %v1470
        %1487 = vmatprep.subr.bf16.mxu0 0
        %1488 = vmatpush1.bf16.msra.mxu0 %v1471
        %1489 = vmatprep.subr.bf16.mxu0 0
        %1490 = vmatpush1.bf16.msra.mxu0 0
        %1491 = vmatprep.subr.bf16.mxu0 0
        %1492 = vmatpush1.bf16.msra.mxu0 0
        %1493 = vmatprep.subr.bf16.mxu0 0
        %1494 = vmatpush1.bf16.msra.mxu0 0
        %1495 = vmatprep.subr.bf16.mxu0 0
        %1496 = vmatpush1.bf16.msra.mxu0 0
        %1497 = vmatprep.subr.bf16.mxu0 0
        %1498 = vmatpush1.bf16.msra.mxu0 0
        %1499 = vmatprep.subr.bf16.mxu0 0
        %1500 = vmatpush1.bf16.msra.mxu0 0
        %1501 = vmatprep.subr.bf16.mxu0 0
        %1502 = vmatpush1.bf16.msra.mxu0 0
        %1503 = vmatprep.subr.bf16.mxu0 0
        %1504 = vmatpush1.bf16.msra.mxu0 0
        %1505 = vmatprep.subr.bf16.mxu0 0
        %1506 = vmatpush1.bf16.msra.mxu0 0
        %1507 = vmatprep.subr.bf16.mxu0 0
        %1508 = vmatpush1.bf16.msra.mxu0 0
        %1509 = vmatprep.subr.bf16.mxu0 0
        %1510 = vmatpush1.bf16.msra.mxu0 0
        %1511 = vmatprep.subr.bf16.mxu0 0
        %1512 = vmatpush1.bf16.msra.mxu0 0
        %1513 = vmatprep.mubr.bf16.mxu0 0
        %1514 = vmatmul.mubr.bf16.gmra.mrb[0].mxu0 %v1473
        %v1515 = vpop.f32.mrb[0].mxu0
        %v1516 = vadd.f32 0.0, %v1515
        %v1517 = vpop.f32.mrb[0].mxu0
        %v1518 = vpop.f32.mrb[0].mxu0
        %v1519 = vadd.f32 0.0, %v1518
        %v1520 = vpop.f32.mrb[0].mxu0
        %1521 = vmatprep.mubr.bf16.mxu0 0
        %1522 = vmatmul.mubr.bf16.gmra.mrb[0].mxu0 %v1476
        %v1523 = vpop.f32.mrb[0].mxu0
        %v1524 = vadd.f32 0.0, %v1523
        %v1525 = vpop.f32.mrb[0].mxu0
        %v1526 = vpop.f32.mrb[0].mxu0
        %v1527 = vadd.f32 0.0, %v1526
        %v1528 = vpop.f32.mrb[0].mxu0
        %1529 = vmatprep.mubr.bf16.mxu0 0
        %1530 = vmatmul.mubr.bf16.gmra.mrb[0].mxu0 %v1479
        %v1531 = vpop.f32.mrb[0].mxu0
        %v1532 = vadd.f32 0.0, %v1531
        %v1533 = vpop.f32.mrb[0].mxu0
        %v1534 = vpop.f32.mrb[0].mxu0
        %v1535 = vpop.f32.mrb[0].mxu0
        %1536 = vdwg.mxu0
        %v1537 = vrcp.pop %v1532
        %v1538 = vlaneseq
        %v1539 = vshrl.u32 %v1538, 7
        %v1540 = vsub.s32 0, %v1539
        %v1541 = vrot.slane %v1537, %v1540
        %v1542 = vmul.f32 %v1516, %v1541
        %v1543 = vmul.f32 %v1519, %v1541
        %v1544 = vmul.f32 %v1524, %v1541
        %v1545 = vmul.f32 %v1527, %v1541
        %1547 = vset.pattern.permute.xlu0 0
        %1548 = vperm.xlu0 %1547, %v1215
        %v1549 = vpop.permute.xlu0 %1548
        %1552 = vset.pattern.permute.xlu0 0
        %1553 = vperm.xlu0 %1552, %v1218
        %v1554 = vpop.permute.xlu0 %1553
        %1557 = vset.pattern.permute.xlu0 0
        %1558 = vperm.xlu0 %1557, %v1223
        %v1559 = vpop.permute.xlu0 %1558
        %1562 = vset.pattern.permute.xlu0 0
        %1563 = vperm.xlu0 %1562, %v1226
        %v1564 = vpop.permute.xlu0 %1563
        %1567 = vset.pattern.permute.xlu0 0
        %1568 = vperm.xlu0 %1567, %v1231
        %v1569 = vpop.permute.xlu0 %1568
        %1572 = vset.pattern.permute.xlu0 0
        %1573 = vperm.xlu0 %1572, %v1234
        %v1574 = vpop.permute.xlu0 %1573
        %1577 = vset.pattern.permute.xlu0 0
        %1578 = vperm.xlu0 %1577, %v1239
        %v1579 = vpop.permute.xlu0 %1578
        %1582 = vset.pattern.permute.xlu0 0
        %1583 = vperm.xlu0 %1582, %v1242
        %v1584 = vpop.permute.xlu0 %1583
        %1588 = vrot.lane.b32.xlu0 %v1309, 64
        %v1589 = vpop.permute.xlu0 %1588
        %1590 = vrot.lane.b32.xlu0 %v1311, 64
        %v1591 = vpop.permute.xlu0 %1590
        %1594 = vmatprep.subr.bf16.mxu0 0
        %1595 = vmatpush1.bf16.msra.mxu0 %v1589
        %1596 = vmatprep.subr.bf16.mxu0 0
        %1597 = vmatpush1.bf16.msra.mxu0 %v1591
        %1598 = vmatprep.subr.bf16.mxu0 0
        %1599 = vmatpush1.bf16.msra.mxu0 0
        %1600 = vmatprep.subr.bf16.mxu0 0
        %1601 = vmatpush1.bf16.msra.mxu0 0
        %1602 = vmatprep.subr.bf16.mxu0 0
        %1603 = vmatpush1.bf16.msra.mxu0 0
        %1604 = vmatprep.subr.bf16.mxu0 0
        %1605 = vmatpush1.bf16.msra.mxu0 0
        %1606 = vmatprep.subr.bf16.mxu0 0
        %1607 = vmatpush1.bf16.msra.mxu0 0
        %1608 = vmatprep.subr.bf16.mxu0 0
        %1609 = vmatpush1.bf16.msra.mxu0 0
        %1610 = vmatprep.subr.bf16.mxu0 0
        %1611 = vmatpush1.bf16.msra.mxu0 0
        %1612 = vmatprep.subr.bf16.mxu0 0
        %1613 = vmatpush1.bf16.msra.mxu0 0
        %1614 = vmatprep.subr.bf16.mxu0 0
        %1615 = vmatpush1.bf16.msra.mxu0 0
        %1616 = vmatprep.subr.bf16.mxu0 0
        %1617 = vmatpush1.bf16.msra.mxu0 0
        %1618 = vmatprep.subr.bf16.mxu0 0
        %1619 = vmatpush1.bf16.msra.mxu0 0
        %1620 = vmatprep.subr.bf16.mxu0 0
        %1621 = vmatpush1.bf16.msra.mxu0 0
        %1622 = vmatprep.subr.bf16.mxu0 0
        %1623 = vmatpush1.bf16.msra.mxu0 0
        %1624 = vmatprep.subr.bf16.mxu0 0
        %1625 = vmatpush1.bf16.msra.mxu0 0
        %1626 = vmatprep.mubr.bf16.mxu0 0
        %1627 = vmatmul.mubr.bf16.gmra.mrb[0].mxu0 %v1113
        %v1628 = vpop.f32.mrb[0].mxu0
        %v1629 = vadd.f32 %v1549, %v1628
        %v1630 = vpop.f32.mrb[0].mxu0
        %v1631 = vpop.f32.mrb[0].mxu0
        %v1632 = vadd.f32 %v1554, %v1631
        %v1633 = vpop.f32.mrb[0].mxu0
        %1634 = vmatprep.mubr.bf16.mxu0 0
        %1635 = vmatmul.mubr.bf16.gmra.mrb[0].mxu0 %v1116
        %v1636 = vpop.f32.mrb[0].mxu0
        %v1637 = vadd.f32 %v1559, %v1636
        %v1638 = vpop.f32.mrb[0].mxu0
        %v1639 = vpop.f32.mrb[0].mxu0
        %v1640 = vadd.f32 %v1564, %v1639
        %v1641 = vpop.f32.mrb[0].mxu0
        %1642 = vmatprep.mubr.bf16.mxu0 0
        %1643 = vmatmul.mubr.bf16.gmra.mrb[0].mxu0 %v1119
        %v1644 = vpop.f32.mrb[0].mxu0
        %v1645 = vadd.f32 %v1569, %v1644
        %v1646 = vpop.f32.mrb[0].mxu0
        %v1647 = vpop.f32.mrb[0].mxu0
        %v1648 = vadd.f32 %v1574, %v1647
        %v1649 = vpop.f32.mrb[0].mxu0
        %1650 = vmatprep.mubr.bf16.mxu0 0
        %1651 = vmatmul.mubr.bf16.gmra.mrb[0].mxu0 %v1122
        %v1652 = vpop.f32.mrb[0].mxu0
        %v1653 = vadd.f32 %v1579, %v1652
        %v1654 = vpop.f32.mrb[0].mxu0
        %v1655 = vpop.f32.mrb[0].mxu0
        %v1656 = vadd.f32 %v1584, %v1655
        %v1657 = vpop.f32.mrb[0].mxu0
        %1658 = vdwg.mxu0
        %v1659 = vsel %vm1422, %v1629, -inf
        %v1660 = vsel %vm1422, %v1632, -inf
        %v1661 = vsel %vm1422, %v1637, -inf
        %v1662 = vsel %vm1422, %v1640, -inf
        %v1663 = vsel %vm1422, %v1645, -inf
        %v1664 = vmax.f32 %v1659, %v1663
        %v1665 = vsel %vm1422, %v1648, -inf
        %v1666 = vmax.f32 %v1660, %v1665
        %v1667 = vsel %vm1422, %v1653, -inf
        %v1668 = vmax.f32 %v1661, %v1667
        %v1669 = vsel %vm1422, %v1656, -inf
        %v1670 = vmax.f32 %v1662, %v1669
        %v1671 = vmax.f32 %v1664, %v1666
        %v1672 = vmax.f32 %v1668, %v1670
        %v1673 = vmax.f32 %v1671, %v1672
        %v1674 = vrot.slane %v1673, 4
        %v1675 = vmax.f32 %v1673, %v1674
        %v1676 = vrot.slane %v1675, 2
        %v1677 = vmax.f32 %v1675, %v1676
        %v1678 = vrot.slane %v1677, 1
        %v1679 = vmax.f32 %v1677, %v1678
        %v1680 = vsub.f32 %v1629, %v1679
        %v1681 = vsub.f32 %v1632, %v1679
        %v1682 = vsub.f32 %v1637, %v1679
        %v1683 = vsub.f32 %v1640, %v1679
        %v1684 = vsub.f32 %v1645, %v1679
        %v1685 = vsub.f32 %v1648, %v1679
        %v1686 = vsub.f32 %v1653, %v1679
        %v1687 = vsub.f32 %v1656, %v1679
        %v1688 = vmul.f32 %v1680, 1.442695
        %v1689 = vpow.pop %v1688
        %v1690 = vmul.f32 %v1681, 1.442695
        %v1691 = vpow.pop %v1690
        %v1692 = vmul.f32 %v1682, 1.442695
        %v1693 = vpow.pop %v1692
        %v1694 = vmul.f32 %v1683, 1.442695
        %v1695 = vpow.pop %v1694
        %v1696 = vmul.f32 %v1684, 1.442695
        %v1697 = vpow.pop %v1696
        %v1698 = vmul.f32 %v1685, 1.442695
        %v1699 = vpow.pop %v1698
        %v1700 = vmul.f32 %v1686, 1.442695
        %v1701 = vpow.pop %v1700
        %v1702 = vmul.f32 %v1687, 1.442695
        %v1703 = vpow.pop %v1702
        %v1704 = vpack.c.bf16 %v1691, %v1689
        %v1705 = vpack.c.bf16 %v1695, %v1693
        %v1706 = vpack.c.bf16 %v1699, %v1697
        %v1707 = vpack.c.bf16 %v1703, %v1701
        %1711 = vrot.lane.b32.xlu0 %v1313, 64
        %v1712 = vpop.permute.xlu0 %1711
        %1713 = vrot.lane.b32.xlu0 %v1315, 64
        %v1714 = vpop.permute.xlu0 %1713
        %1715 = vrot.lane.b32.xlu0 1065369472, 64
        %v1716 = vpop.permute.xlu0 %1715
        %v1718 = vsel %vm1422, %v1712, 0
        %v1721 = vsel %vm1422, %v1714, 0
        %v1724 = vsel %vm1422, %v1716, 0
        %1726 = vmatprep.subr.bf16.mxu0 0
        %1727 = vmatpush1.bf16.msra.mxu0 %v1704
        %1728 = vmatprep.subr.bf16.mxu0 0
        %1729 = vmatpush1.bf16.msra.mxu0 %v1705
        %1730 = vmatprep.subr.bf16.mxu0 0
        %1731 = vmatpush1.bf16.msra.mxu0 %v1706
        %1732 = vmatprep.subr.bf16.mxu0 0
        %1733 = vmatpush1.bf16.msra.mxu0 %v1707
        %1734 = vmatprep.subr.bf16.mxu0 0
        %1735 = vmatpush1.bf16.msra.mxu0 0
        %1736 = vmatprep.subr.bf16.mxu0 0
        %1737 = vmatpush1.bf16.msra.mxu0 0
        %1738 = vmatprep.subr.bf16.mxu0 0
        %1739 = vmatpush1.bf16.msra.mxu0 0
        %1740 = vmatprep.subr.bf16.mxu0 0
        %1741 = vmatpush1.bf16.msra.mxu0 0
        %1742 = vmatprep.subr.bf16.mxu0 0
        %1743 = vmatpush1.bf16.msra.mxu0 0
        %1744 = vmatprep.subr.bf16.mxu0 0
        %1745 = vmatpush1.bf16.msra.mxu0 0
        %1746 = vmatprep.subr.bf16.mxu0 0
        %1747 = vmatpush1.bf16.msra.mxu0 0
        %1748 = vmatprep.subr.bf16.mxu0 0
        %1749 = vmatpush1.bf16.msra.mxu0 0
        %1750 = vmatprep.subr.bf16.mxu0 0
        %1751 = vmatpush1.bf16.msra.mxu0 0
        %1752 = vmatprep.subr.bf16.mxu0 0
        %1753 = vmatpush1.bf16.msra.mxu0 0
        %1754 = vmatprep.subr.bf16.mxu0 0
        %1755 = vmatpush1.bf16.msra.mxu0 0
        %1756 = vmatprep.subr.bf16.mxu0 0
        %1757 = vmatpush1.bf16.msra.mxu0 0
        %1758 = vmatprep.mubr.bf16.mxu0 0
        %1759 = vmatmul.mubr.bf16.gmra.mrb[0].mxu0 %v1718
        %v1760 = vpop.f32.mrb[0].mxu0
        %v1761 = vadd.f32 0.0, %v1760
        %v1762 = vpop.f32.mrb[0].mxu0
        %v1763 = vpop.f32.mrb[0].mxu0
        %v1764 = vadd.f32 0.0, %v1763
        %v1765 = vpop.f32.mrb[0].mxu0
        %1766 = vmatprep.mubr.bf16.mxu0 0
        %1767 = vmatmul.mubr.bf16.gmra.mrb[0].mxu0 %v1721
        %v1768 = vpop.f32.mrb[0].mxu0
        %v1769 = vadd.f32 0.0, %v1768
        %v1770 = vpop.f32.mrb[0].mxu0
        %v1771 = vpop.f32.mrb[0].mxu0
        %v1772 = vadd.f32 0.0, %v1771
        %v1773 = vpop.f32.mrb[0].mxu0
        %1774 = vmatprep.mubr.bf16.mxu0 0
        %1775 = vmatmul.mubr.bf16.gmra.mrb[0].mxu0 %v1724
        %v1776 = vpop.f32.mrb[0].mxu0
        %v1777 = vadd.f32 0.0, %v1776
        %v1778 = vpop.f32.mrb[0].mxu0
        %v1779 = vpop.f32.mrb[0].mxu0
        %v1780 = vpop.f32.mrb[0].mxu0
        %1781 = vdwg.mxu0
        %v1782 = vrcp.pop %v1777
        %v1783 = vlaneseq
        %v1784 = vshrl.u32 %v1783, 7
        %v1785 = vsub.s32 0, %v1784
        %v1786 = vrot.slane %v1782, %v1785
        %v1787 = vmul.f32 %v1761, %v1786
        %v1788 = vmul.f32 %v1764, %v1786
        %v1789 = vmul.f32 %v1769, %v1786
        %v1790 = vmul.f32 %v1772, %v1786
        %1792 = vset.pattern.permute.xlu0 0
        %1793 = vperm.xlu0 %1792, %v1247
        %v1794 = vpop.permute.xlu0 %1793
        %1797 = vset.pattern.permute.xlu0 0
        %1798 = vperm.xlu0 %1797, %v1250
        %v1799 = vpop.permute.xlu0 %1798
        %1802 = vset.pattern.permute.xlu0 0
        %1803 = vperm.xlu0 %1802, %v1255
        %v1804 = vpop.permute.xlu0 %1803
        %1807 = vset.pattern.permute.xlu0 0
        %1808 = vperm.xlu0 %1807, %v1258
        %v1809 = vpop.permute.xlu0 %1808
        %1812 = vset.pattern.permute.xlu0 0
        %1813 = vperm.xlu0 %1812, %v1263
        %v1814 = vpop.permute.xlu0 %1813
        %1817 = vset.pattern.permute.xlu0 0
        %1818 = vperm.xlu0 %1817, %v1266
        %v1819 = vpop.permute.xlu0 %1818
        %1822 = vset.pattern.permute.xlu0 0
        %1823 = vperm.xlu0 %1822, %v1271
        %v1824 = vpop.permute.xlu0 %1823
        %1827 = vset.pattern.permute.xlu0 0
        %1828 = vperm.xlu0 %1827, %v1274
        %v1829 = vpop.permute.xlu0 %1828
        %1831 = vmatprep.subr.bf16.mxu0 0
        %1832 = vmatpush1.bf16.msra.mxu0 %v1310
        %1833 = vmatprep.subr.bf16.mxu0 0
        %1834 = vmatpush1.bf16.msra.mxu0 %v1312
        %1835 = vmatprep.subr.bf16.mxu0 0
        %1836 = vmatpush1.bf16.msra.mxu0 0
        %1837 = vmatprep.subr.bf16.mxu0 0
        %1838 = vmatpush1.bf16.msra.mxu0 0
        %1839 = vmatprep.subr.bf16.mxu0 0
        %1840 = vmatpush1.bf16.msra.mxu0 0
        %1841 = vmatprep.subr.bf16.mxu0 0
        %1842 = vmatpush1.bf16.msra.mxu0 0
        %1843 = vmatprep.subr.bf16.mxu0 0
        %1844 = vmatpush1.bf16.msra.mxu0 0
        %1845 = vmatprep.subr.bf16.mxu0 0
        %1846 = vmatpush1.bf16.msra.mxu0 0
        %1847 = vmatprep.subr.bf16.mxu0 0
        %1848 = vmatpush1.bf16.msra.mxu0 0
        %1849 = vmatprep.subr.bf16.mxu0 0
        %1850 = vmatpush1.bf16.msra.mxu0 0
        %1851 = vmatprep.subr.bf16.mxu0 0
        %1852 = vmatpush1.bf16.msra.mxu0 0
        %1853 = vmatprep.subr.bf16.mxu0 0
        %1854 = vmatpush1.bf16.msra.mxu0 0
        %1855 = vmatprep.subr.bf16.mxu0 0
        %1856 = vmatpush1.bf16.msra.mxu0 0
        %1857 = vmatprep.subr.bf16.mxu0 0
        %1858 = vmatpush1.bf16.msra.mxu0 0
        %1859 = vmatprep.subr.bf16.mxu0 0
        %1860 = vmatpush1.bf16.msra.mxu0 0
        %1861 = vmatprep.subr.bf16.mxu0 0
        %1862 = vmatpush1.bf16.msra.mxu0 0
        %1863 = vmatprep.mubr.bf16.mxu0 0
        %1864 = vmatmul.mubr.bf16.gmra.mrb[0].mxu0 %v1125
        %v1865 = vpop.f32.mrb[0].mxu0
        %v1866 = vadd.f32 %v1794, %v1865
        %v1867 = vpop.f32.mrb[0].mxu0
        %v1868 = vpop.f32.mrb[0].mxu0
        %v1869 = vadd.f32 %v1799, %v1868
        %v1870 = vpop.f32.mrb[0].mxu0
        %1871 = vmatprep.mubr.bf16.mxu0 0
        %1872 = vmatmul.mubr.bf16.gmra.mrb[0].mxu0 %v1128
        %v1873 = vpop.f32.mrb[0].mxu0
        %v1874 = vadd.f32 %v1804, %v1873
        %v1875 = vpop.f32.mrb[0].mxu0
        %v1876 = vpop.f32.mrb[0].mxu0
        %v1877 = vadd.f32 %v1809, %v1876
        %v1878 = vpop.f32.mrb[0].mxu0
        %1879 = vmatprep.mubr.bf16.mxu0 0
        %1880 = vmatmul.mubr.bf16.gmra.mrb[0].mxu0 %v1131
        %v1881 = vpop.f32.mrb[0].mxu0
        %v1882 = vadd.f32 %v1814, %v1881
        %v1883 = vpop.f32.mrb[0].mxu0
        %v1884 = vpop.f32.mrb[0].mxu0
        %v1885 = vadd.f32 %v1819, %v1884
        %v1886 = vpop.f32.mrb[0].mxu0
        %1887 = vmatprep.mubr.bf16.mxu0 0
        %1888 = vmatmul.mubr.bf16.gmra.mrb[0].mxu0 %v1134
        %v1889 = vpop.f32.mrb[0].mxu0
        %v1890 = vadd.f32 %v1824, %v1889
        %v1891 = vpop.f32.mrb[0].mxu0
        %v1892 = vpop.f32.mrb[0].mxu0
        %v1893 = vadd.f32 %v1829, %v1892
        %v1894 = vpop.f32.mrb[0].mxu0
        %1895 = vdwg.mxu0
        %v1896 = vsel %vm1422, %v1866, -inf
        %v1897 = vsel %vm1422, %v1869, -inf
        %v1898 = vsel %vm1422, %v1874, -inf
        %v1899 = vsel %vm1422, %v1877, -inf
        %v1900 = vsel %vm1422, %v1882, -inf
        %v1901 = vmax.f32 %v1896, %v1900
        %v1902 = vsel %vm1422, %v1885, -inf
        %v1903 = vmax.f32 %v1897, %v1902
        %v1904 = vsel %vm1422, %v1890, -inf
        %v1905 = vmax.f32 %v1898, %v1904
        %v1906 = vsel %vm1422, %v1893, -inf
        %v1907 = vmax.f32 %v1899, %v1906
        %v1908 = vmax.f32 %v1901, %v1903
        %v1909 = vmax.f32 %v1905, %v1907
        %v1910 = vmax.f32 %v1908, %v1909
        %v1911 = vrot.slane %v1910, 4
        %v1912 = vmax.f32 %v1910, %v1911
        %v1913 = vrot.slane %v1912, 2
        %v1914 = vmax.f32 %v1912, %v1913
        %v1915 = vrot.slane %v1914, 1
        %v1916 = vmax.f32 %v1914, %v1915
        %v1917 = vsub.f32 %v1866, %v1916
        %v1918 = vsub.f32 %v1869, %v1916
        %v1919 = vsub.f32 %v1874, %v1916
        %v1920 = vsub.f32 %v1877, %v1916
        %v1921 = vsub.f32 %v1882, %v1916
        %v1922 = vsub.f32 %v1885, %v1916
        %v1923 = vsub.f32 %v1890, %v1916
        %v1924 = vsub.f32 %v1893, %v1916
        %v1925 = vmul.f32 %v1917, 1.442695
        %v1926 = vpow.pop %v1925
        %v1927 = vmul.f32 %v1918, 1.442695
        %v1928 = vpow.pop %v1927
        %v1929 = vmul.f32 %v1919, 1.442695
        %v1930 = vpow.pop %v1929
        %v1931 = vmul.f32 %v1920, 1.442695
        %v1932 = vpow.pop %v1931
        %v1933 = vmul.f32 %v1921, 1.442695
        %v1934 = vpow.pop %v1933
        %v1935 = vmul.f32 %v1922, 1.442695
        %v1936 = vpow.pop %v1935
        %v1937 = vmul.f32 %v1923, 1.442695
        %v1938 = vpow.pop %v1937
        %v1939 = vmul.f32 %v1924, 1.442695
        %v1940 = vpow.pop %v1939
        %v1941 = vpack.c.bf16 %v1928, %v1926
        %v1942 = vpack.c.bf16 %v1932, %v1930
        %v1943 = vpack.c.bf16 %v1936, %v1934
        %v1944 = vpack.c.bf16 %v1940, %v1938
        %v1946 = vsel %vm1422, %v1314, 0
        %v1949 = vsel %vm1422, %v1316, 0
        %1951 = vmatprep.subr.bf16.mxu0 0
        %1952 = vmatpush1.bf16.msra.mxu0 %v1941
        %1953 = vmatprep.subr.bf16.mxu0 0
        %1954 = vmatpush1.bf16.msra.mxu0 %v1942
        %1955 = vmatprep.subr.bf16.mxu0 0
        %1956 = vmatpush1.bf16.msra.mxu0 %v1943
        %1957 = vmatprep.subr.bf16.mxu0 0
        %1958 = vmatpush1.bf16.msra.mxu0 %v1944
        %1959 = vmatprep.subr.bf16.mxu0 0
        %1960 = vmatpush1.bf16.msra.mxu0 0
        %1961 = vmatprep.subr.bf16.mxu0 0
        %1962 = vmatpush1.bf16.msra.mxu0 0
        %1963 = vmatprep.subr.bf16.mxu0 0
        %1964 = vmatpush1.bf16.msra.mxu0 0
        %1965 = vmatprep.subr.bf16.mxu0 0
        %1966 = vmatpush1.bf16.msra.mxu0 0
        %1967 = vmatprep.subr.bf16.mxu0 0
        %1968 = vmatpush1.bf16.msra.mxu0 0
        %1969 = vmatprep.subr.bf16.mxu0 0
        %1970 = vmatpush1.bf16.msra.mxu0 0
        %1971 = vmatprep.subr.bf16.mxu0 0
        %1972 = vmatpush1.bf16.msra.mxu0 0
        %1973 = vmatprep.subr.bf16.mxu0 0
        %1974 = vmatpush1.bf16.msra.mxu0 0
        %1975 = vmatprep.subr.bf16.mxu0 0
        %1976 = vmatpush1.bf16.msra.mxu0 0
        %1977 = vmatprep.subr.bf16.mxu0 0
        %1978 = vmatpush1.bf16.msra.mxu0 0
        %1979 = vmatprep.subr.bf16.mxu0 0
        %1980 = vmatpush1.bf16.msra.mxu0 0
        %1981 = vmatprep.subr.bf16.mxu0 0
        %1982 = vmatpush1.bf16.msra.mxu0 0
        %1983 = vmatprep.mubr.bf16.mxu0 0
        %1984 = vmatmul.mubr.bf16.gmra.mrb[0].mxu0 %v1946
        %v1985 = vpop.f32.mrb[0].mxu0
        %v1986 = vadd.f32 0.0, %v1985
        %v1987 = vpop.f32.mrb[0].mxu0
        %v1988 = vpop.f32.mrb[0].mxu0
        %v1989 = vadd.f32 0.0, %v1988
        %v1990 = vpop.f32.mrb[0].mxu0
        %1991 = vmatprep.mubr.bf16.mxu0 0
        %1992 = vmatmul.mubr.bf16.gmra.mrb[0].mxu0 %v1949
        %v1993 = vpop.f32.mrb[0].mxu0
        %v1994 = vadd.f32 0.0, %v1993
        %v1995 = vpop.f32.mrb[0].mxu0
        %v1996 = vpop.f32.mrb[0].mxu0
        %v1997 = vadd.f32 0.0, %v1996
        %v1998 = vpop.f32.mrb[0].mxu0
        %1999 = vmatprep.mubr.bf16.mxu0 0
        %2000 = vmatmul.mubr.bf16.gmra.mrb[0].mxu0 %v1479
        %v2001 = vpop.f32.mrb[0].mxu0
        %v2002 = vadd.f32 0.0, %v2001
        %v2003 = vpop.f32.mrb[0].mxu0
        %v2004 = vpop.f32.mrb[0].mxu0
        %v2005 = vpop.f32.mrb[0].mxu0
        %2006 = vdwg.mxu0
        %v2007 = vrcp.pop %v2002
        %v2008 = vlaneseq
        %v2009 = vshrl.u32 %v2008, 7
        %v2010 = vsub.s32 0, %v2009
        %v2011 = vrot.slane %v2007, %v2010
        %v2012 = vmul.f32 %v1986, %v2011
        %v2013 = vmul.f32 %v1989, %v2011
        %v2014 = vmul.f32 %v1994, %v2011
        %v2015 = vmul.f32 %v1997, %v2011
        %2017 = vset.pattern.permute.xlu0 0
        %2018 = vperm.xlu0 %2017, %v1279
        %v2019 = vpop.permute.xlu0 %2018
        %2022 = vset.pattern.permute.xlu0 0
        %2023 = vperm.xlu0 %2022, %v1282
        %v2024 = vpop.permute.xlu0 %2023
        %2027 = vset.pattern.permute.xlu0 0
        %2028 = vperm.xlu0 %2027, %v1287
        %v2029 = vpop.permute.xlu0 %2028
        %2032 = vset.pattern.permute.xlu0 0
        %2033 = vperm.xlu0 %2032, %v1290
        %v2034 = vpop.permute.xlu0 %2033
        %2037 = vset.pattern.permute.xlu0 0
        %2038 = vperm.xlu0 %2037, %v1295
        %v2039 = vpop.permute.xlu0 %2038
        %2042 = vset.pattern.permute.xlu0 0
        %2043 = vperm.xlu0 %2042, %v1298
        %v2044 = vpop.permute.xlu0 %2043
        %2047 = vset.pattern.permute.xlu0 0
        %2048 = vperm.xlu0 %2047, %v1303
        %v2049 = vpop.permute.xlu0 %2048
        %2052 = vset.pattern.permute.xlu0 0
        %2053 = vperm.xlu0 %2052, %v1306
        %v2054 = vpop.permute.xlu0 %2053
        %2058 = vrot.lane.b32.xlu0 %v1310, 64
        %v2059 = vpop.permute.xlu0 %2058
        %2060 = vrot.lane.b32.xlu0 %v1312, 64
        %v2061 = vpop.permute.xlu0 %2060
        %2064 = vmatprep.subr.bf16.mxu0 0
        %2065 = vmatpush1.bf16.msra.mxu0 %v2059
        %2066 = vmatprep.subr.bf16.mxu0 0
        %2067 = vmatpush1.bf16.msra.mxu0 %v2061
        %2068 = vmatprep.subr.bf16.mxu0 0
        %2069 = vmatpush1.bf16.msra.mxu0 0
        %2070 = vmatprep.subr.bf16.mxu0 0
        %2071 = vmatpush1.bf16.msra.mxu0 0
        %2072 = vmatprep.subr.bf16.mxu0 0
        %2073 = vmatpush1.bf16.msra.mxu0 0
        %2074 = vmatprep.subr.bf16.mxu0 0
        %2075 = vmatpush1.bf16.msra.mxu0 0
        %2076 = vmatprep.subr.bf16.mxu0 0
        %2077 = vmatpush1.bf16.msra.mxu0 0
        %2078 = vmatprep.subr.bf16.mxu0 0
        %2079 = vmatpush1.bf16.msra.mxu0 0
        %2080 = vmatprep.subr.bf16.mxu0 0
        %2081 = vmatpush1.bf16.msra.mxu0 0
        %2082 = vmatprep.subr.bf16.mxu0 0
        %2083 = vmatpush1.bf16.msra.mxu0 0
        %2084 = vmatprep.subr.bf16.mxu0 0
        %2085 = vmatpush1.bf16.msra.mxu0 0
        %2086 = vmatprep.subr.bf16.mxu0 0
        %2087 = vmatpush1.bf16.msra.mxu0 0
        %2088 = vmatprep.subr.bf16.mxu0 0
        %2089 = vmatpush1.bf16.msra.mxu0 0
        %2090 = vmatprep.subr.bf16.mxu0 0
        %2091 = vmatpush1.bf16.msra.mxu0 0
        %2092 = vmatprep.subr.bf16.mxu0 0
        %2093 = vmatpush1.bf16.msra.mxu0 0
        %2094 = vmatprep.subr.bf16.mxu0 0
        %2095 = vmatpush1.bf16.msra.mxu0 0
        %2096 = vmatprep.mubr.bf16.mxu0 0
        %2097 = vmatmul.mubr.bf16.gmra.mrb[0].mxu0 %v1137
        %v2098 = vpop.f32.mrb[0].mxu0
        %v2099 = vadd.f32 %v2019, %v2098
        %v2100 = vpop.f32.mrb[0].mxu0
        %v2101 = vpop.f32.mrb[0].mxu0
        %v2102 = vadd.f32 %v2024, %v2101
        %v2103 = vpop.f32.mrb[0].mxu0
        %2104 = vmatprep.mubr.bf16.mxu0 0
        %2105 = vmatmul.mubr.bf16.gmra.mrb[0].mxu0 %v1140
        %v2106 = vpop.f32.mrb[0].mxu0
        %v2107 = vadd.f32 %v2029, %v2106
        %v2108 = vpop.f32.mrb[0].mxu0
        %v2109 = vpop.f32.mrb[0].mxu0
        %v2110 = vadd.f32 %v2034, %v2109
        %v2111 = vpop.f32.mrb[0].mxu0
        %2112 = vmatprep.mubr.bf16.mxu0 0
        %2113 = vmatmul.mubr.bf16.gmra.mrb[0].mxu0 %v1143
        %v2114 = vpop.f32.mrb[0].mxu0
        %v2115 = vadd.f32 %v2039, %v2114
        %v2116 = vpop.f32.mrb[0].mxu0
        %v2117 = vpop.f32.mrb[0].mxu0
        %v2118 = vadd.f32 %v2044, %v2117
        %v2119 = vpop.f32.mrb[0].mxu0
        %2120 = vmatprep.mubr.bf16.mxu0 0
        %2121 = vmatmul.mubr.bf16.gmra.mrb[0].mxu0 %v1146
        %v2122 = vpop.f32.mrb[0].mxu0
        %v2123 = vadd.f32 %v2049, %v2122
        %v2124 = vpop.f32.mrb[0].mxu0
        %v2125 = vpop.f32.mrb[0].mxu0
        %v2126 = vadd.f32 %v2054, %v2125
        %v2127 = vpop.f32.mrb[0].mxu0
        %2128 = vdwg.mxu0
        %v2129 = vsel %vm1422, %v2099, -inf
        %v2130 = vsel %vm1422, %v2102, -inf
        %v2131 = vsel %vm1422, %v2107, -inf
        %v2132 = vsel %vm1422, %v2110, -inf
        %v2133 = vsel %vm1422, %v2115, -inf
        %v2134 = vmax.f32 %v2129, %v2133
        %v2135 = vsel %vm1422, %v2118, -inf
        %v2136 = vmax.f32 %v2130, %v2135
        %v2137 = vsel %vm1422, %v2123, -inf
        %v2138 = vmax.f32 %v2131, %v2137
        %v2139 = vsel %vm1422, %v2126, -inf
        %v2140 = vmax.f32 %v2132, %v2139
        %v2141 = vmax.f32 %v2134, %v2136
        %v2142 = vmax.f32 %v2138, %v2140
        %v2143 = vmax.f32 %v2141, %v2142
        %v2144 = vrot.slane %v2143, 4
        %v2145 = vmax.f32 %v2143, %v2144
        %v2146 = vrot.slane %v2145, 2
        %v2147 = vmax.f32 %v2145, %v2146
        %v2148 = vrot.slane %v2147, 1
        %v2149 = vmax.f32 %v2147, %v2148
        %v2150 = vsub.f32 %v2099, %v2149
        %v2151 = vsub.f32 %v2102, %v2149
        %v2152 = vsub.f32 %v2107, %v2149
        %v2153 = vsub.f32 %v2110, %v2149
        %v2154 = vsub.f32 %v2115, %v2149
        %v2155 = vsub.f32 %v2118, %v2149
        %v2156 = vsub.f32 %v2123, %v2149
        %v2157 = vsub.f32 %v2126, %v2149
        %v2158 = vmul.f32 %v2150, 1.442695
        %v2159 = vpow.pop %v2158
        %v2160 = vmul.f32 %v2151, 1.442695
        %v2161 = vpow.pop %v2160
        %v2162 = vmul.f32 %v2152, 1.442695
        %v2163 = vpow.pop %v2162
        %v2164 = vmul.f32 %v2153, 1.442695
        %v2165 = vpow.pop %v2164
        %v2166 = vmul.f32 %v2154, 1.442695
        %v2167 = vpow.pop %v2166
        %v2168 = vmul.f32 %v2155, 1.442695
        %v2169 = vpow.pop %v2168
        %v2170 = vmul.f32 %v2156, 1.442695
        %v2171 = vpow.pop %v2170
        %v2172 = vmul.f32 %v2157, 1.442695
        %v2173 = vpow.pop %v2172
        %v2174 = vpack.c.bf16 %v2161, %v2159
        %v2175 = vpack.c.bf16 %v2165, %v2163
        %v2176 = vpack.c.bf16 %v2169, %v2167
        %v2177 = vpack.c.bf16 %v2173, %v2171
        %2180 = vrot.lane.b32.xlu0 %v1314, 64
        %v2181 = vpop.permute.xlu0 %2180
        %2182 = vrot.lane.b32.xlu0 %v1316, 64
        %v2183 = vpop.permute.xlu0 %2182
        %v2185 = vsel %vm1422, %v2181, 0
        %v2188 = vsel %vm1422, %v2183, 0
        %2190 = vmatprep.subr.bf16.mxu0 0
        %2191 = vmatpush1.bf16.msra.mxu0 %v2174
        %2192 = vmatprep.subr.bf16.mxu0 0
        %2193 = vmatpush1.bf16.msra.mxu0 %v2175
        %2194 = vmatprep.subr.bf16.mxu0 0
        %2195 = vmatpush1.bf16.msra.mxu0 %v2176
        %2196 = vmatprep.subr.bf16.mxu0 0
        %2197 = vmatpush1.bf16.msra.mxu0 %v2177
        %2198 = vmatprep.subr.bf16.mxu0 0
        %2199 = vmatpush1.bf16.msra.mxu0 0
        %2200 = vmatprep.subr.bf16.mxu0 0
        %2201 = vmatpush1.bf16.msra.mxu0 0
        %2202 = vmatprep.subr.bf16.mxu0 0
        %2203 = vmatpush1.bf16.msra.mxu0 0
        %2204 = vmatprep.subr.bf16.mxu0 0
        %2205 = vmatpush1.bf16.msra.mxu0 0
        %2206 = vmatprep.subr.bf16.mxu0 0
        %2207 = vmatpush1.bf16.msra.mxu0 0
        %2208 = vmatprep.subr.bf16.mxu0 0
        %2209 = vmatpush1.bf16.msra.mxu0 0
        %2210 = vmatprep.subr.bf16.mxu0 0
        %2211 = vmatpush1.bf16.msra.mxu0 0
        %2212 = vmatprep.subr.bf16.mxu0 0
        %2213 = vmatpush1.bf16.msra.mxu0 0
        %2214 = vmatprep.subr.bf16.mxu0 0
        %2215 = vmatpush1.bf16.msra.mxu0 0
        %2216 = vmatprep.subr.bf16.mxu0 0
        %2217 = vmatpush1.bf16.msra.mxu0 0
        %2218 = vmatprep.subr.bf16.mxu0 0
        %2219 = vmatpush1.bf16.msra.mxu0 0
        %2220 = vmatprep.subr.bf16.mxu0 0
        %2221 = vmatpush1.bf16.msra.mxu0 0
        %2222 = vmatprep.mubr.bf16.mxu0 0
        %2223 = vmatmul.mubr.bf16.gmra.mrb[0].mxu0 %v2185
        %v2224 = vpop.f32.mrb[0].mxu0
        %v2225 = vadd.f32 0.0, %v2224
        %v2226 = vpop.f32.mrb[0].mxu0
        %v2227 = vpop.f32.mrb[0].mxu0
        %v2228 = vadd.f32 0.0, %v2227
        %v2229 = vpop.f32.mrb[0].mxu0
        %2230 = vmatprep.mubr.bf16.mxu0 0
        %2231 = vmatmul.mubr.bf16.gmra.mrb[0].mxu0 %v2188
        %v2232 = vpop.f32.mrb[0].mxu0
        %v2233 = vadd.f32 0.0, %v2232
        %v2234 = vpop.f32.mrb[0].mxu0
        %v2235 = vpop.f32.mrb[0].mxu0
        %v2236 = vadd.f32 0.0, %v2235
        %v2237 = vpop.f32.mrb[0].mxu0
        %2238 = vmatprep.mubr.bf16.mxu0 0
        %2239 = vmatmul.mubr.bf16.gmra.mrb[0].mxu0 %v1724
        %v2240 = vpop.f32.mrb[0].mxu0
        %v2241 = vadd.f32 0.0, %v2240
        %v2242 = vpop.f32.mrb[0].mxu0
        %v2243 = vpop.f32.mrb[0].mxu0
        %v2244 = vpop.f32.mrb[0].mxu0
        %2245 = vdwg.mxu0
        %v2246 = vrcp.pop %v2241
        %v2247 = vlaneseq
        %v2248 = vshrl.u32 %v2247, 7
        %v2249 = vsub.s32 0, %v2248
        %v2250 = vrot.slane %v2246, %v2249
        %v2251 = vmul.f32 %v2225, %v2250
        %v2252 = vmul.f32 %v2228, %v2250
        %v2253 = vmul.f32 %v2233, %v2250
        %v2254 = vmul.f32 %v2236, %v2250
        %2259 = vrot.lane.b32.xlu0 %v1787, 64
        %v2260 = vpop.permute.xlu0 %2259
        %2261 = vrot.lane.b32.xlu0 %v1788, 64
        %v2262 = vpop.permute.xlu0 %2261
        %2263 = vrot.lane.b32.xlu0 %v1789, 64
        %v2264 = vpop.permute.xlu0 %2263
        %2265 = vrot.lane.b32.xlu0 %v1790, 64
        %v2266 = vpop.permute.xlu0 %2265
        %v2271 = vsel %vm1422, %v1542, %v2260
        %v2272 = vsel %vm1422, %v1543, %v2262
        %v2273 = vsel %vm1422, %v1544, %v2264
        %v2274 = vsel %vm1422, %v1545, %v2266
        %v2275 = vld [vmem:[#allocation23] sm:$0xff]
        %v2276 = vld [vmem:[#allocation23 + $0x8] sm:$0xff]
        %v2277 = vld [vmem:[#allocation23 + $0x10] sm:$0xff]
        %v2278 = vld [vmem:[#allocation23 + $0x18] sm:$0xff]
        %v2279 = vld [vmem:[#allocation23 + $0x20] sm:$0xff]
        %v2280 = vld [vmem:[#allocation23 + $0x28] sm:$0xff]
        %v2281 = vld [vmem:[#allocation23 + $0x30] sm:$0xff]
        %v2282 = vld [vmem:[#allocation23 + $0x38] sm:$0xff]
        %v2283 = vld [vmem:[#allocation23 + $0x40] sm:$0xff]
        %v2284 = vld [vmem:[#allocation23 + $0x48] sm:$0xff]
        %v2285 = vld [vmem:[#allocation23 + $0x50] sm:$0xff]
        %v2286 = vld [vmem:[#allocation23 + $0x58] sm:$0xff]
        %v2287 = vld [vmem:[#allocation23 + $0x60] sm:$0xff]
        %v2288 = vld [vmem:[#allocation23 + $0x68] sm:$0xff]
        %v2289 = vld [vmem:[#allocation23 + $0x70] sm:$0xff]
        %v2290 = vld [vmem:[#allocation23 + $0x78] sm:$0xff]
        %2291 = vmatprep.subr.mxu0 0.0
        %2292 = vmatpush1.msra.mxu0 %v2275
        %2293 = vmatprep.subr.mxu0 0.0
        %2294 = vmatpush1.msra.mxu0 %v2276
        %2295 = vmatprep.subr.mxu0 0.0
        %2296 = vmatpush1.msra.mxu0 %v2277
        %2297 = vmatprep.subr.mxu0 0.0
        %2298 = vmatpush1.msra.mxu0 %v2278
        %2299 = vmatprep.subr.mxu0 0.0
        %2300 = vmatpush1.msra.mxu0 %v2279
        %2301 = vmatprep.subr.mxu0 0.0
        %2302 = vmatpush1.msra.mxu0 %v2280
        %2303 = vmatprep.subr.mxu0 0.0
        %2304 = vmatpush1.msra.mxu0 %v2281
        %2305 = vmatprep.subr.mxu0 0.0
        %2306 = vmatpush1.msra.mxu0 %v2282
        %2307 = vmatprep.subr.mxu0 0.0
        %2308 = vmatpush1.msra.mxu0 %v2283
        %2309 = vmatprep.subr.mxu0 0.0
        %2310 = vmatpush1.msra.mxu0 %v2284
        %2311 = vmatprep.subr.mxu0 0.0
        %2312 = vmatpush1.msra.mxu0 %v2285
        %2313 = vmatprep.subr.mxu0 0.0
        %2314 = vmatpush1.msra.mxu0 %v2286
        %2315 = vmatprep.subr.mxu0 0.0
        %2316 = vmatpush1.msra.mxu0 %v2287
        %2317 = vmatprep.subr.mxu0 0.0
        %2318 = vmatpush1.msra.mxu0 %v2288
        %2319 = vmatprep.subr.mxu0 0.0
        %2320 = vmatpush1.msra.mxu0 %v2289
        %2321 = vmatprep.subr.mxu0 0.0
        %2322 = vmatpush1.msra.mxu0 %v2290
        %2323 = vmatprep.subr.mxu0 0.0
        %2324 = vmatpush1.msra.mxu0 0.0
        %2325 = vmatprep.subr.mxu0 0.0
        %2326 = vmatpush1.msra.mxu0 0.0
        %2327 = vmatprep.subr.mxu0 0.0
        %2328 = vmatpush1.msra.mxu0 0.0
        %2329 = vmatprep.subr.mxu0 0.0
        %2330 = vmatpush1.msra.mxu0 0.0
        %2331 = vmatprep.subr.mxu0 0.0
        %2332 = vmatpush1.msra.mxu0 0.0
        %2333 = vmatprep.subr.mxu0 0.0
        %2334 = vmatpush1.msra.mxu0 0.0
        %2335 = vmatprep.subr.mxu0 0.0
        %2336 = vmatpush1.msra.mxu0 0.0
        %2337 = vmatprep.subr.mxu0 0.0
        %2338 = vmatpush1.msra.mxu0 0.0
        %2339 = vmatprep.subr.mxu0 0.0
        %2340 = vmatpush1.msra.mxu0 0.0
        %2341 = vmatprep.subr.mxu0 0.0
        %2342 = vmatpush1.msra.mxu0 0.0
        %2343 = vmatprep.subr.mxu0 0.0
        %2344 = vmatpush1.msra.mxu0 0.0
        %2345 = vmatprep.subr.mxu0 0.0
        %2346 = vmatpush1.msra.mxu0 0.0
        %2347 = vmatprep.subr.mxu0 0.0
        %2348 = vmatpush1.msra.mxu0 0.0
        %2349 = vmatprep.subr.mxu0 0.0
        %2350 = vmatpush1.msra.mxu0 0.0
        %2351 = vmatprep.subr.mxu0 0.0
        %2352 = vmatpush1.msra.mxu0 0.0
        %2353 = vmatprep.subr.mxu0 0.0
        %2354 = vmatpush1.msra.mxu0 0.0
        %2355 = vmatprep.mubr.f32.mxu0 0.0
        %2356 = vmatmul.mubr.f32.gmra.mrb[0].mxu0 %v2271
        %v2357 = vpop.f32.mrb[0].mxu0
        %v2358 = vadd.f32 0.0, %v2357
        %v2359 = vpop.f32.mrb[0].mxu0
        %2360 = vmatprep.mubr.f32.mxu0 0.0
        %2361 = vmatmul.mubr.f32.gmra.mrb[0].mxu0 %v2272
        %v2362 = vpop.f32.mrb[0].mxu0
        %v2363 = vadd.f32 0.0, %v2362
        %v2364 = vpop.f32.mrb[0].mxu0
        %2365 = vmatprep.mubr.f32.mxu0 0.0
        %2366 = vmatmul.mubr.f32.gmra.mrb[0].mxu0 %v2273
        %v2367 = vpop.f32.mrb[0].mxu0
        %v2368 = vadd.f32 0.0, %v2367
        %v2369 = vpop.f32.mrb[0].mxu0
        %2370 = vmatprep.mubr.f32.mxu0 0.0
        %2371 = vmatmul.mubr.f32.gmra.mrb[0].mxu0 %v2274
        %v2372 = vpop.f32.mrb[0].mxu0
        %v2373 = vadd.f32 0.0, %v2372
        %v2374 = vpop.f32.mrb[0].mxu0
        %2375 = vdwg.mxu0
        %2380 = vrot.lane.b32.xlu0 %v2251, 64
        %v2381 = vpop.permute.xlu0 %2380
        %2382 = vrot.lane.b32.xlu0 %v2252, 64
        %v2383 = vpop.permute.xlu0 %2382
        %2384 = vrot.lane.b32.xlu0 %v2253, 64
        %v2385 = vpop.permute.xlu0 %2384
        %2386 = vrot.lane.b32.xlu0 %v2254, 64
        %v2387 = vpop.permute.xlu0 %2386
        %v2392 = vsel %vm1422, %v2012, %v2381
        %v2393 = vsel %vm1422, %v2013, %v2383
        %v2394 = vsel %vm1422, %v2014, %v2385
        %v2395 = vsel %vm1422, %v2015, %v2387
        %2396 = vmatprep.subr.mxu0 0.0
        %2397 = vmatpush1.msra.mxu0 %v2275
        %2398 = vmatprep.subr.mxu0 0.0
        %2399 = vmatpush1.msra.mxu0 %v2276
        %2400 = vmatprep.subr.mxu0 0.0
        %2401 = vmatpush1.msra.mxu0 %v2277
        %2402 = vmatprep.subr.mxu0 0.0
        %2403 = vmatpush1.msra.mxu0 %v2278
        %2404 = vmatprep.subr.mxu0 0.0
        %2405 = vmatpush1.msra.mxu0 %v2279
        %2406 = vmatprep.subr.mxu0 0.0
        %2407 = vmatpush1.msra.mxu0 %v2280
        %2408 = vmatprep.subr.mxu0 0.0
        %2409 = vmatpush1.msra.mxu0 %v2281
        %2410 = vmatprep.subr.mxu0 0.0
        %2411 = vmatpush1.msra.mxu0 %v2282
        %2412 = vmatprep.subr.mxu0 0.0
        %2413 = vmatpush1.msra.mxu0 %v2283
        %2414 = vmatprep.subr.mxu0 0.0
        %2415 = vmatpush1.msra.mxu0 %v2284
        %2416 = vmatprep.subr.mxu0 0.0
        %2417 = vmatpush1.msra.mxu0 %v2285
        %2418 = vmatprep.subr.mxu0 0.0
        %2419 = vmatpush1.msra.mxu0 %v2286
        %2420 = vmatprep.subr.mxu0 0.0
        %2421 = vmatpush1.msra.mxu0 %v2287
        %2422 = vmatprep.subr.mxu0 0.0
        %2423 = vmatpush1.msra.mxu0 %v2288
        %2424 = vmatprep.subr.mxu0 0.0
        %2425 = vmatpush1.msra.mxu0 %v2289
        %2426 = vmatprep.subr.mxu0 0.0
        %2427 = vmatpush1.msra.mxu0 %v2290
        %2428 = vmatprep.subr.mxu0 0.0
        %2429 = vmatpush1.msra.mxu0 0.0
        %2430 = vmatprep.subr.mxu0 0.0
        %2431 = vmatpush1.msra.mxu0 0.0
        %2432 = vmatprep.subr.mxu0 0.0
        %2433 = vmatpush1.msra.mxu0 0.0
        %2434 = vmatprep.subr.mxu0 0.0
        %2435 = vmatpush1.msra.mxu0 0.0
        %2436 = vmatprep.subr.mxu0 0.0
        %2437 = vmatpush1.msra.mxu0 0.0
        %2438 = vmatprep.subr.mxu0 0.0
        %2439 = vmatpush1.msra.mxu0 0.0
        %2440 = vmatprep.subr.mxu0 0.0
        %2441 = vmatpush1.msra.mxu0 0.0
        %2442 = vmatprep.subr.mxu0 0.0
        %2443 = vmatpush1.msra.mxu0 0.0
        %2444 = vmatprep.subr.mxu0 0.0
        %2445 = vmatpush1.msra.mxu0 0.0
        %2446 = vmatprep.subr.mxu0 0.0
        %2447 = vmatpush1.msra.mxu0 0.0
        %2448 = vmatprep.subr.mxu0 0.0
        %2449 = vmatpush1.msra.mxu0 0.0
        %2450 = vmatprep.subr.mxu0 0.0
        %2451 = vmatpush1.msra.mxu0 0.0
        %2452 = vmatprep.subr.mxu0 0.0
        %2453 = vmatpush1.msra.mxu0 0.0
        %2454 = vmatprep.subr.mxu0 0.0
        %2455 = vmatpush1.msra.mxu0 0.0
        %2456 = vmatprep.subr.mxu0 0.0
        %2457 = vmatpush1.msra.mxu0 0.0
        %2458 = vmatprep.subr.mxu0 0.0
        %2459 = vmatpush1.msra.mxu0 0.0
        %2460 = vmatprep.mubr.f32.mxu0 0.0
        %2461 = vmatmul.mubr.f32.gmra.mrb[0].mxu0 %v2392
        %v2462 = vpop.f32.mrb[0].mxu0
        %v2463 = vadd.f32 0.0, %v2462
        %v2464 = vpop.f32.mrb[0].mxu0
        %2465 = vmatprep.mubr.f32.mxu0 0.0
        %2466 = vmatmul.mubr.f32.gmra.mrb[0].mxu0 %v2393
        %v2467 = vpop.f32.mrb[0].mxu0
        %v2468 = vadd.f32 0.0, %v2467
        %v2469 = vpop.f32.mrb[0].mxu0
        %2470 = vmatprep.mubr.f32.mxu0 0.0
        %2471 = vmatmul.mubr.f32.gmra.mrb[0].mxu0 %v2394
        %v2472 = vpop.f32.mrb[0].mxu0
        %v2473 = vadd.f32 0.0, %v2472
        %v2474 = vpop.f32.mrb[0].mxu0
        %2475 = vmatprep.mubr.f32.mxu0 0.0
        %2476 = vmatmul.mubr.f32.gmra.mrb[0].mxu0 %v2395
        %v2477 = vpop.f32.mrb[0].mxu0
        %v2478 = vadd.f32 0.0, %v2477
        %v2479 = vpop.f32.mrb[0].mxu0
        %2480 = vdwg.mxu0
        %s2481 = sld [smem:[#allocation29]]
        %v2482 = vstv %s2481
        %v2483 = vmul.f32 %v2482, %v2358
        %v2484 = vmul.f32 %v2482, %v2463
        %v2485 = vmul.f32 %v2482, %v2363
        %v2486 = vmul.f32 %v2482, %v2468
        %v2487 = vmul.f32 %v2482, %v2368
        %v2488 = vmul.f32 %v2482, %v2473
        %v2489 = vmul.f32 %v2482, %v2373
        %v2490 = vmul.f32 %v2482, %v2478
        %v2491 = vadd.f32 %v2483, %v845
        %v2492 = vadd.f32 %v2484, %v846
        %v2493 = vadd.f32 %v2485, %v847
        %v2494 = vadd.f32 %v2486, %v848
        %v2495 = vadd.f32 %v2487, %v849
        %v2496 = vadd.f32 %v2488, %v850
        %v2497 = vadd.f32 %v2489, %v851
        %v2498 = vadd.f32 %v2490, %v852
        %v2499 = vsel %vm1422, %v853, -inf
        %2500 = vmax.xlane.f32.xlu0 %v2499
        %v2501 = vpop.xlane.xlu0 %2500
        %v2502 = vsel %vm1422, %v855, -inf
        %2503 = vmax.xlane.f32.xlu0 %v2502
        %v2504 = vpop.xlane.xlu0 %2503
        %v2505 = vsel %vm1422, %v857, -inf
        %2506 = vmax.xlane.f32.xlu0 %v2505
        %v2507 = vpop.xlane.xlu0 %2506
        %v2508 = vsel %vm1422, %v859, -inf
        %2509 = vmax.xlane.f32.xlu0 %v2508
        %v2510 = vpop.xlane.xlu0 %2509
        %vm2511 = vcmask 1048064
        %v2512 = vsel %vm2511, %v853, -inf
        %2513 = vmax.xlane.f32.xlu0 %v2512
        %v2514 = vpop.xlane.xlu0 %2513
        %v2515 = vsel %vm2511, %v855, -inf
        %2516 = vmax.xlane.f32.xlu0 %v2515
        %v2517 = vpop.xlane.xlu0 %2516
        %v2518 = vsel %vm2511, %v857, -inf
        %2519 = vmax.xlane.f32.xlu0 %v2518
        %v2520 = vpop.xlane.xlu0 %2519
        %v2521 = vsel %vm2511, %v859, -inf
        %2522 = vmax.xlane.f32.xlu0 %v2521
        %v2523 = vpop.xlane.xlu0 %2522
        %v2524 = vsel %vm1422, %v854, -inf
        %2525 = vmax.xlane.f32.xlu0 %v2524
        %v2526 = vpop.xlane.xlu0 %2525
        %v2527 = vsel %vm1422, %v856, -inf
        %2528 = vmax.xlane.f32.xlu0 %v2527
        %v2529 = vpop.xlane.xlu0 %2528
        %v2530 = vsel %vm1422, %v858, -inf
        %2531 = vmax.xlane.f32.xlu0 %v2530
        %v2532 = vpop.xlane.xlu0 %2531
        %v2533 = vsel %vm1422, %v860, -inf
        %2534 = vmax.xlane.f32.xlu0 %v2533
        %v2535 = vpop.xlane.xlu0 %2534
        %v2536 = vsel %vm2511, %v854, -inf
        %2537 = vmax.xlane.f32.xlu0 %v2536
        %v2538 = vpop.xlane.xlu0 %2537
        %v2539 = vsel %vm2511, %v856, -inf
        %2540 = vmax.xlane.f32.xlu0 %v2539
        %v2541 = vpop.xlane.xlu0 %2540
        %v2542 = vsel %vm2511, %v858, -inf
        %2543 = vmax.xlane.f32.xlu0 %v2542
        %v2544 = vpop.xlane.xlu0 %2543
        %v2545 = vsel %vm2511, %v860, -inf
        %2546 = vmax.xlane.f32.xlu0 %v2545
        %v2547 = vpop.xlane.xlu0 %2546
        %vm2548 = vcmask 7168
        %v2549 = vsel %vm2548, %v2501, %v2514
        %v2550 = vsel %vm2548, %v2504, %v2517
        %v2551 = vsel %vm2548, %v2507, %v2520
        %v2552 = vsel %vm2548, %v2510, %v2523
        %vm2553 = vcmask 15360
        %v2554 = vsel %vm2553, %v2549, %v2526
        %v2555 = vsel %vm2553, %v2550, %v2529
        %v2556 = vsel %vm2553, %v2551, %v2532
        %v2557 = vsel %vm2553, %v2552, %v2535
        %vm2558 = vcmask 23552
        %v2559 = vsel %vm2558, %v2554, %v2538
        %v2560 = vsel %vm2558, %v2555, %v2541
        %v2561 = vsel %vm2558, %v2556, %v2544
        %v2562 = vsel %vm2558, %v2557, %v2547
        %v2563 = vsel %vm927, %v861, -inf
        %v2564 = vsel %vm927, %v862, -inf
        %v2565 = vsel %vm927, %v863, -inf
        %v2566 = vsel %vm927, %v864, -inf
        %v2567 = vsel %vm927, %v865, -inf
        %v2568 = vmax.f32 %v2563, %v2567
        %v2569 = vsel %vm927, %v866, -inf
        %v2570 = vmax.f32 %v2564, %v2569
        %v2571 = vsel %vm927, %v867, -inf
        %v2572 = vmax.f32 %v2565, %v2571
        %v2573 = vsel %vm927, %v868, -inf
        %v2574 = vmax.f32 %v2566, %v2573
        %v2575 = vmax.f32 %v2568, %v2570
        %v2576 = vmax.f32 %v2572, %v2574
        %v2577 = vmax.f32 %v2575, %v2576
        %v2578 = vrot.slane %v2577, 4
        %v2579 = vmax.f32 %v2577, %v2578
        %v2580 = vrot.slane %v2579, 2
        %v2581 = vmax.f32 %v2579, %v2580
        %v2582 = vrot.slane %v2581, 1
        %v2583 = vmax.f32 %v2581, %v2582
        %v2584 = vsel %vm927, %v869, -inf
        %v2585 = vsel %vm927, %v870, -inf
        %v2586 = vsel %vm927, %v871, -inf
        %v2587 = vsel %vm927, %v872, -inf
        %v2588 = vsel %vm927, %v873, -inf
        %v2589 = vmax.f32 %v2584, %v2588
        %v2590 = vsel %vm927, %v874, -inf
        %v2591 = vmax.f32 %v2585, %v2590
        %v2592 = vsel %vm927, %v875, -inf
        %v2593 = vmax.f32 %v2586, %v2592
        %v2594 = vsel %vm927, %v876, -inf
        %v2595 = vmax.f32 %v2587, %v2594
        %v2596 = vmax.f32 %v2589, %v2591
        %v2597 = vmax.f32 %v2593, %v2595
        %v2598 = vmax.f32 %v2596, %v2597
        %v2599 = vrot.slane %v2598, 4
        %v2600 = vmax.f32 %v2598, %v2599
        %v2601 = vrot.slane %v2600, 2
        %v2602 = vmax.f32 %v2600, %v2601
        %v2603 = vrot.slane %v2602, 1
        %v2604 = vmax.f32 %v2602, %v2603
        %v2605 = vsel %vm927, %v877, -inf
        %v2606 = vsel %vm927, %v878, -inf
        %v2607 = vsel %vm927, %v879, -inf
        %v2608 = vsel %vm927, %v880, -inf
        %v2609 = vsel %vm927, %v881, -inf
        %v2610 = vmax.f32 %v2605, %v2609
        %v2611 = vsel %vm927, %v882, -inf
        %v2612 = vmax.f32 %v2606, %v2611
        %v2613 = vsel %vm927, %v883, -inf
        %v2614 = vmax.f32 %v2607, %v2613
        %v2615 = vsel %vm927, %v884, -inf
        %v2616 = vmax.f32 %v2608, %v2615
        %v2617 = vmax.f32 %v2610, %v2612
        %v2618 = vmax.f32 %v2614, %v2616
        %v2619 = vmax.f32 %v2617, %v2618
        %v2620 = vrot.slane %v2619, 4
        %v2621 = vmax.f32 %v2619, %v2620
        %v2622 = vrot.slane %v2621, 2
        %v2623 = vmax.f32 %v2621, %v2622
        %v2624 = vrot.slane %v2623, 1
        %v2625 = vmax.f32 %v2623, %v2624
        %v2626 = vsel %vm927, %v885, -inf
        %v2627 = vsel %vm927, %v886, -inf
        %v2628 = vsel %vm927, %v887, -inf
        %v2629 = vsel %vm927, %v888, -inf
        %v2630 = vsel %vm927, %v889, -inf
        %v2631 = vmax.f32 %v2626, %v2630
        %v2632 = vsel %vm927, %v890, -inf
        %v2633 = vmax.f32 %v2627, %v2632
        %v2634 = vsel %vm927, %v891, -inf
        %v2635 = vmax.f32 %v2628, %v2634
        %v2636 = vsel %vm927, %v892, -inf
        %v2637 = vmax.f32 %v2629, %v2636
        %v2638 = vmax.f32 %v2631, %v2633
        %v2639 = vmax.f32 %v2635, %v2637
        %v2640 = vmax.f32 %v2638, %v2639
        %v2641 = vrot.slane %v2640, 4
        %v2642 = vmax.f32 %v2640, %v2641
        %v2643 = vrot.slane %v2642, 2
        %v2644 = vmax.f32 %v2642, %v2643
        %v2645 = vrot.slane %v2644, 1
        %v2646 = vmax.f32 %v2644, %v2645
        %vm2647 = vcmask 1040384
        %v2648 = vsel %vm2647, %v2583, %v2604
        %vm2649 = vcmask 1041408
        %v2650 = vsel %vm2649, %v2648, %v2625
        %vm2651 = vcmask 1042432
        %v2652 = vsel %vm2651, %v2650, %v2646
        %v2653 = vld [vmem:[#allocation15] sm:$0xff]
        %v2654 = vld [vmem:[#allocation15 + $0x8] sm:$0xff]
        %v2655 = vld [vmem:[#allocation15 + $0x10] sm:$0xff]
        %v2656 = vld [vmem:[#allocation15 + $0x18] sm:$0xff]
        %v2658 = vsel %vm927, %v2653, 0
        %v2661 = vsel %vm927, %v2654, 0
        %v2664 = vsel %vm927, %v2655, 0
        %v2667 = vsel %vm927, %v2656, 0
        %2669 = vmatprep.subr.mxu0 0.0
        %2670 = vmatpush1.msra.mxu0 %v2559
        %2671 = vmatprep.subr.mxu0 0.0
        %2672 = vmatpush1.msra.mxu0 %v2560
        %2673 = vmatprep.subr.mxu0 0.0
        %2674 = vmatpush1.msra.mxu0 %v2561
        %2675 = vmatprep.subr.mxu0 0.0
        %2676 = vmatpush1.msra.mxu0 %v2562
        %2677 = vmatprep.subr.mxu0 0.0
        %2678 = vmatpush1.msra.mxu0 0.0
        %2679 = vmatprep.subr.mxu0 0.0
        %2680 = vmatpush1.msra.mxu0 0.0
        %2681 = vmatprep.subr.mxu0 0.0
        %2682 = vmatpush1.msra.mxu0 0.0
        %2683 = vmatprep.subr.mxu0 0.0
        %2684 = vmatpush1.msra.mxu0 0.0
        %2685 = vmatprep.subr.mxu0 0.0
        %2686 = vmatpush1.msra.mxu0 0.0
        %2687 = vmatprep.subr.mxu0 0.0
        %2688 = vmatpush1.msra.mxu0 0.0
        %2689 = vmatprep.subr.mxu0 0.0
        %2690 = vmatpush1.msra.mxu0 0.0
        %2691 = vmatprep.subr.mxu0 0.0
        %2692 = vmatpush1.msra.mxu0 0.0
        %2693 = vmatprep.subr.mxu0 0.0
        %2694 = vmatpush1.msra.mxu0 0.0
        %2695 = vmatprep.subr.mxu0 0.0
        %2696 = vmatpush1.msra.mxu0 0.0
        %2697 = vmatprep.subr.mxu0 0.0
        %2698 = vmatpush1.msra.mxu0 0.0
        %2699 = vmatprep.subr.mxu0 0.0
        %2700 = vmatpush1.msra.mxu0 0.0
        %2701 = vmatprep.subr.mxu0 0.0
        %2702 = vmatpush1.msra.mxu0 0.0
        %2703 = vmatprep.subr.mxu0 0.0
        %2704 = vmatpush1.msra.mxu0 0.0
        %2705 = vmatprep.subr.mxu0 0.0
        %2706 = vmatpush1.msra.mxu0 0.0
        %2707 = vmatprep.subr.mxu0 0.0
        %2708 = vmatpush1.msra.mxu0 0.0
        %2709 = vmatprep.subr.mxu0 0.0
        %2710 = vmatpush1.msra.mxu0 0.0
        %2711 = vmatprep.subr.mxu0 0.0
        %2712 = vmatpush1.msra.mxu0 0.0
        %2713 = vmatprep.subr.mxu0 0.0
        %2714 = vmatpush1.msra.mxu0 0.0
        %2715 = vmatprep.subr.mxu0 0.0
        %2716 = vmatpush1.msra.mxu0 0.0
        %2717 = vmatprep.subr.mxu0 0.0
        %2718 = vmatpush1.msra.mxu0 0.0
        %2719 = vmatprep.subr.mxu0 0.0
        %2720 = vmatpush1.msra.mxu0 0.0
        %2721 = vmatprep.subr.mxu0 0.0
        %2722 = vmatpush1.msra.mxu0 0.0
        %2723 = vmatprep.subr.mxu0 0.0
        %2724 = vmatpush1.msra.mxu0 0.0
        %2725 = vmatprep.subr.mxu0 0.0
        %2726 = vmatpush1.msra.mxu0 0.0
        %2727 = vmatprep.subr.mxu0 0.0
        %2728 = vmatpush1.msra.mxu0 0.0
        %2729 = vmatprep.subr.mxu0 0.0
        %2730 = vmatpush1.msra.mxu0 0.0
        %2731 = vmatprep.subr.mxu0 0.0
        %2732 = vmatpush1.msra.mxu0 0.0
        %2733 = vmatprep.mubr.f32.mxu0 0.0
        %2734 = vmatmul.mubr.f32.gmra.mrb[0].mxu0 %v2658
        %v2735 = vpop.f32.mrb[0].mxu0
        %v2736 = vadd.f32 0.0, %v2735
        %v2737 = vpop.f32.mrb[0].mxu0
        %2738 = vmatprep.mubr.f32.mxu0 0.0
        %2739 = vmatmul.mubr.f32.gmra.mrb[0].mxu0 %v2661
        %v2740 = vpop.f32.mrb[0].mxu0
        %v2741 = vadd.f32 0.0, %v2740
        %v2742 = vpop.f32.mrb[0].mxu0
        %2743 = vmatprep.mubr.f32.mxu0 0.0
        %2744 = vmatmul.mubr.f32.gmra.mrb[0].mxu0 %v2664
        %v2745 = vpop.f32.mrb[0].mxu0
        %v2746 = vadd.f32 0.0, %v2745
        %v2747 = vpop.f32.mrb[0].mxu0
        %2748 = vmatprep.mubr.f32.mxu0 0.0
        %2749 = vmatmul.mubr.f32.gmra.mrb[0].mxu0 %v2667
        %v2750 = vpop.f32.mrb[0].mxu0
        %v2751 = vadd.f32 0.0, %v2750
        %v2752 = vpop.f32.mrb[0].mxu0
        %2753 = vdwg.mxu0
        %v2754 = vld [vmem:[#allocation17] sm:$0xff]
        %v2755 = vld [vmem:[#allocation17 + $0x8] sm:$0xff]
        %v2756 = vld [vmem:[#allocation17 + $0x10] sm:$0xff]
        %v2757 = vld [vmem:[#allocation17 + $0x18] sm:$0xff]
        %v2759 = vsel %vm927, %v2652, 0
        %2761 = vmatprep.subr.mxu0 0.0
        %2762 = vmatpush1.msra.mxu0 %v2754
        %2763 = vmatprep.subr.mxu0 0.0
        %2764 = vmatpush1.msra.mxu0 %v2755
        %2765 = vmatprep.subr.mxu0 0.0
        %2766 = vmatpush1.msra.mxu0 %v2756
        %2767 = vmatprep.subr.mxu0 0.0
        %2768 = vmatpush1.msra.mxu0 %v2757
        %2769 = vmatprep.subr.mxu0 0.0
        %2770 = vmatpush1.msra.mxu0 0.0
        %2771 = vmatprep.subr.mxu0 0.0
        %2772 = vmatpush1.msra.mxu0 0.0
        %2773 = vmatprep.subr.mxu0 0.0
        %2774 = vmatpush1.msra.mxu0 0.0
        %2775 = vmatprep.subr.mxu0 0.0
        %2776 = vmatpush1.msra.mxu0 0.0
        %2777 = vmatprep.subr.mxu0 0.0
        %2778 = vmatpush1.msra.mxu0 0.0
        %2779 = vmatprep.subr.mxu0 0.0
        %2780 = vmatpush1.msra.mxu0 0.0
        %2781 = vmatprep.subr.mxu0 0.0
        %2782 = vmatpush1.msra.mxu0 0.0
        %2783 = vmatprep.subr.mxu0 0.0
        %2784 = vmatpush1.msra.mxu0 0.0
        %2785 = vmatprep.subr.mxu0 0.0
        %2786 = vmatpush1.msra.mxu0 0.0
        %2787 = vmatprep.subr.mxu0 0.0
        %2788 = vmatpush1.msra.mxu0 0.0
        %2789 = vmatprep.subr.mxu0 0.0
        %2790 = vmatpush1.msra.mxu0 0.0
        %2791 = vmatprep.subr.mxu0 0.0
        %2792 = vmatpush1.msra.mxu0 0.0
        %2793 = vmatprep.subr.mxu0 0.0
        %2794 = vmatpush1.msra.mxu0 0.0
        %2795 = vmatprep.subr.mxu0 0.0
        %2796 = vmatpush1.msra.mxu0 0.0
        %2797 = vmatprep.subr.mxu0 0.0
        %2798 = vmatpush1.msra.mxu0 0.0
        %2799 = vmatprep.subr.mxu0 0.0
        %2800 = vmatpush1.msra.mxu0 0.0
        %2801 = vmatprep.subr.mxu0 0.0
        %2802 = vmatpush1.msra.mxu0 0.0
        %2803 = vmatprep.subr.mxu0 0.0
        %2804 = vmatpush1.msra.mxu0 0.0
        %2805 = vmatprep.subr.mxu0 0.0
        %2806 = vmatpush1.msra.mxu0 0.0
        %2807 = vmatprep.subr.mxu0 0.0
        %2808 = vmatpush1.msra.mxu0 0.0
        %2809 = vmatprep.subr.mxu0 0.0
        %2810 = vmatpush1.msra.mxu0 0.0
        %2811 = vmatprep.subr.mxu0 0.0
        %2812 = vmatpush1.msra.mxu0 0.0
        %2813 = vmatprep.subr.mxu0 0.0
        %2814 = vmatpush1.msra.mxu0 0.0
        %2815 = vmatprep.subr.mxu0 0.0
        %2816 = vmatpush1.msra.mxu0 0.0
        %2817 = vmatprep.subr.mxu0 0.0
        %2818 = vmatpush1.msra.mxu0 0.0
        %2819 = vmatprep.subr.mxu0 0.0
        %2820 = vmatpush1.msra.mxu0 0.0
        %2821 = vmatprep.subr.mxu0 0.0
        %2822 = vmatpush1.msra.mxu0 0.0
        %2823 = vmatprep.subr.mxu0 0.0
        %2824 = vmatpush1.msra.mxu0 0.0
        %2825 = vmatprep.mubr.f32.mxu0 0.0
        %2826 = vmatmul.mubr.f32.gmra.mrb[0].mxu0 %v2759
        %v2827 = vpop.f32.mrb[0].mxu0
        %v2828 = vadd.f32 0.0, %v2827
        %v2829 = vpop.f32.mrb[0].mxu0
        %2830 = vdwg.mxu0
        %2832 = vset.pattern.permute.xlu0 0
        %2833 = vperm.xlu0 %2832, %v2828
        %v2834 = vpop.permute.xlu0 %2833
        %2836 = vmatprep.subr.mxu0 0.0
        %2837 = vmatpush1.msra.mxu0 %v2736
        %2838 = vmatprep.subr.mxu0 0.0
        %2839 = vmatpush1.msra.mxu0 %v2741
        %2840 = vmatprep.subr.mxu0 0.0
        %2841 = vmatpush1.msra.mxu0 %v2746
        %2842 = vmatprep.subr.mxu0 0.0
        %2843 = vmatpush1.msra.mxu0 %v2751
        %2844 = vmatprep.subr.mxu0 0.0
        %2845 = vmatpush1.msra.mxu0 0.0
        %2846 = vmatprep.subr.mxu0 0.0
        %2847 = vmatpush1.msra.mxu0 0.0
        %2848 = vmatprep.subr.mxu0 0.0
        %2849 = vmatpush1.msra.mxu0 0.0
        %2850 = vmatprep.subr.mxu0 0.0
        %2851 = vmatpush1.msra.mxu0 0.0
        %2852 = vmatprep.subr.mxu0 0.0
        %2853 = vmatpush1.msra.mxu0 0.0
        %2854 = vmatprep.subr.mxu0 0.0
        %2855 = vmatpush1.msra.mxu0 0.0
        %2856 = vmatprep.subr.mxu0 0.0
        %2857 = vmatpush1.msra.mxu0 0.0
        %2858 = vmatprep.subr.mxu0 0.0
        %2859 = vmatpush1.msra.mxu0 0.0
        %2860 = vmatprep.subr.mxu0 0.0
        %2861 = vmatpush1.msra.mxu0 0.0
        %2862 = vmatprep.subr.mxu0 0.0
        %2863 = vmatpush1.msra.mxu0 0.0
        %2864 = vmatprep.subr.mxu0 0.0
        %2865 = vmatpush1.msra.mxu0 0.0
        %2866 = vmatprep.subr.mxu0 0.0
        %2867 = vmatpush1.msra.mxu0 0.0
        %2868 = vmatprep.subr.mxu0 0.0
        %2869 = vmatpush1.msra.mxu0 0.0
        %2870 = vmatprep.subr.mxu0 0.0
        %2871 = vmatpush1.msra.mxu0 0.0
        %2872 = vmatprep.subr.mxu0 0.0
        %2873 = vmatpush1.msra.mxu0 0.0
        %2874 = vmatprep.subr.mxu0 0.0
        %2875 = vmatpush1.msra.mxu0 0.0
        %2876 = vmatprep.subr.mxu0 0.0
        %2877 = vmatpush1.msra.mxu0 0.0
        %2878 = vmatprep.subr.mxu0 0.0
        %2879 = vmatpush1.msra.mxu0 0.0
        %2880 = vmatprep.subr.mxu0 0.0
        %2881 = vmatpush1.msra.mxu0 0.0
        %2882 = vmatprep.subr.mxu0 0.0
        %2883 = vmatpush1.msra.mxu0 0.0
        %2884 = vmatprep.subr.mxu0 0.0
        %2885 = vmatpush1.msra.mxu0 0.0
        %2886 = vmatprep.subr.mxu0 0.0
        %2887 = vmatpush1.msra.mxu0 0.0
        %2888 = vmatprep.subr.mxu0 0.0
        %2889 = vmatpush1.msra.mxu0 0.0
        %2890 = vmatprep.subr.mxu0 0.0
        %2891 = vmatpush1.msra.mxu0 0.0
        %2892 = vmatprep.subr.mxu0 0.0
        %2893 = vmatpush1.msra.mxu0 0.0
        %2894 = vmatprep.subr.mxu0 0.0
        %2895 = vmatpush1.msra.mxu0 0.0
        %2896 = vmatprep.subr.mxu0 0.0
        %2897 = vmatpush1.msra.mxu0 0.0
        %2898 = vmatprep.subr.mxu0 0.0
        %2899 = vmatpush1.msra.mxu0 0.0
        %2900 = vmatprep.mubr.f32.mxu0 0.0
        %2901 = vmatmul.mubr.f32.gmra.mrb[0].mxu0 %v2759
        %v2902 = vpop.f32.mrb[0].mxu0
        %v2903 = vadd.f32 %v2834, %v2902
        %v2904 = vpop.f32.mrb[0].mxu0
        %2905 = vdwg.mxu0
        %vm2906 = vcmask 27648
        %v2907 = vsel %vm2906, %v2903, -inf
        %v2908 = vrot.slane %v2907, 4
        %v2909 = vmax.f32 %v2907, %v2908
        %v2910 = vrot.slane %v2909, 2
        %v2911 = vmax.f32 %v2909, %v2910
        %v2912 = vrot.slane %v2911, 1
        %v2913 = vmax.f32 %v2911, %v2912
        %v2914 = vsub.f32 %v2903, %v2913
        %v2915 = vmul.f32 %v2914, 1.442695
        %v2916 = vpow.pop %v2915
        %v2917 = vld [vmem:[#allocation18] sm:$0xff]
        %v2918 = vld [vmem:[#allocation18 + $0x8] sm:$0xff]
        %v2919 = vld [vmem:[#allocation18 + $0x10] sm:$0xff]
        %v2920 = vld [vmem:[#allocation18 + $0x18] sm:$0xff]
        %v2921 = vld [vmem:[#allocation20] sm:$0xff]
        %v2922 = vld [vmem:[#allocation20 + $0x8] sm:$0xff]
        %v2923 = vld [vmem:[#allocation20 + $0x10] sm:$0xff]
        %v2924 = vld [vmem:[#allocation20 + $0x18] sm:$0xff]
        %2926 = vset.pattern.permute.xlu0 0
        %2927 = vperm.xlu0 %2926, %v2921
        %v2928 = vpop.permute.xlu0 %2927
        %2931 = vset.pattern.permute.xlu0 0
        %2932 = vperm.xlu0 %2931, %v2922
        %v2933 = vpop.permute.xlu0 %2932
        %2936 = vset.pattern.permute.xlu0 0
        %2937 = vperm.xlu0 %2936, %v2923
        %v2938 = vpop.permute.xlu0 %2937
        %2941 = vset.pattern.permute.xlu0 0
        %2942 = vperm.xlu0 %2941, %v2924
        %v2943 = vpop.permute.xlu0 %2942
        %v2946 = vsel %vm927, %v2917, 0
        %v2949 = vsel %vm927, %v2918, 0
        %v2952 = vsel %vm927, %v2919, 0
        %v2955 = vsel %vm927, %v2920, 0
        %2957 = vmatprep.subr.mxu0 0.0
        %2958 = vmatpush1.msra.mxu0 %v2559
        %2959 = vmatprep.subr.mxu0 0.0
        %2960 = vmatpush1.msra.mxu0 %v2560
        %2961 = vmatprep.subr.mxu0 0.0
        %2962 = vmatpush1.msra.mxu0 %v2561
        %2963 = vmatprep.subr.mxu0 0.0
        %2964 = vmatpush1.msra.mxu0 %v2562
        %2965 = vmatprep.subr.mxu0 0.0
        %2966 = vmatpush1.msra.mxu0 0.0
        %2967 = vmatprep.subr.mxu0 0.0
        %2968 = vmatpush1.msra.mxu0 0.0
        %2969 = vmatprep.subr.mxu0 0.0
        %2970 = vmatpush1.msra.mxu0 0.0
        %2971 = vmatprep.subr.mxu0 0.0
        %2972 = vmatpush1.msra.mxu0 0.0
        %2973 = vmatprep.subr.mxu0 0.0
        %2974 = vmatpush1.msra.mxu0 0.0
        %2975 = vmatprep.subr.mxu0 0.0
        %2976 = vmatpush1.msra.mxu0 0.0
        %2977 = vmatprep.subr.mxu0 0.0
        %2978 = vmatpush1.msra.mxu0 0.0
        %2979 = vmatprep.subr.mxu0 0.0
        %2980 = vmatpush1.msra.mxu0 0.0
        %2981 = vmatprep.subr.mxu0 0.0
        %2982 = vmatpush1.msra.mxu0 0.0
        %2983 = vmatprep.subr.mxu0 0.0
        %2984 = vmatpush1.msra.mxu0 0.0
        %2985 = vmatprep.subr.mxu0 0.0
        %2986 = vmatpush1.msra.mxu0 0.0
        %2987 = vmatprep.subr.mxu0 0.0
        %2988 = vmatpush1.msra.mxu0 0.0
        %2989 = vmatprep.subr.mxu0 0.0
        %2990 = vmatpush1.msra.mxu0 0.0
        %2991 = vmatprep.subr.mxu0 0.0
        %2992 = vmatpush1.msra.mxu0 0.0
        %2993 = vmatprep.subr.mxu0 0.0
        %2994 = vmatpush1.msra.mxu0 0.0
        %2995 = vmatprep.subr.mxu0 0.0
        %2996 = vmatpush1.msra.mxu0 0.0
        %2997 = vmatprep.subr.mxu0 0.0
        %2998 = vmatpush1.msra.mxu0 0.0
        %2999 = vmatprep.subr.mxu0 0.0
        %3000 = vmatpush1.msra.mxu0 0.0
        %3001 = vmatprep.subr.mxu0 0.0
        %3002 = vmatpush1.msra.mxu0 0.0
        %3003 = vmatprep.subr.mxu0 0.0
        %3004 = vmatpush1.msra.mxu0 0.0
        %3005 = vmatprep.subr.mxu0 0.0
        %3006 = vmatpush1.msra.mxu0 0.0
        %3007 = vmatprep.subr.mxu0 0.0
        %3008 = vmatpush1.msra.mxu0 0.0
        %3009 = vmatprep.subr.mxu0 0.0
        %3010 = vmatpush1.msra.mxu0 0.0
        %3011 = vmatprep.subr.mxu0 0.0
        %3012 = vmatpush1.msra.mxu0 0.0
        %3013 = vmatprep.subr.mxu0 0.0
        %3014 = vmatpush1.msra.mxu0 0.0
        %3015 = vmatprep.subr.mxu0 0.0
        %3016 = vmatpush1.msra.mxu0 0.0
        %3017 = vmatprep.subr.mxu0 0.0
        %3018 = vmatpush1.msra.mxu0 0.0
        %3019 = vmatprep.subr.mxu0 0.0
        %3020 = vmatpush1.msra.mxu0 0.0
        %3021 = vmatprep.mubr.f32.mxu0 0.0
        %3022 = vmatmul.mubr.f32.gmra.mrb[0].mxu0 %v2946
        %v3023 = vpop.f32.mrb[0].mxu0
        %v3024 = vadd.f32 %v2928, %v3023
        %v3025 = vpop.f32.mrb[0].mxu0
        %3026 = vmatprep.mubr.f32.mxu0 0.0
        %3027 = vmatmul.mubr.f32.gmra.mrb[0].mxu0 %v2949
        %v3028 = vpop.f32.mrb[0].mxu0
        %v3029 = vadd.f32 %v2933, %v3028
        %v3030 = vpop.f32.mrb[0].mxu0
        %3031 = vmatprep.mubr.f32.mxu0 0.0
        %3032 = vmatmul.mubr.f32.gmra.mrb[0].mxu0 %v2952
        %v3033 = vpop.f32.mrb[0].mxu0
        %v3034 = vadd.f32 %v2938, %v3033
        %v3035 = vpop.f32.mrb[0].mxu0
        %3036 = vmatprep.mubr.f32.mxu0 0.0
        %3037 = vmatmul.mubr.f32.gmra.mrb[0].mxu0 %v2955
        %v3038 = vpop.f32.mrb[0].mxu0
        %v3039 = vadd.f32 %v2943, %v3038
        %v3040 = vpop.f32.mrb[0].mxu0
        %3041 = vdwg.mxu0
        %vm3042 = vcmask 31744
        %v3044 = vsel %vm3042, %v3024, 0
        %v3047 = vsel %vm3042, %v3029, 0
        %v3050 = vsel %vm3042, %v3034, 0
        %v3053 = vsel %vm3042, %v3039, 0
        %v3056 = vsel %vm3042, 1.0, 0
        %vm3058 = vcmask 1043456
        %v3060 = vsel %vm3058, %v2916, 0
        %3062 = vmatprep.subr.mxu0 0.0
        %3063 = vmatpush1.msra.mxu0 %v3060
        %3064 = vmatprep.subr.mxu0 0.0
        %3065 = vmatpush1.msra.mxu0 0.0
        %3066 = vmatprep.subr.mxu0 0.0
        %3067 = vmatpush1.msra.mxu0 0.0
        %3068 = vmatprep.subr.mxu0 0.0
        %3069 = vmatpush1.msra.mxu0 0.0
        %3070 = vmatprep.subr.mxu0 0.0
        %3071 = vmatpush1.msra.mxu0 0.0
        %3072 = vmatprep.subr.mxu0 0.0
        %3073 = vmatpush1.msra.mxu0 0.0
        %3074 = vmatprep.subr.mxu0 0.0
        %3075 = vmatpush1.msra.mxu0 0.0
        %3076 = vmatprep.subr.mxu0 0.0
        %3077 = vmatpush1.msra.mxu0 0.0
        %3078 = vmatprep.subr.mxu0 0.0
        %3079 = vmatpush1.msra.mxu0 0.0
        %3080 = vmatprep.subr.mxu0 0.0
        %3081 = vmatpush1.msra.mxu0 0.0
        %3082 = vmatprep.subr.mxu0 0.0
        %3083 = vmatpush1.msra.mxu0 0.0
        %3084 = vmatprep.subr.mxu0 0.0
        %3085 = vmatpush1.msra.mxu0 0.0
        %3086 = vmatprep.subr.mxu0 0.0
        %3087 = vmatpush1.msra.mxu0 0.0
        %3088 = vmatprep.subr.mxu0 0.0
        %3089 = vmatpush1.msra.mxu0 0.0
        %3090 = vmatprep.subr.mxu0 0.0
        %3091 = vmatpush1.msra.mxu0 0.0
        %3092 = vmatprep.subr.mxu0 0.0
        %3093 = vmatpush1.msra.mxu0 0.0
        %3094 = vmatprep.subr.mxu0 0.0
        %3095 = vmatpush1.msra.mxu0 0.0
        %3096 = vmatprep.subr.mxu0 0.0
        %3097 = vmatpush1.msra.mxu0 0.0
        %3098 = vmatprep.subr.mxu0 0.0
        %3099 = vmatpush1.msra.mxu0 0.0
        %3100 = vmatprep.subr.mxu0 0.0
        %3101 = vmatpush1.msra.mxu0 0.0
        %3102 = vmatprep.subr.mxu0 0.0
        %3103 = vmatpush1.msra.mxu0 0.0
        %3104 = vmatprep.subr.mxu0 0.0
        %3105 = vmatpush1.msra.mxu0 0.0
        %3106 = vmatprep.subr.mxu0 0.0
        %3107 = vmatpush1.msra.mxu0 0.0
        %3108 = vmatprep.subr.mxu0 0.0
        %3109 = vmatpush1.msra.mxu0 0.0
        %3110 = vmatprep.subr.mxu0 0.0
        %3111 = vmatpush1.msra.mxu0 0.0
        %3112 = vmatprep.subr.mxu0 0.0
        %3113 = vmatpush1.msra.mxu0 0.0
        %3114 = vmatprep.subr.mxu0 0.0
        %3115 = vmatpush1.msra.mxu0 0.0
        %3116 = vmatprep.subr.mxu0 0.0
        %3117 = vmatpush1.msra.mxu0 0.0
        %3118 = vmatprep.subr.mxu0 0.0
        %3119 = vmatpush1.msra.mxu0 0.0
        %3120 = vmatprep.subr.mxu0 0.0
        %3121 = vmatpush1.msra.mxu0 0.0
        %3122 = vmatprep.subr.mxu0 0.0
        %3123 = vmatpush1.msra.mxu0 0.0
        %3124 = vmatprep.subr.mxu0 0.0
        %3125 = vmatpush1.msra.mxu0 0.0
        %3126 = vmatprep.mubr.f32.mxu0 0.0
        %3127 = vmatmul.mubr.f32.gmra.mrb[0].mxu0 %v3044
        %v3128 = vpop.f32.mrb[0].mxu0
        %v3129 = vadd.f32 0.0, %v3128
        %v3130 = vpop.f32.mrb[0].mxu0
        %3131 = vmatprep.mubr.f32.mxu0 0.0
        %3132 = vmatmul.mubr.f32.gmra.mrb[0].mxu0 %v3047
        %v3133 = vpop.f32.mrb[0].mxu0
        %v3134 = vadd.f32 0.0, %v3133
        %v3135 = vpop.f32.mrb[0].mxu0
        %3136 = vmatprep.mubr.f32.mxu0 0.0
        %3137 = vmatmul.mubr.f32.gmra.mrb[0].mxu0 %v3050
        %v3138 = vpop.f32.mrb[0].mxu0
        %v3139 = vadd.f32 0.0, %v3138
        %v3140 = vpop.f32.mrb[0].mxu0
        %3141 = vmatprep.mubr.f32.mxu0 0.0
        %3142 = vmatmul.mubr.f32.gmra.mrb[0].mxu0 %v3053
        %v3143 = vpop.f32.mrb[0].mxu0
        %v3144 = vadd.f32 0.0, %v3143
        %v3145 = vpop.f32.mrb[0].mxu0
        %3146 = vmatprep.mubr.f32.mxu0 0.0
        %3147 = vmatmul.mubr.f32.gmra.mrb[0].mxu0 %v3056
        %v3148 = vpop.f32.mrb[0].mxu0
        %v3149 = vadd.f32 0.0, %v3148
        %v3150 = vpop.f32.mrb[0].mxu0
        %3151 = vdwg.mxu0
        %v3152 = vrcp.pop %v3149
        %v3153 = vlaneseq
        %v3154 = vshrl.u32 %v3153, 7
        %v3155 = vsub.s32 0, %v3154
        %v3156 = vrot.slane %v3152, %v3155
        %v3157 = vmul.f32 %v3129, %v3156
        %v3158 = vmul.f32 %v3134, %v3156
        %v3159 = vmul.f32 %v3139, %v3156
        %v3160 = vmul.f32 %v3144, %v3156
        %s3161 = sld [smem:[#allocation29 + $0x1]]
        %v3162 = vstv %s3161
        %v3163 = vmul.f32 %v3162, %v3157
        %v3164 = vmul.f32 %v3162, %v3158
        %v3165 = vmul.f32 %v3162, %v3159
        %v3166 = vmul.f32 %v3162, %v3160
        %v3167 = vadd.f32 %v3163, %v2559
        %v3168 = vadd.f32 %v3164, %v2560
        %v3169 = vadd.f32 %v3165, %v2561
        %v3170 = vadd.f32 %v3166, %v2562
        %v3171 = vpack.c.bf16 %v3168, %v3167
        %v3172 = vpack.c.bf16 %v3170, %v3169
        %v3173 = vld [vmem:[#allocation21] sm:$0xf]
        %v3176 = vunpack.c.l.s4 1983009808
        %v3177 = vunpack.c.0.s8 %v3176
        %v3178 = vlaneseq
        %v3179 = vshrl.u32 %v3178, 7
        %v3180 = vsub.s32 %v3177, %v3179
        %v3181 = vrot.slane %v3173, %v3180
        %v3182 = vcombine.high %v3181, %v3181
        %v3184 = vsel %vm3042, %v3171, 0
        %v3187 = vsel %vm3042, %v3172, 0
        %v3190 = vsel %vm2649, %v3181, 0
        %v3193 = vsel %vm2649, %v3182, 0
        %3195 = vmatprep.subr.bf16.mxu0 %v3193
        %3196 = vmatpush1.bf16.msra.mxu0 %v3190
        %3197 = vmatprep.subr.bf16.mxu0 0
        %3198 = vmatpush1.bf16.msra.mxu0 0
        %3199 = vmatprep.subr.bf16.mxu0 0
        %3200 = vmatpush1.bf16.msra.mxu0 0
        %3201 = vmatprep.subr.bf16.mxu0 0
        %3202 = vmatpush1.bf16.msra.mxu0 0
        %3203 = vmatprep.subr.bf16.mxu0 0
        %3204 = vmatpush1.bf16.msra.mxu0 0
        %3205 = vmatprep.subr.bf16.mxu0 0
        %3206 = vmatpush1.bf16.msra.mxu0 0
        %3207 = vmatprep.subr.bf16.mxu0 0
        %3208 = vmatpush1.bf16.msra.mxu0 0
        %3209 = vmatprep.subr.bf16.mxu0 0
        %3210 = vmatpush1.bf16.msra.mxu0 0
        %3211 = vmatprep.subr.bf16.mxu0 0
        %3212 = vmatpush1.bf16.msra.mxu0 0
        %3213 = vmatprep.subr.bf16.mxu0 0
        %3214 = vmatpush1.bf16.msra.mxu0 0
        %3215 = vmatprep.subr.bf16.mxu0 0
        %3216 = vmatpush1.bf16.msra.mxu0 0
        %3217 = vmatprep.subr.bf16.mxu0 0
        %3218 = vmatpush1.bf16.msra.mxu0 0
        %3219 = vmatprep.subr.bf16.mxu0 0
        %3220 = vmatpush1.bf16.msra.mxu0 0
        %3221 = vmatprep.subr.bf16.mxu0 0
        %3222 = vmatpush1.bf16.msra.mxu0 0
        %3223 = vmatprep.subr.bf16.mxu0 0
        %3224 = vmatpush1.bf16.msra.mxu0 0
        %3225 = vmatprep.subr.bf16.mxu0 0
        %3226 = vmatpush1.bf16.msra.mxu0 0
        %3227 = vmatprep.mubr.bf16.mxu0 0
        %3228 = vmatmul.mubr.bf16.gmra.mrb[0].mxu0 %v3184
        %v3229 = vpop.f32.mrb[0].mxu0
        %v3230 = vadd.f32 0.0, %v3229
        %v3231 = vpop.f32.mrb[0].mxu0
        %v3232 = vadd.f32 0.0, %v3231
        %v3233 = vpop.f32.mrb[0].mxu0
        %v3234 = vadd.f32 0.0, %v3233
        %v3235 = vpop.f32.mrb[0].mxu0
        %v3236 = vadd.f32 0.0, %v3235
        %3237 = vmatprep.mubr.bf16.mxu0 0
        %3238 = vmatmul.mubr.bf16.gmra.mrb[0].mxu0 %v3187
        %v3239 = vpop.f32.mrb[0].mxu0
        %v3240 = vadd.f32 0.0, %v3239
        %v3241 = vpop.f32.mrb[0].mxu0
        %v3242 = vadd.f32 0.0, %v3241
        %v3243 = vpop.f32.mrb[0].mxu0
        %v3244 = vadd.f32 0.0, %v3243
        %v3245 = vpop.f32.mrb[0].mxu0
        %v3246 = vadd.f32 0.0, %v3245
        %3247 = vdwg.mxu0
        %v3248 = vxor.u32 %v3230, 2147483648
        %v3249 = vxor.u32 %v3232, 2147483648
        %v3250 = vxor.u32 %v3234, 2147483648
        %v3251 = vxor.u32 %v3236, 2147483648
        %v3252 = vxor.u32 %v3240, 2147483648
        %v3253 = vxor.u32 %v3242, 2147483648
        %v3254 = vxor.u32 %v3244, 2147483648
        %v3255 = vxor.u32 %v3246, 2147483648
        %v3256 = vmul.f32 %v3248, 1.442695
        %v3257 = vpow.pop %v3256
        %v3258 = vmul.f32 %v3249, 1.442695
        %v3259 = vpow.pop %v3258
        %v3260 = vmul.f32 %v3250, 1.442695
        %v3261 = vpow.pop %v3260
        %v3262 = vmul.f32 %v3251, 1.442695
        %v3263 = vpow.pop %v3262
        %v3264 = vmul.f32 %v3252, 1.442695
        %v3265 = vpow.pop %v3264
        %v3266 = vmul.f32 %v3253, 1.442695
        %v3267 = vpow.pop %v3266
        %v3268 = vmul.f32 %v3254, 1.442695
        %v3269 = vpow.pop %v3268
        %v3270 = vmul.f32 %v3255, 1.442695
        %v3271 = vpow.pop %v3270
        %v3272 = vadd.f32 %v3257, 1.0
        %v3273 = vadd.f32 %v3259, 1.0
        %v3274 = vadd.f32 %v3261, 1.0
        %v3275 = vadd.f32 %v3263, 1.0
        %v3276 = vadd.f32 %v3265, 1.0
        %v3277 = vadd.f32 %v3267, 1.0
        %v3278 = vadd.f32 %v3269, 1.0
        %v3279 = vadd.f32 %v3271, 1.0
        %v3280 = vrcp.pop %v3272
        %v3281 = vmul.f32 1.0, %v3280
        %v3282 = vrcp.pop %v3273
        %v3283 = vmul.f32 1.0, %v3282
        %v3284 = vrcp.pop %v3274
        %v3285 = vmul.f32 1.0, %v3284
        %v3286 = vrcp.pop %v3275
        %v3287 = vmul.f32 1.0, %v3286
        %v3288 = vrcp.pop %v3276
        %v3289 = vmul.f32 1.0, %v3288
        %v3290 = vrcp.pop %v3277
        %v3291 = vmul.f32 1.0, %v3290
        %v3292 = vrcp.pop %v3278
        %v3293 = vmul.f32 1.0, %v3292
        %v3294 = vrcp.pop %v3279
        %v3295 = vmul.f32 1.0, %v3294
        %v3296 = vmul.f32 %v2491, %v3281
        %v3297 = vmul.f32 %v2492, %v3283
        %v3298 = vmul.f32 %v2493, %v3285
        %v3299 = vmul.f32 %v2494, %v3287
        %v3300 = vmul.f32 %v2495, %v3289
        %v3301 = vmul.f32 %v2496, %v3291
        %v3302 = vmul.f32 %v2497, %v3293
        %v3303 = vmul.f32 %v2498, %v3295
        %3304 = vrot.lane.b32.xlu0 %v3296, 17
        %v3305 = vpop.permute.xlu0 %3304
        %3306 = vrot.lane.b32.xlu0 %v3298, 17
        %v3307 = vpop.permute.xlu0 %3306
        %3308 = vrot.lane.b32.xlu0 %v3300, 17
        %v3309 = vpop.permute.xlu0 %3308
        %3310 = vrot.lane.b32.xlu0 %v3302, 17
        %v3311 = vpop.permute.xlu0 %3310
        %3312 = vrot.lane.b32.xlu0 %v3297, 17
        %v3313 = vpop.permute.xlu0 %3312
        %3314 = vrot.lane.b32.xlu0 %v3299, 17
        %v3315 = vpop.permute.xlu0 %3314
        %3316 = vrot.lane.b32.xlu0 %v3301, 17
        %v3317 = vpop.permute.xlu0 %3316
        %3318 = vrot.lane.b32.xlu0 %v3303, 17
        %v3319 = vpop.permute.xlu0 %3318
        %v3320 = vlaneseq
        %v3321 = vand.u32 %v3320, 127
        %vm3322 = vcmp.lt.s32.totalorder %v3321, 17
        %v3323 = vsel %vm3322, %v3305, %v3313
        %v3324 = vsel %vm3322, %v3307, %v3315
        %v3325 = vsel %vm3322, %v3309, %v3317
        %v3326 = vsel %vm3322, %v3311, %v3319
        %v3327 = vsel %vm3322, %v3313, %v3305
        %v3328 = vsel %vm3322, %v3315, %v3307
        %v3329 = vsel %vm3322, %v3317, %v3309
        %v3330 = vsel %vm3322, %v3319, %v3311
        %v3331 = vld [vmem:[#allocation26] sm:$0x3]
        %v3333 = vlaneseq
        %v3334 = vshrl.u32 %v3333, 7
        %v3335 = vsub.s32 0, %v3334
        %v3336 = vrot.slane %v3331, %v3335
        %v3337 = vlaneseq
        %v3338 = vshrl.u32 %v3337, 7
        %v3339 = vsub.s32 1, %v3338
        %v3340 = vrot.slane %v3331, %v3339
        %v3343 = vmul.f32 %v3327, %v3336
        %v3344 = vmul.f32 %v3323, %v3340
        %v3345 = vmul.f32 %v3328, %v3336
        %v3346 = vmul.f32 %v3324, %v3340
        %v3347 = vmul.f32 %v3329, %v3336
        %v3348 = vmul.f32 %v3325, %v3340
        %v3349 = vmul.f32 %v3330, %v3336
        %v3350 = vmul.f32 %v3326, %v3340
        %v3351 = vpack.c.bf16 %v3345, %v3343
        %v3352 = vpack.c.bf16 %v3346, %v3344
        %v3353 = vpack.c.bf16 %v3349, %v3347
        %v3354 = vpack.c.bf16 %v3350, %v3348
        %3355 = vrot.lane.b32.xlu0 %v3296, 16
        %v3356 = vpop.permute.xlu0 %3355
        %3357 = vrot.lane.b32.xlu0 %v3298, 16
        %v3358 = vpop.permute.xlu0 %3357
        %3359 = vrot.lane.b32.xlu0 %v3300, 16
        %v3360 = vpop.permute.xlu0 %3359
        %3361 = vrot.lane.b32.xlu0 %v3302, 16
        %v3362 = vpop.permute.xlu0 %3361
        %3363 = vrot.lane.b32.xlu0 %v3297, 16
        %v3364 = vpop.permute.xlu0 %3363
        %3365 = vrot.lane.b32.xlu0 %v3299, 16
        %v3366 = vpop.permute.xlu0 %3365
        %3367 = vrot.lane.b32.xlu0 %v3301, 16
        %v3368 = vpop.permute.xlu0 %3367
        %3369 = vrot.lane.b32.xlu0 %v3303, 16
        %v3370 = vpop.permute.xlu0 %3369
        %vm3371 = vcmp.lt.s32.totalorder %v3321, 16
        %v3372 = vsel %vm3371, %v3356, %v3364
        %v3373 = vsel %vm3371, %v3358, %v3366
        %v3374 = vsel %vm3371, %v3360, %v3368
        %v3375 = vsel %vm3371, %v3362, %v3370
        %v3376 = vsel %vm3371, %v3364, %v3356
        %v3377 = vsel %vm3371, %v3366, %v3358
        %v3378 = vsel %vm3371, %v3368, %v3360
        %v3379 = vsel %vm3371, %v3370, %v3362
        %s3380 = scalar_lea.vmem [#allocation26], 2
        %v3381 = vld [vmem:[%s3380] sm:$0x3]
        %v3383 = vlaneseq
        %v3384 = vshrl.u32 %v3383, 7
        %v3385 = vsub.s32 0, %v3384
        %v3386 = vrot.slane %v3381, %v3385
        %v3387 = vlaneseq
        %v3388 = vshrl.u32 %v3387, 7
        %v3389 = vsub.s32 1, %v3388
        %v3390 = vrot.slane %v3381, %v3389
        %v3393 = vmul.f32 %v3376, %v3386
        %v3394 = vmul.f32 %v3372, %v3390
        %v3395 = vmul.f32 %v3377, %v3386
        %v3396 = vmul.f32 %v3373, %v3390
        %v3397 = vmul.f32 %v3378, %v3386
        %v3398 = vmul.f32 %v3374, %v3390
        %v3399 = vmul.f32 %v3379, %v3386
        %v3400 = vmul.f32 %v3375, %v3390
        %v3401 = vpack.c.bf16 %v3395, %v3393
        %v3402 = vpack.c.bf16 %v3396, %v3394
        %v3403 = vpack.c.bf16 %v3399, %v3397
        %v3404 = vpack.c.bf16 %v3400, %v3398
        %3405 = vrot.lane.b32.xlu0 %v3296, 15
        %v3406 = vpop.permute.xlu0 %3405
        %3407 = vrot.lane.b32.xlu0 %v3298, 15
        %v3408 = vpop.permute.xlu0 %3407
        %3409 = vrot.lane.b32.xlu0 %v3300, 15
        %v3410 = vpop.permute.xlu0 %3409
        %3411 = vrot.lane.b32.xlu0 %v3302, 15
        %v3412 = vpop.permute.xlu0 %3411
        %3413 = vrot.lane.b32.xlu0 %v3297, 15
        %v3414 = vpop.permute.xlu0 %3413
        %3415 = vrot.lane.b32.xlu0 %v3299, 15
        %v3416 = vpop.permute.xlu0 %3415
        %3417 = vrot.lane.b32.xlu0 %v3301, 15
        %v3418 = vpop.permute.xlu0 %3417
        %3419 = vrot.lane.b32.xlu0 %v3303, 15
        %v3420 = vpop.permute.xlu0 %3419
        %vm3421 = vcmp.lt.s32.totalorder %v3321, 15
        %v3422 = vsel %vm3421, %v3406, %v3414
        %v3423 = vsel %vm3421, %v3408, %v3416
        %v3424 = vsel %vm3421, %v3410, %v3418
        %v3425 = vsel %vm3421, %v3412, %v3420
        %v3426 = vsel %vm3421, %v3414, %v3406
        %v3427 = vsel %vm3421, %v3416, %v3408
        %v3428 = vsel %vm3421, %v3418, %v3410
        %v3429 = vsel %vm3421, %v3420, %v3412
        %s3430 = scalar_lea.vmem [#allocation26], 4
        %v3431 = vld [vmem:[%s3430] sm:$0x3]
        %v3433 = vlaneseq
        %v3434 = vshrl.u32 %v3433, 7
        %v3435 = vsub.s32 0, %v3434
        %v3436 = vrot.slane %v3431, %v3435
        %v3437 = vlaneseq
        %v3438 = vshrl.u32 %v3437, 7
        %v3439 = vsub.s32 1, %v3438
        %v3440 = vrot.slane %v3431, %v3439
        %v3443 = vmul.f32 %v3426, %v3436
        %v3444 = vmul.f32 %v3422, %v3440
        %v3445 = vmul.f32 %v3427, %v3436
        %v3446 = vmul.f32 %v3423, %v3440
        %v3447 = vmul.f32 %v3428, %v3436
        %v3448 = vmul.f32 %v3424, %v3440
        %v3449 = vmul.f32 %v3429, %v3436
        %v3450 = vmul.f32 %v3425, %v3440
        %v3451 = vpack.c.bf16 %v3445, %v3443
        %v3452 = vpack.c.bf16 %v3446, %v3444
        %v3453 = vpack.c.bf16 %v3449, %v3447
        %v3454 = vpack.c.bf16 %v3450, %v3448
        %3455 = vrot.lane.b32.xlu0 %v3296, 1
        %v3456 = vpop.permute.xlu0 %3455
        %3457 = vrot.lane.b32.xlu0 %v3298, 1
        %v3458 = vpop.permute.xlu0 %3457
        %3459 = vrot.lane.b32.xlu0 %v3300, 1
        %v3460 = vpop.permute.xlu0 %3459
        %3461 = vrot.lane.b32.xlu0 %v3302, 1
        %v3462 = vpop.permute.xlu0 %3461
        %3463 = vrot.lane.b32.xlu0 %v3297, 1
        %v3464 = vpop.permute.xlu0 %3463
        %3465 = vrot.lane.b32.xlu0 %v3299, 1
        %v3466 = vpop.permute.xlu0 %3465
        %3467 = vrot.lane.b32.xlu0 %v3301, 1
        %v3468 = vpop.permute.xlu0 %3467
        %3469 = vrot.lane.b32.xlu0 %v3303, 1
        %v3470 = vpop.permute.xlu0 %3469
        %vm3471 = vcmp.lt.s32.totalorder %v3321, 1
        %v3472 = vsel %vm3471, %v3456, %v3464
        %v3473 = vsel %vm3471, %v3458, %v3466
        %v3474 = vsel %vm3471, %v3460, %v3468
        %v3475 = vsel %vm3471, %v3462, %v3470
        %v3476 = vsel %vm3471, %v3464, %v3456
        %v3477 = vsel %vm3471, %v3466, %v3458
        %v3478 = vsel %vm3471, %v3468, %v3460
        %v3479 = vsel %vm3471, %v3470, %v3462
        %s3480 = scalar_lea.vmem [#allocation26], 6
        %v3481 = vld [vmem:[%s3480] sm:$0x3]
        %v3483 = vlaneseq
        %v3484 = vshrl.u32 %v3483, 7
        %v3485 = vsub.s32 0, %v3484
        %v3486 = vrot.slane %v3481, %v3485
        %v3487 = vlaneseq
        %v3488 = vshrl.u32 %v3487, 7
        %v3489 = vsub.s32 1, %v3488
        %v3490 = vrot.slane %v3481, %v3489
        %v3493 = vmul.f32 %v3476, %v3486
        %v3494 = vmul.f32 %v3472, %v3490
        %v3495 = vmul.f32 %v3477, %v3486
        %v3496 = vmul.f32 %v3473, %v3490
        %v3497 = vmul.f32 %v3478, %v3486
        %v3498 = vmul.f32 %v3474, %v3490
        %v3499 = vmul.f32 %v3479, %v3486
        %v3500 = vmul.f32 %v3475, %v3490
        %v3501 = vpack.c.bf16 %v3495, %v3493
        %v3502 = vpack.c.bf16 %v3496, %v3494
        %v3503 = vpack.c.bf16 %v3499, %v3497
        %v3504 = vpack.c.bf16 %v3500, %v3498
        %s3505 = scalar_lea.vmem [#allocation26], 8
        %v3506 = vld [vmem:[%s3505] sm:$0x3]
        %v3508 = vlaneseq
        %v3509 = vshrl.u32 %v3508, 7
        %v3510 = vsub.s32 0, %v3509
        %v3511 = vrot.slane %v3506, %v3510
        %v3512 = vlaneseq
        %v3513 = vshrl.u32 %v3512, 7
        %v3514 = vsub.s32 1, %v3513
        %v3515 = vrot.slane %v3506, %v3514
        %v3518 = vmul.f32 %v3296, %v3511
        %v3519 = vmul.f32 %v3297, %v3515
        %v3520 = vmul.f32 %v3298, %v3511
        %v3521 = vmul.f32 %v3299, %v3515
        %v3522 = vmul.f32 %v3300, %v3511
        %v3523 = vmul.f32 %v3301, %v3515
        %v3524 = vmul.f32 %v3302, %v3511
        %v3525 = vmul.f32 %v3303, %v3515
        %v3526 = vpack.c.bf16 %v3520, %v3518
        %v3527 = vpack.c.bf16 %v3521, %v3519
        %v3528 = vpack.c.bf16 %v3524, %v3522
        %v3529 = vpack.c.bf16 %v3525, %v3523
        %3530 = vrot.lane.b32.xlu0 %v3296, 127
        %v3531 = vpop.permute.xlu0 %3530
        %3532 = vrot.lane.b32.xlu0 %v3298, 127
        %v3533 = vpop.permute.xlu0 %3532
        %3534 = vrot.lane.b32.xlu0 %v3300, 127
        %v3535 = vpop.permute.xlu0 %3534
        %3536 = vrot.lane.b32.xlu0 %v3302, 127
        %v3537 = vpop.permute.xlu0 %3536
        %3538 = vrot.lane.b32.xlu0 %v3297, 127
        %v3539 = vpop.permute.xlu0 %3538
        %3540 = vrot.lane.b32.xlu0 %v3299, 127
        %v3541 = vpop.permute.xlu0 %3540
        %3542 = vrot.lane.b32.xlu0 %v3301, 127
        %v3543 = vpop.permute.xlu0 %3542
        %3544 = vrot.lane.b32.xlu0 %v3303, 127
        %v3545 = vpop.permute.xlu0 %3544
        %vm3546 = vcmp.lt.s32.totalorder %v3321, 127
        %v3547 = vsel %vm3546, %v3531, %v3539
        %v3548 = vsel %vm3546, %v3533, %v3541
        %v3549 = vsel %vm3546, %v3535, %v3543
        %v3550 = vsel %vm3546, %v3537, %v3545
        %v3551 = vsel %vm3546, %v3539, %v3531
        %v3552 = vsel %vm3546, %v3541, %v3533
        %v3553 = vsel %vm3546, %v3543, %v3535
        %v3554 = vsel %vm3546, %v3545, %v3537
        %s3555 = scalar_lea.vmem [#allocation26], 10
        %v3556 = vld [vmem:[%s3555] sm:$0x3]
        %v3558 = vlaneseq
        %v3559 = vshrl.u32 %v3558, 7
        %v3560 = vsub.s32 0, %v3559
        %v3561 = vrot.slane %v3556, %v3560
        %v3562 = vlaneseq
        %v3563 = vshrl.u32 %v3562, 7
        %v3564 = vsub.s32 1, %v3563
        %v3565 = vrot.slane %v3556, %v3564
        %v3568 = vmul.f32 %v3547, %v3561
        %v3569 = vmul.f32 %v3551, %v3565
        %v3570 = vmul.f32 %v3548, %v3561
        %v3571 = vmul.f32 %v3552, %v3565
        %v3572 = vmul.f32 %v3549, %v3561
        %v3573 = vmul.f32 %v3553, %v3565
        %v3574 = vmul.f32 %v3550, %v3561
        %v3575 = vmul.f32 %v3554, %v3565
        %v3576 = vpack.c.bf16 %v3570, %v3568
        %v3577 = vpack.c.bf16 %v3571, %v3569
        %v3578 = vpack.c.bf16 %v3574, %v3572
        %v3579 = vpack.c.bf16 %v3575, %v3573
        %3580 = vrot.lane.b32.xlu0 %v3296, 113
        %v3581 = vpop.permute.xlu0 %3580
        %3582 = vrot.lane.b32.xlu0 %v3298, 113
        %v3583 = vpop.permute.xlu0 %3582
        %3584 = vrot.lane.b32.xlu0 %v3300, 113
        %v3585 = vpop.permute.xlu0 %3584
        %3586 = vrot.lane.b32.xlu0 %v3302, 113
        %v3587 = vpop.permute.xlu0 %3586
        %3588 = vrot.lane.b32.xlu0 %v3297, 113
        %v3589 = vpop.permute.xlu0 %3588
        %3590 = vrot.lane.b32.xlu0 %v3299, 113
        %v3591 = vpop.permute.xlu0 %3590
        %3592 = vrot.lane.b32.xlu0 %v3301, 113
        %v3593 = vpop.permute.xlu0 %3592
        %3594 = vrot.lane.b32.xlu0 %v3303, 113
        %v3595 = vpop.permute.xlu0 %3594
        %vm3596 = vcmp.lt.s32.totalorder %v3321, 113
        %v3597 = vsel %vm3596, %v3581, %v3589
        %v3598 = vsel %vm3596, %v3583, %v3591
        %v3599 = vsel %vm3596, %v3585, %v3593
        %v3600 = vsel %vm3596, %v3587, %v3595
        %v3601 = vsel %vm3596, %v3589, %v3581
        %v3602 = vsel %vm3596, %v3591, %v3583
        %v3603 = vsel %vm3596, %v3593, %v3585
        %v3604 = vsel %vm3596, %v3595, %v3587
        %s3605 = scalar_lea.vmem [#allocation26], 12
        %v3606 = vld [vmem:[%s3605] sm:$0x3]
        %v3608 = vlaneseq
        %v3609 = vshrl.u32 %v3608, 7
        %v3610 = vsub.s32 0, %v3609
        %v3611 = vrot.slane %v3606, %v3610
        %v3612 = vlaneseq
        %v3613 = vshrl.u32 %v3612, 7
        %v3614 = vsub.s32 1, %v3613
        %v3615 = vrot.slane %v3606, %v3614
        %v3618 = vmul.f32 %v3597, %v3611
        %v3619 = vmul.f32 %v3601, %v3615
        %v3620 = vmul.f32 %v3598, %v3611
        %v3621 = vmul.f32 %v3602, %v3615
        %v3622 = vmul.f32 %v3599, %v3611
        %v3623 = vmul.f32 %v3603, %v3615
        %v3624 = vmul.f32 %v3600, %v3611
        %v3625 = vmul.f32 %v3604, %v3615
        %v3626 = vpack.c.bf16 %v3620, %v3618
        %v3627 = vpack.c.bf16 %v3621, %v3619
        %v3628 = vpack.c.bf16 %v3624, %v3622
        %v3629 = vpack.c.bf16 %v3625, %v3623
        %3630 = vrot.lane.b32.xlu0 %v3296, 112
        %v3631 = vpop.permute.xlu0 %3630
        %3632 = vrot.lane.b32.xlu0 %v3298, 112
        %v3633 = vpop.permute.xlu0 %3632
        %3634 = vrot.lane.b32.xlu0 %v3300, 112
        %v3635 = vpop.permute.xlu0 %3634
        %3636 = vrot.lane.b32.xlu0 %v3302, 112
        %v3637 = vpop.permute.xlu0 %3636
        %3638 = vrot.lane.b32.xlu0 %v3297, 112
        %v3639 = vpop.permute.xlu0 %3638
        %3640 = vrot.lane.b32.xlu0 %v3299, 112
        %v3641 = vpop.permute.xlu0 %3640
        %3642 = vrot.lane.b32.xlu0 %v3301, 112
        %v3643 = vpop.permute.xlu0 %3642
        %3644 = vrot.lane.b32.xlu0 %v3303, 112
        %v3645 = vpop.permute.xlu0 %3644
        %vm3646 = vcmp.lt.s32.totalorder %v3321, 112
        %v3647 = vsel %vm3646, %v3631, %v3639
        %v3648 = vsel %vm3646, %v3633, %v3641
        %v3649 = vsel %vm3646, %v3635, %v3643
        %v3650 = vsel %vm3646, %v3637, %v3645
        %v3651 = vsel %vm3646, %v3639, %v3631
        %v3652 = vsel %vm3646, %v3641, %v3633
        %v3653 = vsel %vm3646, %v3643, %v3635
        %v3654 = vsel %vm3646, %v3645, %v3637
        %s3655 = scalar_lea.vmem [#allocation26], 14
        %v3656 = vld [vmem:[%s3655] sm:$0x3]
        %v3658 = vlaneseq
        %v3659 = vshrl.u32 %v3658, 7
        %v3660 = vsub.s32 0, %v3659
        %v3661 = vrot.slane %v3656, %v3660
        %v3662 = vlaneseq
        %v3663 = vshrl.u32 %v3662, 7
        %v3664 = vsub.s32 1, %v3663
        %v3665 = vrot.slane %v3656, %v3664
        %v3668 = vmul.f32 %v3647, %v3661
        %v3669 = vmul.f32 %v3651, %v3665
        %v3670 = vmul.f32 %v3648, %v3661
        %v3671 = vmul.f32 %v3652, %v3665
        %v3672 = vmul.f32 %v3649, %v3661
        %v3673 = vmul.f32 %v3653, %v3665
        %v3674 = vmul.f32 %v3650, %v3661
        %v3675 = vmul.f32 %v3654, %v3665
        %v3676 = vpack.c.bf16 %v3670, %v3668
        %v3677 = vpack.c.bf16 %v3671, %v3669
        %v3678 = vpack.c.bf16 %v3674, %v3672
        %v3679 = vpack.c.bf16 %v3675, %v3673
        %3680 = vrot.lane.b32.xlu0 %v3296, 111
        %v3681 = vpop.permute.xlu0 %3680
        %3682 = vrot.lane.b32.xlu0 %v3298, 111
        %v3683 = vpop.permute.xlu0 %3682
        %3684 = vrot.lane.b32.xlu0 %v3300, 111
        %v3685 = vpop.permute.xlu0 %3684
        %3686 = vrot.lane.b32.xlu0 %v3302, 111
        %v3687 = vpop.permute.xlu0 %3686
        %3688 = vrot.lane.b32.xlu0 %v3297, 111
        %v3689 = vpop.permute.xlu0 %3688
        %3690 = vrot.lane.b32.xlu0 %v3299, 111
        %v3691 = vpop.permute.xlu0 %3690
        %3692 = vrot.lane.b32.xlu0 %v3301, 111
        %v3693 = vpop.permute.xlu0 %3692
        %3694 = vrot.lane.b32.xlu0 %v3303, 111
        %v3695 = vpop.permute.xlu0 %3694
        %vm3696 = vcmp.lt.s32.totalorder %v3321, 111
        %v3697 = vsel %vm3696, %v3681, %v3689
        %v3698 = vsel %vm3696, %v3683, %v3691
        %v3699 = vsel %vm3696, %v3685, %v3693
        %v3700 = vsel %vm3696, %v3687, %v3695
        %v3701 = vsel %vm3696, %v3689, %v3681
        %v3702 = vsel %vm3696, %v3691, %v3683
        %v3703 = vsel %vm3696, %v3693, %v3685
        %v3704 = vsel %vm3696, %v3695, %v3687
        %s3705 = scalar_lea.vmem [#allocation26], 16
        %v3706 = vld [vmem:[%s3705] sm:$0x3]
        %v3708 = vlaneseq
        %v3709 = vshrl.u32 %v3708, 7
        %v3710 = vsub.s32 0, %v3709
        %v3711 = vrot.slane %v3706, %v3710
        %v3712 = vlaneseq
        %v3713 = vshrl.u32 %v3712, 7
        %v3714 = vsub.s32 1, %v3713
        %v3715 = vrot.slane %v3706, %v3714
        %v3718 = vmul.f32 %v3697, %v3711
        %v3719 = vmul.f32 %v3701, %v3715
        %v3720 = vmul.f32 %v3698, %v3711
        %v3721 = vmul.f32 %v3702, %v3715
        %v3722 = vmul.f32 %v3699, %v3711
        %v3723 = vmul.f32 %v3703, %v3715
        %v3724 = vmul.f32 %v3700, %v3711
        %v3725 = vmul.f32 %v3704, %v3715
        %v3726 = vpack.c.bf16 %v3720, %v3718
        %v3727 = vpack.c.bf16 %v3721, %v3719
        %v3728 = vpack.c.bf16 %v3724, %v3722
        %v3729 = vpack.c.bf16 %v3725, %v3723
        %v3730 = vld [vmem:[#allocation24] sm:$0xff]
        %v3731 = vld [vmem:[#allocation24 + $0x8] sm:$0xf]
        %v3732 = vld [vmem:[#allocation24 + $0xc] sm:$0xff]
        %v3733 = vld [vmem:[#allocation24 + $0x14] sm:$0xf]
        %v3734 = vld [vmem:[#allocation24 + $0x18] sm:$0xff]
        %v3735 = vld [vmem:[#allocation24 + $0x20] sm:$0xf]
        %v3736 = vld [vmem:[#allocation24 + $0x24] sm:$0xff]
        %v3737 = vld [vmem:[#allocation24 + $0x2c] sm:$0xf]
        %v3738 = vld [vmem:[#allocation27] sm:$0xff]
        %v3739 = vld [vmem:[#allocation27 + $0x8] sm:$0xff]
        %v3740 = vld [vmem:[#allocation27 + $0x10] sm:$0xff]
        %v3741 = vld [vmem:[#allocation27 + $0x18] sm:$0xff]
        %3743 = vset.pattern.permute.xlu0 0
        %3744 = vperm.xlu0 %3743, %v3738
        %v3745 = vpop.permute.xlu0 %3744
        %3748 = vset.pattern.permute.xlu0 0
        %3749 = vperm.xlu0 %3748, %v3739
        %v3750 = vpop.permute.xlu0 %3749
        %3753 = vset.pattern.permute.xlu0 0
        %3754 = vperm.xlu0 %3753, %v3740
        %v3755 = vpop.permute.xlu0 %3754
        %3758 = vset.pattern.permute.xlu0 0
        %3759 = vperm.xlu0 %3758, %v3741
        %v3760 = vpop.permute.xlu0 %3759
        %v3770 = vunpack.c.l.b16 %v3730
        %v3771 = vunpack.c.h.b16 %v3730
        %v3772 = vunpack.c.l.b16 %v3731
        %v3773 = vunpack.c.l.b16 %v3732
        %v3774 = vunpack.c.h.b16 %v3732
        %v3775 = vunpack.c.l.b16 %v3733
        %v3776 = vunpack.c.l.b16 %v3734
        %v3777 = vunpack.c.h.b16 %v3734
        %v3778 = vunpack.c.l.b16 %v3735
        %v3779 = vunpack.c.l.b16 %v3736
        %v3780 = vunpack.c.h.b16 %v3736
        %v3781 = vunpack.c.l.b16 %v3737
        %v3782 = vpack.c.b16 %v3773, %v3770
        %v3783 = vpack.c.b16 %v3774, %v3771
        %v3784 = vpack.c.b16 %v3775, %v3772
        %v3785 = vpack.c.b16 %v3779, %v3776
        %v3786 = vpack.c.b16 %v3780, %v3777
        %v3787 = vpack.c.b16 %v3781, %v3778
        %v3793 = vsel %vm927, %v3784, 0
        %v3796 = vsel %vm927, %v3787, 0
        %3798 = vmatprep.subr.bf16.mxu0 %v3352
        %3799 = vmatpush1.bf16.msra.mxu0 %v3351
        %3800 = vmatprep.subr.bf16.mxu0 %v3354
        %3801 = vmatpush1.bf16.msra.mxu0 %v3353
        %3802 = vmatprep.subr.bf16.mxu0 %v3402
        %3803 = vmatpush1.bf16.msra.mxu0 %v3401
        %3804 = vmatprep.subr.bf16.mxu0 %v3404
        %3805 = vmatpush1.bf16.msra.mxu0 %v3403
        %3806 = vmatprep.subr.bf16.mxu0 %v3452
        %3807 = vmatpush1.bf16.msra.mxu0 %v3451
        %3808 = vmatprep.subr.bf16.mxu0 %v3454
        %3809 = vmatpush1.bf16.msra.mxu0 %v3453
        %3810 = vmatprep.subr.bf16.mxu0 %v3502
        %3811 = vmatpush1.bf16.msra.mxu0 %v3501
        %3812 = vmatprep.subr.bf16.mxu0 %v3504
        %3813 = vmatpush1.bf16.msra.mxu0 %v3503
        %3814 = vmatprep.subr.bf16.mxu0 %v3527
        %3815 = vmatpush1.bf16.msra.mxu0 %v3526
        %3816 = vmatprep.subr.bf16.mxu0 %v3529
        %3817 = vmatpush1.bf16.msra.mxu0 %v3528
        %3818 = vmatprep.subr.bf16.mxu0 %v3577
        %3819 = vmatpush1.bf16.msra.mxu0 %v3576
        %3820 = vmatprep.subr.bf16.mxu0 %v3579
        %3821 = vmatpush1.bf16.msra.mxu0 %v3578
        %3822 = vmatprep.subr.bf16.mxu0 %v3627
        %3823 = vmatpush1.bf16.msra.mxu0 %v3626
        %3824 = vmatprep.subr.bf16.mxu0 %v3629
        %3825 = vmatpush1.bf16.msra.mxu0 %v3628
        %3826 = vmatprep.subr.bf16.mxu0 %v3677
        %3827 = vmatpush1.bf16.msra.mxu0 %v3676
        %3828 = vmatprep.subr.bf16.mxu0 %v3679
        %3829 = vmatpush1.bf16.msra.mxu0 %v3678
        %3830 = vmatprep.mubr.bf16.mxu0 %v3783
        %3831 = vmatmul.mubr.bf16.gmra.mrb[0].mxu0 %v3782
        %v3832 = vpop.f32.mrb[0].mxu0
        %v3833 = vadd.f32 %v3745, %v3832
        %v3834 = vpop.f32.mrb[0].mxu0
        %v3835 = vadd.f32 %v3745, %v3834
        %v3836 = vpop.f32.mrb[0].mxu0
        %v3837 = vadd.f32 %v3750, %v3836
        %v3838 = vpop.f32.mrb[0].mxu0
        %v3839 = vadd.f32 %v3750, %v3838
        %3840 = vmatprep.mubr.bf16.mxu0 %v3786
        %3841 = vmatmul.mubr.bf16.gmra.mrb[0].mxu0 %v3785
        %v3842 = vpop.f32.mrb[0].mxu0
        %v3843 = vadd.f32 %v3755, %v3842
        %v3844 = vpop.f32.mrb[0].mxu0
        %v3845 = vadd.f32 %v3755, %v3844
        %v3846 = vpop.f32.mrb[0].mxu0
        %v3847 = vadd.f32 %v3760, %v3846
        %v3848 = vpop.f32.mrb[0].mxu0
        %v3849 = vadd.f32 %v3760, %v3848
        %3850 = vdwg.mxu0
        %3851 = vmatprep.subr.bf16.mxu0 %v3727
        %3852 = vmatpush1.bf16.msra.mxu0 %v3726
        %3853 = vmatprep.subr.bf16.mxu0 %v3729
        %3854 = vmatpush1.bf16.msra.mxu0 %v3728
        %3855 = vmatprep.subr.bf16.mxu0 0
        %3856 = vmatpush1.bf16.msra.mxu0 0
        %3857 = vmatprep.subr.bf16.mxu0 0
        %3858 = vmatpush1.bf16.msra.mxu0 0
        %3859 = vmatprep.subr.bf16.mxu0 0
        %3860 = vmatpush1.bf16.msra.mxu0 0
        %3861 = vmatprep.subr.bf16.mxu0 0
        %3862 = vmatpush1.bf16.msra.mxu0 0
        %3863 = vmatprep.subr.bf16.mxu0 0
        %3864 = vmatpush1.bf16.msra.mxu0 0
        %3865 = vmatprep.subr.bf16.mxu0 0
        %3866 = vmatpush1.bf16.msra.mxu0 0
        %3867 = vmatprep.subr.bf16.mxu0 0
        %3868 = vmatpush1.bf16.msra.mxu0 0
        %3869 = vmatprep.subr.bf16.mxu0 0
        %3870 = vmatpush1.bf16.msra.mxu0 0
        %3871 = vmatprep.subr.bf16.mxu0 0
        %3872 = vmatpush1.bf16.msra.mxu0 0
        %3873 = vmatprep.subr.bf16.mxu0 0
        %3874 = vmatpush1.bf16.msra.mxu0 0
        %3875 = vmatprep.subr.bf16.mxu0 0
        %3876 = vmatpush1.bf16.msra.mxu0 0
        %3877 = vmatprep.subr.bf16.mxu0 0
        %3878 = vmatpush1.bf16.msra.mxu0 0
        %3879 = vmatprep.subr.bf16.mxu0 0
        %3880 = vmatpush1.bf16.msra.mxu0 0
        %3881 = vmatprep.subr.bf16.mxu0 0
        %3882 = vmatpush1.bf16.msra.mxu0 0
        %3883 = vmatprep.mubr.bf16.mxu0 0
        %3884 = vmatmul.mubr.bf16.gmra.mrb[0].mxu0 %v3793
        %v3885 = vpop.f32.mrb[0].mxu0
        %v3886 = vadd.f32 %v3833, %v3885
        %v3887 = vpop.f32.mrb[0].mxu0
        %v3888 = vadd.f32 %v3835, %v3887
        %v3889 = vpop.f32.mrb[0].mxu0
        %v3890 = vadd.f32 %v3837, %v3889
        %v3891 = vpop.f32.mrb[0].mxu0
        %v3892 = vadd.f32 %v3839, %v3891
        %3893 = vmatprep.mubr.bf16.mxu0 0
        %3894 = vmatmul.mubr.bf16.gmra.mrb[0].mxu0 %v3796
        %v3895 = vpop.f32.mrb[0].mxu0
        %v3896 = vadd.f32 %v3843, %v3895
        %v3897 = vpop.f32.mrb[0].mxu0
        %v3898 = vadd.f32 %v3845, %v3897
        %v3899 = vpop.f32.mrb[0].mxu0
        %v3900 = vadd.f32 %v3847, %v3899
        %v3901 = vpop.f32.mrb[0].mxu0
        %v3902 = vadd.f32 %v3849, %v3901
        %3903 = vdwg.mxu0
        %s3904 = sld [smem:[#allocation29 + $0x2]]
        %v3905 = vstv %s3904
        %v3906 = vmul.f32 %v3905, %v3886
        %v3907 = vmul.f32 %v3905, %v3888
        %v3908 = vmul.f32 %v3905, %v3890
        %v3909 = vmul.f32 %v3905, %v3892
        %v3910 = vmul.f32 %v3905, %v3896
        %v3911 = vmul.f32 %v3905, %v3898
        %v3912 = vmul.f32 %v3905, %v3900
        %v3913 = vmul.f32 %v3905, %v3902
        %v3914 = vadd.f32 %v3906, %v845
        %v3915 = vadd.f32 %v3907, %v846
        %v3916 = vadd.f32 %v3908, %v847
        %v3917 = vadd.f32 %v3909, %v848
        %v3918 = vadd.f32 %v3910, %v849
        %v3919 = vadd.f32 %v3911, %v850
        %v3920 = vadd.f32 %v3912, %v851
        %v3921 = vadd.f32 %v3913, %v852
        %v3922 = vmax.f32 %v3914, 0.0
        %v3923 = vmax.f32 %v3915, 0.0
        %v3924 = vmax.f32 %v3916, 0.0
        %v3925 = vmax.f32 %v3917, 0.0
        %v3926 = vmax.f32 %v3918, 0.0
        %v3927 = vmax.f32 %v3919, 0.0
        %v3928 = vmax.f32 %v3920, 0.0
        %v3929 = vmax.f32 %v3921, 0.0
        %3930 = vst [vmem:[%s842] sm:$0xff] %v3922
        %3931 = vst [vmem:[%s842 + $0x8] sm:$0xff] %v3923
        %3932 = vst [vmem:[%s842 + $0x10] sm:$0xff] %v3924
        %3933 = vst [vmem:[%s842 + $0x18] sm:$0xff] %v3925
        %3934 = vst [vmem:[%s842 + $0x20] sm:$0xff] %v3926
        %3935 = vst [vmem:[%s842 + $0x28] sm:$0xff] %v3927
        %3936 = vst [vmem:[%s842 + $0x30] sm:$0xff] %v3928
        %3937 = vst [vmem:[%s842 + $0x38] sm:$0xff] %v3929
        %s3938 = sand.u32 %s425, 1
        %s3939 = scalar_lea.sflag [#allocation4], %s3938
        %s3940 = sand.u32 %s425, 1
        %s3941 = smul.addr %s3940, 64
        %s3942 = scalar_lea.vmem [#allocation30], %s3941
        // Predicated region
        $region157: #{tpu_custom_call.1} parent=87 // pred_check
          %p3943 = pneg %p435
        $region158: #{tpu_custom_call.1} parent=87 // pred_check_branch
          %3945 = sbr.rel (%p3943) target = $region160
        $region159: #{tpu_custom_call.1} parent=87 // pred_region
          %s3947 = ssub.s32 1024, 1024
          %3948 = vsyncadd %s3939, %s3947
          %s3949 = smul.addr %s45, 8
          %s3950 = smul.addr %s3949, 128
          %s3951 = scalar_lea.hbm %s17, %s3950
          %s3952 = sshll.u32 %s3942, 4
          %s3953 = int_to_ptr.vmem [resolvable:$true] %s3952
          %3958 = dma.vmem_to_hbm [thread:$0]  %s3953, 1024, %s3951, %s3939, 256, 256, 16
        $region160: #{tpu_custom_call.1} parent=87 // pred_fallthru
          _
      $region88: #{tpu_custom_call.1} parent=5 // pred_fallthru
        _
      %p3959 = scmp.le.s32.totalorder 2, %s40
      // Predicated region
      $region161: #{tpu_custom_call.1} parent=5 // pred_check
        %p3960 = pneg %p3959
      $region162: #{tpu_custom_call.1} parent=5 // pred_check_branch
        %3962 = sbr.rel (%p3960) target = $region164
      $region163: #{tpu_custom_call.1} parent=5 // pred_region
        %s3963 = ssub.s32 %s40, 2
        // Predicated region
        $region165: #{tpu_custom_call.1} parent=163 // pred_check
          %p3964 = pneg %p441
        $region166: #{tpu_custom_call.1} parent=163 // pred_check_branch
          %3966 = sbr.rel (%p3964) target = $region168
        $region167: #{tpu_custom_call.1} parent=163 // pred_region
          %s3967 = sand.u32 %s426, 1
          %s3968 = scalar_lea.sflag [#allocation4], %s3967
          %s3969 = sand.u32 %s426, 1
          %s3970 = smul.addr %s3969, 64
          %s3971 = scalar_lea.vmem [#allocation30], %s3970
          %3972 = dma.done %s3968, 1024
        $region168: #{tpu_custom_call.1} parent=163 // pred_fallthru
          _
      $region164: #{tpu_custom_call.1} parent=5 // pred_fallthru
        _
    $region6: #{tpu_custom_call.1} parent=1 // loop_footer
      %s44 = sadd.s32 1, %s40
    $region7: #{tpu_custom_call.1} parent=1 // loop_footer_branch
      %39 = sbr.rel target = $region3
    $region8: #{tpu_custom_call.1} parent=1 // loop_exit
      _
    %3973 = vsyncpa [#allocation3], 1
    %s3974 = scalar_lea.sflag [#allocation3], 1
    %3975 = vsyncpa %s3974, 1
    %3976 = vsyncpa [#allocation7], 1
    %s3977 = scalar_lea.sflag [#allocation7], 1
    %3978 = vsyncpa %s3977, 1
    %3979 = vsyncpa [#allocation10], 1
    %3980 = vsyncpa [#allocation13], 1
    %3981 = vsyncpa [#allocation16], 1
    %3982 = vsyncpa [#allocation19], 1
    %3983 = vsyncpa [#allocation22], 1
    %3984 = vsyncpa [#allocation25], 1
    %3985 = vsyncpa [#allocation28], 1
    %3986 = vsyncpa [#allocation4], 1
    %s3987 = scalar_lea.sflag [#allocation4], 1
    %3988 = vsyncpa %s3987, 1
    %3989 = vsyncpa [#allocation5], 1
    %s3990 = scalar_lea.sflag [#allocation5], 1
    %3991 = vsyncpa %s3990, 1

</llo_original>
